<compile_context>
chip_gen: v7x
topology: tpu7x:2x2x1
jax: 0.10.0
libtpu: 0.0.40
codegen_flags: <defaults>
</compile_context>

<pallas_src>
import functools

import jax
import jax.numpy as jnp
from jax.experimental import pallas as pl
from jax.experimental.pallas import tpu as pltpu

DIM = 2
WIDTH = 20
BLOCKS = 3
MAX_TILE = 8192  # batch points per grid step (multiple of 128)


def _round_up(x, m):
    return ((x + m - 1) // m) * m


def _cdiv(a, b):
    return (a + b - 1) // b


def _poisson_kernel(xy_ref, wx_ref, wy_ref, pre_b_ref,
                    w1_ref, b1_ref, w2_ref, b2_ref,
                    last_w_ref, last_b_ref, out_ref, *, blocks, tanh_dtype):
    def act(v):
        # Optional bf16 EUP path (v6e/v7x): cast around tanh only; dots,
        # residual adds and the output reduction stay f32.
        if tanh_dtype != jnp.float32:
            return jnp.tanh(v.astype(tanh_dtype)).astype(jnp.float32)
        return jnp.tanh(v)

    xy = xy_ref[...]          # (2, T)  batch on lanes
    x = xy[0:1, :]            # (1, T)
    y = xy[1:2, :]            # (1, T)

    # pre_layer + tanh as a VPU broadcast FMA: (W,1)*(1,T) -> (W,T)
    u = act(wx_ref[...] * x + wy_ref[...] * y + pre_b_ref[...])

    # residual blocks: u = tanh(W2 @ tanh(W1 @ u + b1) + b2) + u (fully unrolled)
    for i in range(blocks):
        h = act(
            jnp.dot(w1_ref[i], u, preferred_element_type=jnp.float32,
                    precision=jax.lax.Precision.HIGHEST) + b1_ref[i]
        )
        h = act(
            jnp.dot(w2_ref[i], h, preferred_element_type=jnp.float32,
                    precision=jax.lax.Precision.HIGHEST) + b2_ref[i]
        )
        u = h + u

    # last_layer: VPU multiply + sublane reduction -> lane-dense (1, T) output
    out_ref[...] = (
        jnp.sum(last_w_ref[...] * u, axis=0, keepdims=True) + last_b_ref[...]
    )


def poisson_dnn_forward(x, y, params, *, blocks=BLOCKS, max_tile=MAX_TILE,
                        tanh_dtype=jnp.float32):
    """x, y: (N, 1) float32.  Returns u: (N, 1) float32 (bc='train' path).

    Pass tanh_dtype=jnp.bfloat16 on v6e/v7x to halve EUP work (small precision
    drift vs the f32 reference); keep f32 on v5e.
    """
    n = x.shape[0]
    n_pad = _round_up(max(n, 1), 128)

    # Choose step count so tiles are <= max_tile, padding is minimal, and we
    # get >= 2 parallel steps whenever possible (dual-TC sharding on v7x).
    min_steps = 2 if n_pad >= 256 else 1
    steps = max(_cdiv(n_pad, max_tile), min_steps)
    tile = _round_up(_cdiv(n_pad, steps), 128)
    n_pad = tile * steps

    # Glue: pack x and y into one lane-dense (2, N_pad) slab (zero-padded tail).
    xy = (jnp.zeros((2, n_pad), jnp.float32)
          .at[0, :n].set(x[:, 0])
          .at[1, :n].set(y[:, 0]))

    w = params["pre_wx"].shape[0]
    kernel = functools.partial(_poisson_kernel, blocks=blocks,
                               tanh_dtype=tanh_dtype)

    # xy/out tiled along the batch; weights full-array, VMEM-resident.
    xy_spec = pl.BlockSpec((2, tile), lambda i: (0, i))
    out_spec = pl.BlockSpec((1, tile), lambda i: (0, i))
    col_spec = pl.BlockSpec((w, 1), lambda i: (0, 0))
    mat_spec = pl.BlockSpec((blocks, w, w), lambda i: (0, 0, 0))
    bias_spec = pl.BlockSpec((blocks, w, 1), lambda i: (0, 0, 0))
    scalar_spec = pl.BlockSpec((1, 1), lambda i: (0, 0))

    cost = pl.CostEstimate(
        flops=2 * blocks * 2 * w * w * n_pad,        # residual-block matmuls
        transcendentals=(1 + 2 * blocks) * w * n_pad,  # 7 tanh passes over (W,T)
        bytes_accessed=4 * (2 + 1) * n_pad,            # x,y in + u out (f32)
    )

    out = pl.pallas_call(
        kernel,
        out_shape=jax.ShapeDtypeStruct((1, n_pad), jnp.float32),
        grid_spec=pltpu.PrefetchScalarGridSpec(
            num_scalar_prefetch=0,
            grid=(n_pad // tile,),
            in_specs=[
                xy_spec,       # packed [x; y]
                col_spec,      # pre_wx
                col_spec,      # pre_wy
                col_spec,      # pre_b
                mat_spec,      # w1
                bias_spec,     # b1
                mat_spec,      # w2
                bias_spec,     # b2
                col_spec,      # last_w (as (W,1) column)
                scalar_spec,   # last_b
            ],
            out_specs=out_spec,
        ),
        compiler_params=pltpu.CompilerParams(
            dimension_semantics=("parallel",),
            vmem_limit_bytes=32 * 1024 * 1024,
        ),
        cost_estimate=cost,
    )(
        xy,
        params["pre_wx"], params["pre_wy"], params["pre_b"],
        params["w1"], params["b1"],
        params["w2"], params["b2"],
        params["last_w"], params["last_b"],
    )
    # Glue: back to the PyTorch (N, 1) column-vector shape.
    return out[0, :n][:, None]


def init_params(key, width=WIDTH, blocks=BLOCKS):
    """Deterministic synthetic params, stored in kernel-friendly layout.

    All Linear weights are (out, in) (PyTorch-native); biases are (out, 1)
    columns; the pre-layer weight is split into its x / y columns; the last
    layer weight is stored as a (W, 1) column for the sublane reduction.
    """
    ks = jax.random.split(key, 8)
    s = 0.5
    pre_w = s * jax.random.normal(ks[0], (width, DIM), jnp.float32)   # (out=W, in=2)
    last_w = s * jax.random.normal(ks[6], (1, width), jnp.float32)    # (out=1, in=W)
    return {
        "pre_wx": pre_w[:, 0:1],                                       # (W, 1)
        "pre_wy": pre_w[:, 1:2],                                       # (W, 1)
        "pre_b": s * jax.random.normal(ks[1], (width, 1), jnp.float32),
        "w1": s * jax.random.normal(ks[2], (blocks, width, width), jnp.float32),
        "b1": s * jax.random.normal(ks[3], (blocks, width, 1), jnp.float32),
        "w2": s * jax.random.normal(ks[4], (blocks, width, width), jnp.float32),
        "b2": s * jax.random.normal(ks[5], (blocks, width, 1), jnp.float32),
        "last_w": last_w.T,                                            # (W, 1)
        "last_b": s * jax.random.normal(ks[7], (1, 1), jnp.float32),
    }


def poisson_dnn_forward_ref(x, y, params, *, blocks=BLOCKS):
    """Pure-JAX reference of the same forward pass (PyTorch Linear semantics)."""
    xy = jnp.concatenate([x, y], axis=1)                               # (N, 2)
    pre_w = jnp.concatenate([params["pre_wx"], params["pre_wy"]], axis=1)  # (W, 2)
    u = jnp.tanh(xy @ pre_w.T + params["pre_b"][:, 0])
    for i in range(blocks):
        h = jnp.tanh(u @ params["w1"][i].T + params["b1"][i][:, 0])
        h = jnp.tanh(h @ params["w2"][i].T + params["b2"][i][:, 0])
        u = h + u
    return u @ params["last_w"] + params["last_b"][0, 0]


# TODO(synk): autograd-based PDE residual losses (int_loss / partial_loss) and
# the bc='fix' branch (needs user callables d, g) are training utilities, not
# part of the forward pass, and are not implemented here.


if __name__ == "__main__":
    key = jax.random.PRNGKey(0)
    kx, ky, kp = jax.random.split(key, 3)
    params = init_params(kp)

    # Small batch (single tile, grid=1) and a mid-size batch that exercises
    # the multi-step (>= 2 parallel tiles) + padding path.
    for N in (8, 1000):
        x = jax.random.uniform(kx, (N, 1), jnp.float32, minval=-1.0, maxval=1.0)
        y = jax.random.uniform(ky, (N, 1), jnp.float32, minval=-1.0, maxval=1.0)

        out = poisson_dnn_forward(x, y, params)
        out = jax.block_until_ready(out)

        ref = poisson_dnn_forward_ref(x, y, params)
        assert out.shape == (N, 1)
        assert jnp.allclose(out, ref, atol=1e-4, rtol=1e-4), "mismatch vs reference"

    print("KERNEL_OK")
</pallas_src>

<mosaic_0001>
module attributes {stable_mosaic.version = 11 : i64} {
  func.func @_poisson_kernel(%arg0: i32, %arg1: memref<2x128xf32, #tpu.memory_space<vmem>>, %arg2: memref<20x1xf32, #tpu.memory_space<vmem>>, %arg3: memref<20x1xf32, #tpu.memory_space<vmem>>, %arg4: memref<20x1xf32, #tpu.memory_space<vmem>>, %arg5: memref<3x20x20xf32, #tpu.memory_space<vmem>>, %arg6: memref<3x20x1xf32, #tpu.memory_space<vmem>>, %arg7: memref<3x20x20xf32, #tpu.memory_space<vmem>>, %arg8: memref<3x20x1xf32, #tpu.memory_space<vmem>>, %arg9: memref<20x1xf32, #tpu.memory_space<vmem>>, %arg10: memref<1x1xf32, #tpu.memory_space<vmem>>, %arg11: memref<1x128xf32, #tpu.memory_space<vmem>>) attributes {dimension_semantics = [#tpu.dimension_semantics<parallel>], iteration_bounds = array<i64: 1>, scalar_prefetch = 0 : i64, scratch_operands = 0 : i64, tpu.core_type = #tpu.core_type<tc>, window_params = [{transform_indices = @transform_0, window_bounds = array<i64: 2, 128>}, {pipeline_mode = #tpu.pipeline_mode<synchronous>, transform_indices = @transform_1, window_bounds = array<i64: 20, 1>}, {pipeline_mode = #tpu.pipeline_mode<synchronous>, transform_indices = @transform_2, window_bounds = array<i64: 20, 1>}, {pipeline_mode = #tpu.pipeline_mode<synchronous>, transform_indices = @transform_3, window_bounds = array<i64: 20, 1>}, {pipeline_mode = #tpu.pipeline_mode<synchronous>, transform_indices = @transform_4, window_bounds = array<i64: 3, 20, 20>}, {pipeline_mode = #tpu.pipeline_mode<synchronous>, transform_indices = @transform_5, window_bounds = array<i64: 3, 20, 1>}, {pipeline_mode = #tpu.pipeline_mode<synchronous>, transform_indices = @transform_6, window_bounds = array<i64: 3, 20, 20>}, {pipeline_mode = #tpu.pipeline_mode<synchronous>, transform_indices = @transform_7, window_bounds = array<i64: 3, 20, 1>}, {pipeline_mode = #tpu.pipeline_mode<synchronous>, transform_indices = @transform_8, window_bounds = array<i64: 20, 1>}, {pipeline_mode = #tpu.pipeline_mode<synchronous>, transform_indices = @transform_9, window_bounds = array<i64: 1, 1>}, {transform_indices = @transform_10, window_bounds = array<i64: 1, 128>}]} {
    %c0 = arith.constant 0 : index
    %c0_0 = arith.constant 0 : index
    %0 = vector.load %arg1[%c0, %c0_0] : memref<2x128xf32, #tpu.memory_space<vmem>>, vector<2x128xf32>
    %1 = vector.extract_strided_slice %0 {offsets = [0, 0], sizes = [1, 128], strides = [1, 1]} : vector<2x128xf32> to vector<1x128xf32>
    %2 = vector.extract_strided_slice %0 {offsets = [1, 0], sizes = [1, 128], strides = [1, 1]} : vector<2x128xf32> to vector<1x128xf32>
    %c0_1 = arith.constant 0 : index
    %c0_2 = arith.constant 0 : index
    %3 = vector.load %arg2[%c0_1, %c0_2] : memref<20x1xf32, #tpu.memory_space<vmem>>, vector<20x1xf32>
    %4 = vector.broadcast %3 : vector<20x1xf32> to vector<20x128xf32>
    %5 = vector.broadcast %1 : vector<1x128xf32> to vector<20x128xf32>
    %6 = arith.mulf %4, %5 : vector<20x128xf32>
    %c0_3 = arith.constant 0 : index
    %c0_4 = arith.constant 0 : index
    %7 = vector.load %arg3[%c0_3, %c0_4] : memref<20x1xf32, #tpu.memory_space<vmem>>, vector<20x1xf32>
    %8 = vector.broadcast %7 : vector<20x1xf32> to vector<20x128xf32>
    %9 = vector.broadcast %2 : vector<1x128xf32> to vector<20x128xf32>
    %10 = arith.mulf %8, %9 : vector<20x128xf32>
    %11 = arith.addf %6, %10 : vector<20x128xf32>
    %c0_5 = arith.constant 0 : index
    %c0_6 = arith.constant 0 : index
    %12 = vector.load %arg4[%c0_5, %c0_6] : memref<20x1xf32, #tpu.memory_space<vmem>>, vector<20x1xf32>
    %13 = vector.broadcast %12 : vector<20x1xf32> to vector<20x128xf32>
    %14 = arith.addf %11, %13 : vector<20x128xf32>
    %15 = math.tanh %14 : vector<20x128xf32>
    %c0_7 = arith.constant 0 : index
    %c0_8 = arith.constant 0 : index
    %c0_9 = arith.constant 0 : index
    %16 = vector.load %arg5[%c0_7, %c0_8, %c0_9] : memref<3x20x20xf32, #tpu.memory_space<vmem>>, vector<1x20x20xf32>
    %17 = vector.shape_cast %16 : vector<1x20x20xf32> to vector<20x20xf32>
    %cst = arith.constant dense<0.000000e+00> : vector<20x128xf32>
    %18 = tpu.matmul %17, %15, %cst {dimension_numbers = #tpu.dot_dimension_numbers<[1], [0], [0], [1], [0, 0, 1, 1], [], []>, precision = #tpu.contract_precision<fp32>} : vector<20x20xf32>, vector<20x128xf32>, vector<20x128xf32> -> vector<20x128xf32>
    %c0_10 = arith.constant 0 : index
    %c0_11 = arith.constant 0 : index
    %c0_12 = arith.constant 0 : index
    %19 = vector.load %arg6[%c0_10, %c0_11, %c0_12] : memref<3x20x1xf32, #tpu.memory_space<vmem>>, vector<1x20x1xf32>
    %20 = vector.shape_cast %19 : vector<1x20x1xf32> to vector<20x1xf32>
    %21 = vector.broadcast %20 : vector<20x1xf32> to vector<20x128xf32>
    %22 = arith.addf %18, %21 : vector<20x128xf32>
    %23 = math.tanh %22 : vector<20x128xf32>
    %c0_13 = arith.constant 0 : index
    %c0_14 = arith.constant 0 : index
    %c0_15 = arith.constant 0 : index
    %24 = vector.load %arg7[%c0_13, %c0_14, %c0_15] : memref<3x20x20xf32, #tpu.memory_space<vmem>>, vector<1x20x20xf32>
    %25 = vector.shape_cast %24 : vector<1x20x20xf32> to vector<20x20xf32>
    %cst_16 = arith.constant dense<0.000000e+00> : vector<20x128xf32>
    %26 = tpu.matmul %25, %23, %cst_16 {dimension_numbers = #tpu.dot_dimension_numbers<[1], [0], [0], [1], [0, 0, 1, 1], [], []>, precision = #tpu.contract_precision<fp32>} : vector<20x20xf32>, vector<20x128xf32>, vector<20x128xf32> -> vector<20x128xf32>
    %c0_17 = arith.constant 0 : index
    %c0_18 = arith.constant 0 : index
    %c0_19 = arith.constant 0 : index
    %27 = vector.load %arg8[%c0_17, %c0_18, %c0_19] : memref<3x20x1xf32, #tpu.memory_space<vmem>>, vector<1x20x1xf32>
    %28 = vector.shape_cast %27 : vector<1x20x1xf32> to vector<20x1xf32>
    %29 = vector.broadcast %28 : vector<20x1xf32> to vector<20x128xf32>
    %30 = arith.addf %26, %29 : vector<20x128xf32>
    %31 = math.tanh %30 : vector<20x128xf32>
    %32 = arith.addf %31, %15 : vector<20x128xf32>
    %c1 = arith.constant 1 : index
    %c0_20 = arith.constant 0 : index
    %c0_21 = arith.constant 0 : index
    %33 = vector.load %arg5[%c1, %c0_20, %c0_21] : memref<3x20x20xf32, #tpu.memory_space<vmem>>, vector<1x20x20xf32>
    %34 = vector.shape_cast %33 : vector<1x20x20xf32> to vector<20x20xf32>
    %cst_22 = arith.constant dense<0.000000e+00> : vector<20x128xf32>
    %35 = tpu.matmul %34, %32, %cst_22 {dimension_numbers = #tpu.dot_dimension_numbers<[1], [0], [0], [1], [0, 0, 1, 1], [], []>, precision = #tpu.contract_precision<fp32>} : vector<20x20xf32>, vector<20x128xf32>, vector<20x128xf32> -> vector<20x128xf32>
    %c1_23 = arith.constant 1 : index
    %c0_24 = arith.constant 0 : index
    %c0_25 = arith.constant 0 : index
    %36 = vector.load %arg6[%c1_23, %c0_24, %c0_25] : memref<3x20x1xf32, #tpu.memory_space<vmem>>, vector<1x20x1xf32>
    %37 = vector.shape_cast %36 : vector<1x20x1xf32> to vector<20x1xf32>
    %38 = vector.broadcast %37 : vector<20x1xf32> to vector<20x128xf32>
    %39 = arith.addf %35, %38 : vector<20x128xf32>
    %40 = math.tanh %39 : vector<20x128xf32>
    %c1_26 = arith.constant 1 : index
    %c0_27 = arith.constant 0 : index
    %c0_28 = arith.constant 0 : index
    %41 = vector.load %arg7[%c1_26, %c0_27, %c0_28] : memref<3x20x20xf32, #tpu.memory_space<vmem>>, vector<1x20x20xf32>
    %42 = vector.shape_cast %41 : vector<1x20x20xf32> to vector<20x20xf32>
    %cst_29 = arith.constant dense<0.000000e+00> : vector<20x128xf32>
    %43 = tpu.matmul %42, %40, %cst_29 {dimension_numbers = #tpu.dot_dimension_numbers<[1], [0], [0], [1], [0, 0, 1, 1], [], []>, precision = #tpu.contract_precision<fp32>} : vector<20x20xf32>, vector<20x128xf32>, vector<20x128xf32> -> vector<20x128xf32>
    %c1_30 = arith.constant 1 : index
    %c0_31 = arith.constant 0 : index
    %c0_32 = arith.constant 0 : index
    %44 = vector.load %arg8[%c1_30, %c0_31, %c0_32] : memref<3x20x1xf32, #tpu.memory_space<vmem>>, vector<1x20x1xf32>
    %45 = vector.shape_cast %44 : vector<1x20x1xf32> to vector<20x1xf32>
    %46 = vector.broadcast %45 : vector<20x1xf32> to vector<20x128xf32>
    %47 = arith.addf %43, %46 : vector<20x128xf32>
    %48 = math.tanh %47 : vector<20x128xf32>
    %49 = arith.addf %48, %32 : vector<20x128xf32>
    %c2 = arith.constant 2 : index
    %c0_33 = arith.constant 0 : index
    %c0_34 = arith.constant 0 : index
    %50 = vector.load %arg5[%c2, %c0_33, %c0_34] : memref<3x20x20xf32, #tpu.memory_space<vmem>>, vector<1x20x20xf32>
    %51 = vector.shape_cast %50 : vector<1x20x20xf32> to vector<20x20xf32>
    %cst_35 = arith.constant dense<0.000000e+00> : vector<20x128xf32>
    %52 = tpu.matmul %51, %49, %cst_35 {dimension_numbers = #tpu.dot_dimension_numbers<[1], [0], [0], [1], [0, 0, 1, 1], [], []>, precision = #tpu.contract_precision<fp32>} : vector<20x20xf32>, vector<20x128xf32>, vector<20x128xf32> -> vector<20x128xf32>
    %c2_36 = arith.constant 2 : index
    %c0_37 = arith.constant 0 : index
    %c0_38 = arith.constant 0 : index
    %53 = vector.load %arg6[%c2_36, %c0_37, %c0_38] : memref<3x20x1xf32, #tpu.memory_space<vmem>>, vector<1x20x1xf32>
    %54 = vector.shape_cast %53 : vector<1x20x1xf32> to vector<20x1xf32>
    %55 = vector.broadcast %54 : vector<20x1xf32> to vector<20x128xf32>
    %56 = arith.addf %52, %55 : vector<20x128xf32>
    %57 = math.tanh %56 : vector<20x128xf32>
    %c2_39 = arith.constant 2 : index
    %c0_40 = arith.constant 0 : index
    %c0_41 = arith.constant 0 : index
    %58 = vector.load %arg7[%c2_39, %c0_40, %c0_41] : memref<3x20x20xf32, #tpu.memory_space<vmem>>, vector<1x20x20xf32>
    %59 = vector.shape_cast %58 : vector<1x20x20xf32> to vector<20x20xf32>
    %cst_42 = arith.constant dense<0.000000e+00> : vector<20x128xf32>
    %60 = tpu.matmul %59, %57, %cst_42 {dimension_numbers = #tpu.dot_dimension_numbers<[1], [0], [0], [1], [0, 0, 1, 1], [], []>, precision = #tpu.contract_precision<fp32>} : vector<20x20xf32>, vector<20x128xf32>, vector<20x128xf32> -> vector<20x128xf32>
    %c2_43 = arith.constant 2 : index
    %c0_44 = arith.constant 0 : index
    %c0_45 = arith.constant 0 : index
    %61 = vector.load %arg8[%c2_43, %c0_44, %c0_45] : memref<3x20x1xf32, #tpu.memory_space<vmem>>, vector<1x20x1xf32>
    %62 = vector.shape_cast %61 : vector<1x20x1xf32> to vector<20x1xf32>
    %63 = vector.broadcast %62 : vector<20x1xf32> to vector<20x128xf32>
    %64 = arith.addf %60, %63 : vector<20x128xf32>
    %65 = math.tanh %64 : vector<20x128xf32>
    %66 = arith.addf %65, %49 : vector<20x128xf32>
    %c0_46 = arith.constant 0 : index
    %c0_47 = arith.constant 0 : index
    %67 = vector.load %arg9[%c0_46, %c0_47] : memref<20x1xf32, #tpu.memory_space<vmem>>, vector<20x1xf32>
    %68 = vector.broadcast %67 : vector<20x1xf32> to vector<20x128xf32>
    %69 = arith.mulf %68, %66 : vector<20x128xf32>
    %cst_48 = arith.constant dense<0.000000e+00> : vector<128xf32>
    %70 = vector.multi_reduction <add>, %69, %cst_48 [0] : vector<20x128xf32> to vector<128xf32>
    %71 = vector.shape_cast %70 : vector<128xf32> to vector<1x128xf32>
    %c0_49 = arith.constant 0 : index
    %c0_50 = arith.constant 0 : index
    %72 = vector.load %arg10[%c0_49, %c0_50] : memref<1x1xf32, #tpu.memory_space<vmem>>, vector<1x1xf32>
    %73 = vector.broadcast %72 : vector<1x1xf32> to vector<1x128xf32>
    %74 = arith.addf %71, %73 : vector<1x128xf32>
    %c0_51 = arith.constant 0 : index
    %c0_52 = arith.constant 0 : index
    %75 = vector.load %arg11[%c0_51, %c0_52] : memref<1x128xf32, #tpu.memory_space<vmem>>, vector<1x128xf32>
    tpu.vector_store %arg11[%c0_51, %c0_52], %74 {strides = array<i32>} : memref<1x128xf32, #tpu.memory_space<vmem>>, vector<1x128xf32>,
    return
  }
  func.func @transform_0(%arg0: i32) -> (i32, i32) {
    %c0_i32 = arith.constant 0 : i32
    %c0_i32_0 = arith.constant 0 : i32
    return %c0_i32, %arg0 : i32, i32
  }
  func.func @transform_1(%arg0: i32) -> (i32, i32) {
    %c0_i32 = arith.constant 0 : i32
    %c0_i32_0 = arith.constant 0 : i32
    %c0_i32_1 = arith.constant 0 : i32
    return %c0_i32, %c0_i32_0 : i32, i32
  }
  func.func @transform_2(%arg0: i32) -> (i32, i32) {
    %c0_i32 = arith.constant 0 : i32
    %c0_i32_0 = arith.constant 0 : i32
    %c0_i32_1 = arith.constant 0 : i32
    return %c0_i32, %c0_i32_0 : i32, i32
  }
  func.func @transform_3(%arg0: i32) -> (i32, i32) {
    %c0_i32 = arith.constant 0 : i32
    %c0_i32_0 = arith.constant 0 : i32
    %c0_i32_1 = arith.constant 0 : i32
    return %c0_i32, %c0_i32_0 : i32, i32
  }
  func.func @transform_4(%arg0: i32) -> (i32, i32, i32) {
    %c0_i32 = arith.constant 0 : i32
    %c0_i32_0 = arith.constant 0 : i32
    %c0_i32_1 = arith.constant 0 : i32
    %c0_i32_2 = arith.constant 0 : i32
    return %c0_i32, %c0_i32_0, %c0_i32_1 : i32, i32, i32
  }
  func.func @transform_5(%arg0: i32) -> (i32, i32, i32) {
    %c0_i32 = arith.constant 0 : i32
    %c0_i32_0 = arith.constant 0 : i32
    %c0_i32_1 = arith.constant 0 : i32
    %c0_i32_2 = arith.constant 0 : i32
    return %c0_i32, %c0_i32_0, %c0_i32_1 : i32, i32, i32
  }
  func.func @transform_6(%arg0: i32) -> (i32, i32, i32) {
    %c0_i32 = arith.constant 0 : i32
    %c0_i32_0 = arith.constant 0 : i32
    %c0_i32_1 = arith.constant 0 : i32
    %c0_i32_2 = arith.constant 0 : i32
    return %c0_i32, %c0_i32_0, %c0_i32_1 : i32, i32, i32
  }
  func.func @transform_7(%arg0: i32) -> (i32, i32, i32) {
    %c0_i32 = arith.constant 0 : i32
    %c0_i32_0 = arith.constant 0 : i32
    %c0_i32_1 = arith.constant 0 : i32
    %c0_i32_2 = arith.constant 0 : i32
    return %c0_i32, %c0_i32_0, %c0_i32_1 : i32, i32, i32
  }
  func.func @transform_8(%arg0: i32) -> (i32, i32) {
    %c0_i32 = arith.constant 0 : i32
    %c0_i32_0 = arith.constant 0 : i32
    %c0_i32_1 = arith.constant 0 : i32
    return %c0_i32, %c0_i32_0 : i32, i32
  }
  func.func @transform_9(%arg0: i32) -> (i32, i32) {
    %c0_i32 = arith.constant 0 : i32
    %c0_i32_0 = arith.constant 0 : i32
    %c0_i32_1 = arith.constant 0 : i32
    return %c0_i32, %c0_i32_0 : i32, i32
  }
  func.func @transform_10(%arg0: i32) -> (i32, i32) {
    %c0_i32 = arith.constant 0 : i32
    %c0_i32_0 = arith.constant 0 : i32
    return %c0_i32, %arg0 : i32, i32
  }
}

</mosaic_0001>

<llo_original>
// kernel: tpu_custom_call.1
$region0: #{tpu_custom_call.1}
  #allocation0 [shape = 'u32[]', space=smem, size = 0x4, offset = 0x4, fixed_abs, tag = 'smem constant byte address 0x4 - core index']
  #allocation1 [shape = 'u32[144,128]{1,0:T(1,128)}', space=vmem, size = 0x12000, scoped, tag = 'internal scratch']
  #allocation2 [shape = 'f32[1,1]{1,0:T(1,128)S(1)}', space=vmem, size = 0x200, scoped, tag = 'scoped memory for tpu_custom_call.1']
  %s0 = inlined_call_operand.vmem [shape: f32[2,128], index: 0, kind: input, shape index: {}]
  %s1 = inlined_call_operand.vmem [shape: f32[20,1], index: 1, kind: input, shape index: {}]
  %s2 = inlined_call_operand.vmem [shape: f32[20,1], index: 2, kind: input, shape index: {}]
  %s3 = inlined_call_operand.vmem [shape: f32[20,1], index: 3, kind: input, shape index: {}]
  %s4 = inlined_call_operand.vmem [shape: f32[3,20,20], index: 4, kind: input, shape index: {}]
  %s5 = inlined_call_operand.vmem [shape: f32[3,20,1], index: 5, kind: input, shape index: {}]
  %s6 = inlined_call_operand.vmem [shape: f32[3,20,20], index: 6, kind: input, shape index: {}]
  %s7 = inlined_call_operand.vmem [shape: f32[3,20,1], index: 7, kind: input, shape index: {}]
  %s8 = inlined_call_operand.vmem [shape: f32[20,1], index: 8, kind: input, shape index: {}]
  %s9 = inlined_call_operand.<no memory space> [shape: f32[1,1], index: 9, kind: input, shape index: {}]
  %s10 = inlined_call_operand.hbm [shape: f32[1,128], index: 10, kind: output, shape index: {}]
  %s11 = sld [smem:[#allocation0]]
  $region50: #{tpu_custom_call.1} parent=0
    _
  %s13 = ssub.s32 1, %s11
  %s14 = scalar_select 0, %s13, %s11
  %v15 = vstv %s9
  %16 = vst [vmem:[#allocation2] sm:$0x1] %v15
  $region1: #{tpu_custom_call.1} parent=0
    #allocation3 [shape = 'u8[512]{0}', space=vmem, size = 0x400, scoped, tag = 'output window, operand 0, single buffered']
    #allocation4 [shape = 's32[1]{0}', space=sflag, size = 0x4, scoped, tag = 'scoped memory for tpu_custom_call.1']
    %17 = vsyncpa [#allocation4], 0
    // Predicated region
    $region2: #{tpu_custom_call.1} parent=1 // pred_check
      _
    $region3: #{tpu_custom_call.1} parent=1 // pred_check_branch
      %19 = sbr.rel (0) target = $region5
    $region4: #{tpu_custom_call.1} parent=1 // pred_region
      _
    $region5: #{tpu_custom_call.1} parent=1 // pred_fallthru
      _
    // Predicated region
    $region6: #{tpu_custom_call.1} parent=1 // pred_check
      _
    $region7: #{tpu_custom_call.1} parent=1 // pred_check_branch
      %21 = sbr.rel (0) target = $region9
    $region8: #{tpu_custom_call.1} parent=1 // pred_region
      _
    $region9: #{tpu_custom_call.1} parent=1 // pred_fallthru
      _
    // Predicated region
    $region10: #{tpu_custom_call.1} parent=1 // pred_check
      _
    $region11: #{tpu_custom_call.1} parent=1 // pred_check_branch
      %23 = sbr.rel (0) target = $region13
    $region12: #{tpu_custom_call.1} parent=1 // pred_region
      _
    $region13: #{tpu_custom_call.1} parent=1 // pred_fallthru
      _
    // Predicated region
    $region14: #{tpu_custom_call.1} parent=1 // pred_check
      _
    $region15: #{tpu_custom_call.1} parent=1 // pred_check_branch
      %25 = sbr.rel (0) target = $region17
    $region16: #{tpu_custom_call.1} parent=1 // pred_region
      _
    $region17: #{tpu_custom_call.1} parent=1 // pred_fallthru
      _
    // Predicated region
    $region18: #{tpu_custom_call.1} parent=1 // pred_check
      _
    $region19: #{tpu_custom_call.1} parent=1 // pred_check_branch
      %27 = sbr.rel (0) target = $region21
    $region20: #{tpu_custom_call.1} parent=1 // pred_region
      _
    $region21: #{tpu_custom_call.1} parent=1 // pred_fallthru
      _
    // Predicated region
    $region22: #{tpu_custom_call.1} parent=1 // pred_check
      _
    $region23: #{tpu_custom_call.1} parent=1 // pred_check_branch
      %29 = sbr.rel (0) target = $region25
    $region24: #{tpu_custom_call.1} parent=1 // pred_region
      _
    $region25: #{tpu_custom_call.1} parent=1 // pred_fallthru
      _
    // Predicated region
    $region26: #{tpu_custom_call.1} parent=1 // pred_check
      _
    $region27: #{tpu_custom_call.1} parent=1 // pred_check_branch
      %31 = sbr.rel (0) target = $region29
    $region28: #{tpu_custom_call.1} parent=1 // pred_region
      _
    $region29: #{tpu_custom_call.1} parent=1 // pred_fallthru
      _
    // Predicated region
    $region30: #{tpu_custom_call.1} parent=1 // pred_check
      _
    $region31: #{tpu_custom_call.1} parent=1 // pred_check_branch
      %33 = sbr.rel (0) target = $region33
    $region32: #{tpu_custom_call.1} parent=1 // pred_region
      _
    $region33: #{tpu_custom_call.1} parent=1 // pred_fallthru
      _
    // Predicated region
    $region34: #{tpu_custom_call.1} parent=1 // pred_check
      _
    $region35: #{tpu_custom_call.1} parent=1 // pred_check_branch
      %35 = sbr.rel (0) target = $region37
    $region36: #{tpu_custom_call.1} parent=1 // pred_region
      _
    $region37: #{tpu_custom_call.1} parent=1 // pred_fallthru
      _
    // Predicated region
    $region38: #{tpu_custom_call.1} parent=1 // pred_check
      _
    $region39: #{tpu_custom_call.1} parent=1 // pred_check_branch
      %37 = sbr.rel (0) target = $region41
    $region40: #{tpu_custom_call.1} parent=1 // pred_region
      _
    $region41: #{tpu_custom_call.1} parent=1 // pred_fallthru
      _
    %v38 = vld [vmem:[%s0] sm:$0x3]
    %v39 = vld [vmem:[%s1] sm:$0xff]
    %v40 = vld [vmem:[%s1 + $0x8] sm:$0xff]
    %v41 = vld [vmem:[%s1 + $0x10] sm:$0xf]
    %43 = vset.pattern.permute.xlu0 0
    %44 = vperm.xlu0 %43, %v39
    %v45 = vpop.permute.xlu0 %44
    %48 = vset.pattern.permute.xlu0 0
    %49 = vperm.xlu0 %48, %v40
    %v50 = vpop.permute.xlu0 %49
    %53 = vset.pattern.permute.xlu0 0
    %54 = vperm.xlu0 %53, %v41
    %v55 = vpop.permute.xlu0 %54
    %v57 = vlaneseq
    %v58 = vshrl.u32 %v57, 7
    %v59 = vsub.s32 0, %v58
    %v60 = vrot.slane %v38, %v59
    %v61 = vmul.f32 %v45, %v60
    %v62 = vmul.f32 %v50, %v60
    %v63 = vmul.f32 %v55, %v60
    %v64 = vld [vmem:[%s2] sm:$0xff]
    %v65 = vld [vmem:[%s2 + $0x8] sm:$0xff]
    %v66 = vld [vmem:[%s2 + $0x10] sm:$0xf]
    %68 = vset.pattern.permute.xlu0 0
    %69 = vperm.xlu0 %68, %v64
    %v70 = vpop.permute.xlu0 %69
    %73 = vset.pattern.permute.xlu0 0
    %74 = vperm.xlu0 %73, %v65
    %v75 = vpop.permute.xlu0 %74
    %78 = vset.pattern.permute.xlu0 0
    %79 = vperm.xlu0 %78, %v66
    %v80 = vpop.permute.xlu0 %79
    %v82 = vlaneseq
    %v83 = vshrl.u32 %v82, 7
    %v84 = vsub.s32 1, %v83
    %v85 = vrot.slane %v38, %v84
    %v86 = vmul.f32 %v70, %v85
    %v87 = vmul.f32 %v75, %v85
    %v88 = vmul.f32 %v80, %v85
    %v89 = vadd.f32 %v61, %v86
    %v90 = vadd.f32 %v62, %v87
    %v91 = vadd.f32 %v63, %v88
    %v92 = vld [vmem:[%s3] sm:$0xff]
    %v93 = vld [vmem:[%s3 + $0x8] sm:$0xff]
    %v94 = vld [vmem:[%s3 + $0x10] sm:$0xf]
    %96 = vset.pattern.permute.xlu0 0
    %97 = vperm.xlu0 %96, %v92
    %v98 = vpop.permute.xlu0 %97
    %101 = vset.pattern.permute.xlu0 0
    %102 = vperm.xlu0 %101, %v93
    %v103 = vpop.permute.xlu0 %102
    %106 = vset.pattern.permute.xlu0 0
    %107 = vperm.xlu0 %106, %v94
    %v108 = vpop.permute.xlu0 %107
    %v110 = vadd.f32 %v89, %v98
    %v111 = vadd.f32 %v90, %v103
    %v112 = vadd.f32 %v91, %v108
    %v113 = vtanh.pop %v110
    %v114 = vtanh.pop %v111
    %v115 = vtanh.pop %v112
    %v116 = vld [vmem:[%s4] sm:$0xff]
    %v117 = vld [vmem:[%s4 + $0x8] sm:$0xff]
    %v118 = vld [vmem:[%s4 + $0x10] sm:$0xf]
    %v119 = vld [vmem:[%s5] sm:$0xff]
    %v120 = vld [vmem:[%s5 + $0x8] sm:$0xff]
    %v121 = vld [vmem:[%s5 + $0x10] sm:$0xf]
    %123 = vset.pattern.permute.xlu0 0
    %124 = vperm.xlu0 %123, %v119
    %v125 = vpop.permute.xlu0 %124
    %128 = vset.pattern.permute.xlu0 0
    %129 = vperm.xlu0 %128, %v120
    %v130 = vpop.permute.xlu0 %129
    %133 = vset.pattern.permute.xlu0 0
    %134 = vperm.xlu0 %133, %v121
    %v135 = vpop.permute.xlu0 %134
    %vm137 = vcmask 162816
    %v139 = vsel %vm137, %v116, 0
    %v142 = vsel %vm137, %v117, 0
    %v145 = vsel %vm137, %v118, 0
    %vm147 = vcmask 1043456
    %v149 = vsel %vm147, %v115, 0
    %151 = vmatprep.subr.mxu0 0.0
    %v152 = vand.u32 %v113, 4294901760
    %153 = vmatpush1.msra.mxu0 %v152
    %154 = vmatprep.subr.mxu0 0.0
    %v155 = vand.u32 %v114, 4294901760
    %156 = vmatpush1.msra.mxu0 %v155
    %157 = vmatprep.subr.mxu0 0.0
    %v158 = vand.u32 %v149, 4294901760
    %159 = vmatpush1.msra.mxu0 %v158
    %160 = vmatprep.subr.mxu0 0.0
    %161 = vmatpush1.msra.mxu0 0.0
    %162 = vmatprep.subr.mxu0 0.0
    %163 = vmatpush1.msra.mxu0 0.0
    %164 = vmatprep.subr.mxu0 0.0
    %165 = vmatpush1.msra.mxu0 0.0
    %166 = vmatprep.subr.mxu0 0.0
    %167 = vmatpush1.msra.mxu0 0.0
    %168 = vmatprep.subr.mxu0 0.0
    %169 = vmatpush1.msra.mxu0 0.0
    %170 = vmatprep.subr.mxu0 0.0
    %171 = vmatpush1.msra.mxu0 0.0
    %172 = vmatprep.subr.mxu0 0.0
    %173 = vmatpush1.msra.mxu0 0.0
    %174 = vmatprep.subr.mxu0 0.0
    %175 = vmatpush1.msra.mxu0 0.0
    %176 = vmatprep.subr.mxu0 0.0
    %177 = vmatpush1.msra.mxu0 0.0
    %178 = vmatprep.subr.mxu0 0.0
    %179 = vmatpush1.msra.mxu0 0.0
    %180 = vmatprep.subr.mxu0 0.0
    %181 = vmatpush1.msra.mxu0 0.0
    %182 = vmatprep.subr.mxu0 0.0
    %183 = vmatpush1.msra.mxu0 0.0
    %184 = vmatprep.subr.mxu0 0.0
    %185 = vmatpush1.msra.mxu0 0.0
    %186 = vmatprep.subr.mxu0 0.0
    %187 = vmatpush1.msra.mxu0 0.0
    %188 = vmatprep.subr.mxu0 0.0
    %189 = vmatpush1.msra.mxu0 0.0
    %190 = vmatprep.subr.mxu0 0.0
    %191 = vmatpush1.msra.mxu0 0.0
    %192 = vmatprep.subr.mxu0 0.0
    %193 = vmatpush1.msra.mxu0 0.0
    %194 = vmatprep.subr.mxu0 0.0
    %195 = vmatpush1.msra.mxu0 0.0
    %196 = vmatprep.subr.mxu0 0.0
    %197 = vmatpush1.msra.mxu0 0.0
    %198 = vmatprep.subr.mxu0 0.0
    %199 = vmatpush1.msra.mxu0 0.0
    %200 = vmatprep.subr.mxu0 0.0
    %201 = vmatpush1.msra.mxu0 0.0
    %202 = vmatprep.subr.mxu0 0.0
    %203 = vmatpush1.msra.mxu0 0.0
    %204 = vmatprep.subr.mxu0 0.0
    %205 = vmatpush1.msra.mxu0 0.0
    %206 = vmatprep.subr.mxu0 0.0
    %207 = vmatpush1.msra.mxu0 0.0
    %208 = vmatprep.subr.mxu0 0.0
    %209 = vmatpush1.msra.mxu0 0.0
    %210 = vmatprep.subr.mxu0 0.0
    %211 = vmatpush1.msra.mxu0 0.0
    %212 = vmatprep.subr.mxu0 0.0
    %213 = vmatpush1.msra.mxu0 0.0
    %214 = vmatprep.subr.mxu0 0.0
    %215 = vmatpush1.msra.mxu0 0.0
    %216 = vmatprep.subr.mxu0 0.0
    %217 = vmatpush1.msra.mxu0 0.0
    %218 = vmatprep.mubr.f32.mxu0 0.0
    %v219 = vand.u32 %v139, 4294901760
    %v220 = vsub.f32 %v139, %v219
    %v221 = vand.u32 %v220, 4294901760
    %v222 = vsub.f32 %v220, %v221
    %v223 = vand.u32 %v222, 4294901760
    %224 = vmatmul.mubr.f32.gmra.mrb[0].mxu0 %v223
    %v225 = vpop.f32.mrb[0].mxu0
    %v226 = vadd.f32 %v125, %v225
    %v227 = vpop.f32.mrb[0].mxu0
    %228 = vmatprep.mubr.f32.mxu0 0.0
    %v229 = vand.u32 %v142, 4294901760
    %v230 = vsub.f32 %v142, %v229
    %v231 = vand.u32 %v230, 4294901760
    %v232 = vsub.f32 %v230, %v231
    %v233 = vand.u32 %v232, 4294901760
    %234 = vmatmul.mubr.f32.gmra.mrb[0].mxu0 %v233
    %v235 = vpop.f32.mrb[0].mxu0
    %v236 = vadd.f32 %v130, %v235
    %v237 = vpop.f32.mrb[0].mxu0
    %238 = vmatprep.mubr.f32.mxu0 0.0
    %v239 = vand.u32 %v145, 4294901760
    %v240 = vsub.f32 %v145, %v239
    %v241 = vand.u32 %v240, 4294901760
    %v242 = vsub.f32 %v240, %v241
    %v243 = vand.u32 %v242, 4294901760
    %244 = vmatmul.mubr.f32.gmra.mrb[0].mxu0 %v243
    %v245 = vpop.f32.mrb[0].mxu0
    %v246 = vadd.f32 %v135, %v245
    %v247 = vpop.f32.mrb[0].mxu0
    %248 = vdwg.mxu0
    %249 = vmatprep.subr.mxu0 0.0
    %v250 = vand.u32 %v113, 4294901760
    %v251 = vsub.f32 %v113, %v250
    %v252 = vand.u32 %v251, 4294901760
    %v253 = vsub.f32 %v251, %v252
    %v254 = vand.u32 %v253, 4294901760
    %255 = vmatpush1.msra.mxu0 %v254
    %256 = vmatprep.subr.mxu0 0.0
    %v257 = vand.u32 %v114, 4294901760
    %v258 = vsub.f32 %v114, %v257
    %v259 = vand.u32 %v258, 4294901760
    %v260 = vsub.f32 %v258, %v259
    %v261 = vand.u32 %v260, 4294901760
    %262 = vmatpush1.msra.mxu0 %v261
    %263 = vmatprep.subr.mxu0 0.0
    %v264 = vand.u32 %v149, 4294901760
    %v265 = vsub.f32 %v149, %v264
    %v266 = vand.u32 %v265, 4294901760
    %v267 = vsub.f32 %v265, %v266
    %v268 = vand.u32 %v267, 4294901760
    %269 = vmatpush1.msra.mxu0 %v268
    %270 = vmatprep.subr.mxu0 0.0
    %271 = vmatpush1.msra.mxu0 0.0
    %272 = vmatprep.subr.mxu0 0.0
    %273 = vmatpush1.msra.mxu0 0.0
    %274 = vmatprep.subr.mxu0 0.0
    %275 = vmatpush1.msra.mxu0 0.0
    %276 = vmatprep.subr.mxu0 0.0
    %277 = vmatpush1.msra.mxu0 0.0
    %278 = vmatprep.subr.mxu0 0.0
    %279 = vmatpush1.msra.mxu0 0.0
    %280 = vmatprep.subr.mxu0 0.0
    %281 = vmatpush1.msra.mxu0 0.0
    %282 = vmatprep.subr.mxu0 0.0
    %283 = vmatpush1.msra.mxu0 0.0
    %284 = vmatprep.subr.mxu0 0.0
    %285 = vmatpush1.msra.mxu0 0.0
    %286 = vmatprep.subr.mxu0 0.0
    %287 = vmatpush1.msra.mxu0 0.0
    %288 = vmatprep.subr.mxu0 0.0
    %289 = vmatpush1.msra.mxu0 0.0
    %290 = vmatprep.subr.mxu0 0.0
    %291 = vmatpush1.msra.mxu0 0.0
    %292 = vmatprep.subr.mxu0 0.0
    %293 = vmatpush1.msra.mxu0 0.0
    %294 = vmatprep.subr.mxu0 0.0
    %295 = vmatpush1.msra.mxu0 0.0
    %296 = vmatprep.subr.mxu0 0.0
    %297 = vmatpush1.msra.mxu0 0.0
    %298 = vmatprep.subr.mxu0 0.0
    %299 = vmatpush1.msra.mxu0 0.0
    %300 = vmatprep.subr.mxu0 0.0
    %301 = vmatpush1.msra.mxu0 0.0
    %302 = vmatprep.subr.mxu0 0.0
    %303 = vmatpush1.msra.mxu0 0.0
    %304 = vmatprep.subr.mxu0 0.0
    %305 = vmatpush1.msra.mxu0 0.0
    %306 = vmatprep.subr.mxu0 0.0
    %307 = vmatpush1.msra.mxu0 0.0
    %308 = vmatprep.subr.mxu0 0.0
    %309 = vmatpush1.msra.mxu0 0.0
    %310 = vmatprep.subr.mxu0 0.0
    %311 = vmatpush1.msra.mxu0 0.0
    %312 = vmatprep.subr.mxu0 0.0
    %313 = vmatpush1.msra.mxu0 0.0
    %314 = vmatprep.subr.mxu0 0.0
    %315 = vmatpush1.msra.mxu0 0.0
    %316 = vmatprep.subr.mxu0 0.0
    %317 = vmatpush1.msra.mxu0 0.0
    %318 = vmatprep.subr.mxu0 0.0
    %319 = vmatpush1.msra.mxu0 0.0
    %320 = vmatprep.subr.mxu0 0.0
    %321 = vmatpush1.msra.mxu0 0.0
    %322 = vmatprep.subr.mxu0 0.0
    %323 = vmatpush1.msra.mxu0 0.0
    %324 = vmatprep.subr.mxu0 0.0
    %325 = vmatpush1.msra.mxu0 0.0
    %326 = vmatprep.subr.mxu0 0.0
    %327 = vmatpush1.msra.mxu0 0.0
    %328 = vmatprep.mubr.f32.mxu0 0.0
    %v329 = vand.u32 %v139, 4294901760
    %330 = vmatmul.mubr.f32.gmra.mrb[0].mxu0 %v329
    %v331 = vpop.f32.mrb[0].mxu0
    %v332 = vadd.f32 %v226, %v331
    %v333 = vpop.f32.mrb[0].mxu0
    %334 = vmatprep.mubr.f32.mxu0 0.0
    %v335 = vand.u32 %v142, 4294901760
    %336 = vmatmul.mubr.f32.gmra.mrb[0].mxu0 %v335
    %v337 = vpop.f32.mrb[0].mxu0
    %v338 = vadd.f32 %v236, %v337
    %v339 = vpop.f32.mrb[0].mxu0
    %340 = vmatprep.mubr.f32.mxu0 0.0
    %v341 = vand.u32 %v145, 4294901760
    %342 = vmatmul.mubr.f32.gmra.mrb[0].mxu0 %v341
    %v343 = vpop.f32.mrb[0].mxu0
    %v344 = vadd.f32 %v246, %v343
    %v345 = vpop.f32.mrb[0].mxu0
    %346 = vdwg.mxu0
    %347 = vmatprep.subr.mxu0 0.0
    %v348 = vand.u32 %v113, 4294901760
    %v349 = vsub.f32 %v113, %v348
    %350 = vmatpush1.msra.mxu0 %v349
    %351 = vmatprep.subr.mxu0 0.0
    %v352 = vand.u32 %v114, 4294901760
    %v353 = vsub.f32 %v114, %v352
    %354 = vmatpush1.msra.mxu0 %v353
    %355 = vmatprep.subr.mxu0 0.0
    %v356 = vand.u32 %v149, 4294901760
    %v357 = vsub.f32 %v149, %v356
    %358 = vmatpush1.msra.mxu0 %v357
    %359 = vmatprep.subr.mxu0 0.0
    %360 = vmatpush1.msra.mxu0 0.0
    %361 = vmatprep.subr.mxu0 0.0
    %362 = vmatpush1.msra.mxu0 0.0
    %363 = vmatprep.subr.mxu0 0.0
    %364 = vmatpush1.msra.mxu0 0.0
    %365 = vmatprep.subr.mxu0 0.0
    %366 = vmatpush1.msra.mxu0 0.0
    %367 = vmatprep.subr.mxu0 0.0
    %368 = vmatpush1.msra.mxu0 0.0
    %369 = vmatprep.subr.mxu0 0.0
    %370 = vmatpush1.msra.mxu0 0.0
    %371 = vmatprep.subr.mxu0 0.0
    %372 = vmatpush1.msra.mxu0 0.0
    %373 = vmatprep.subr.mxu0 0.0
    %374 = vmatpush1.msra.mxu0 0.0
    %375 = vmatprep.subr.mxu0 0.0
    %376 = vmatpush1.msra.mxu0 0.0
    %377 = vmatprep.subr.mxu0 0.0
    %378 = vmatpush1.msra.mxu0 0.0
    %379 = vmatprep.subr.mxu0 0.0
    %380 = vmatpush1.msra.mxu0 0.0
    %381 = vmatprep.subr.mxu0 0.0
    %382 = vmatpush1.msra.mxu0 0.0
    %383 = vmatprep.subr.mxu0 0.0
    %384 = vmatpush1.msra.mxu0 0.0
    %385 = vmatprep.subr.mxu0 0.0
    %386 = vmatpush1.msra.mxu0 0.0
    %387 = vmatprep.subr.mxu0 0.0
    %388 = vmatpush1.msra.mxu0 0.0
    %389 = vmatprep.subr.mxu0 0.0
    %390 = vmatpush1.msra.mxu0 0.0
    %391 = vmatprep.subr.mxu0 0.0
    %392 = vmatpush1.msra.mxu0 0.0
    %393 = vmatprep.subr.mxu0 0.0
    %394 = vmatpush1.msra.mxu0 0.0
    %395 = vmatprep.subr.mxu0 0.0
    %396 = vmatpush1.msra.mxu0 0.0
    %397 = vmatprep.subr.mxu0 0.0
    %398 = vmatpush1.msra.mxu0 0.0
    %399 = vmatprep.subr.mxu0 0.0
    %400 = vmatpush1.msra.mxu0 0.0
    %401 = vmatprep.subr.mxu0 0.0
    %402 = vmatpush1.msra.mxu0 0.0
    %403 = vmatprep.subr.mxu0 0.0
    %404 = vmatpush1.msra.mxu0 0.0
    %405 = vmatprep.subr.mxu0 0.0
    %406 = vmatpush1.msra.mxu0 0.0
    %407 = vmatprep.subr.mxu0 0.0
    %408 = vmatpush1.msra.mxu0 0.0
    %409 = vmatprep.subr.mxu0 0.0
    %410 = vmatpush1.msra.mxu0 0.0
    %411 = vmatprep.subr.mxu0 0.0
    %412 = vmatpush1.msra.mxu0 0.0
    %413 = vmatprep.subr.mxu0 0.0
    %414 = vmatpush1.msra.mxu0 0.0
    %415 = vmatprep.subr.mxu0 0.0
    %416 = vmatpush1.msra.mxu0 0.0
    %417 = vmatprep.mubr.f32.mxu0 0.0
    %v418 = vand.u32 %v139, 4294901760
    %v419 = vsub.f32 %v139, %v418
    %420 = vmatmul.mubr.f32.gmra.mrb[0].mxu0 %v419
    %v421 = vpop.f32.mrb[0].mxu0
    %v422 = vadd.f32 %v332, %v421
    %v423 = vpop.f32.mrb[0].mxu0
    %424 = vmatprep.mubr.f32.mxu0 0.0
    %v425 = vand.u32 %v142, 4294901760
    %v426 = vsub.f32 %v142, %v425
    %427 = vmatmul.mubr.f32.gmra.mrb[0].mxu0 %v426
    %v428 = vpop.f32.mrb[0].mxu0
    %v429 = vadd.f32 %v338, %v428
    %v430 = vpop.f32.mrb[0].mxu0
    %431 = vmatprep.mubr.f32.mxu0 0.0
    %v432 = vand.u32 %v145, 4294901760
    %v433 = vsub.f32 %v145, %v432
    %434 = vmatmul.mubr.f32.gmra.mrb[0].mxu0 %v433
    %v435 = vpop.f32.mrb[0].mxu0
    %v436 = vadd.f32 %v344, %v435
    %v437 = vpop.f32.mrb[0].mxu0
    %438 = vdwg.mxu0
    %439 = vmatprep.subr.mxu0 0.0
    %v440 = vand.u32 %v113, 4294901760
    %441 = vmatpush1.msra.mxu0 %v440
    %442 = vmatprep.subr.mxu0 0.0
    %v443 = vand.u32 %v114, 4294901760
    %444 = vmatpush1.msra.mxu0 %v443
    %445 = vmatprep.subr.mxu0 0.0
    %v446 = vand.u32 %v149, 4294901760
    %447 = vmatpush1.msra.mxu0 %v446
    %448 = vmatprep.subr.mxu0 0.0
    %449 = vmatpush1.msra.mxu0 0.0
    %450 = vmatprep.subr.mxu0 0.0
    %451 = vmatpush1.msra.mxu0 0.0
    %452 = vmatprep.subr.mxu0 0.0
    %453 = vmatpush1.msra.mxu0 0.0
    %454 = vmatprep.subr.mxu0 0.0
    %455 = vmatpush1.msra.mxu0 0.0
    %456 = vmatprep.subr.mxu0 0.0
    %457 = vmatpush1.msra.mxu0 0.0
    %458 = vmatprep.subr.mxu0 0.0
    %459 = vmatpush1.msra.mxu0 0.0
    %460 = vmatprep.subr.mxu0 0.0
    %461 = vmatpush1.msra.mxu0 0.0
    %462 = vmatprep.subr.mxu0 0.0
    %463 = vmatpush1.msra.mxu0 0.0
    %464 = vmatprep.subr.mxu0 0.0
    %465 = vmatpush1.msra.mxu0 0.0
    %466 = vmatprep.subr.mxu0 0.0
    %467 = vmatpush1.msra.mxu0 0.0
    %468 = vmatprep.subr.mxu0 0.0
    %469 = vmatpush1.msra.mxu0 0.0
    %470 = vmatprep.subr.mxu0 0.0
    %471 = vmatpush1.msra.mxu0 0.0
    %472 = vmatprep.subr.mxu0 0.0
    %473 = vmatpush1.msra.mxu0 0.0
    %474 = vmatprep.subr.mxu0 0.0
    %475 = vmatpush1.msra.mxu0 0.0
    %476 = vmatprep.subr.mxu0 0.0
    %477 = vmatpush1.msra.mxu0 0.0
    %478 = vmatprep.subr.mxu0 0.0
    %479 = vmatpush1.msra.mxu0 0.0
    %480 = vmatprep.subr.mxu0 0.0
    %481 = vmatpush1.msra.mxu0 0.0
    %482 = vmatprep.subr.mxu0 0.0
    %483 = vmatpush1.msra.mxu0 0.0
    %484 = vmatprep.subr.mxu0 0.0
    %485 = vmatpush1.msra.mxu0 0.0
    %486 = vmatprep.subr.mxu0 0.0
    %487 = vmatpush1.msra.mxu0 0.0
    %488 = vmatprep.subr.mxu0 0.0
    %489 = vmatpush1.msra.mxu0 0.0
    %490 = vmatprep.subr.mxu0 0.0
    %491 = vmatpush1.msra.mxu0 0.0
    %492 = vmatprep.subr.mxu0 0.0
    %493 = vmatpush1.msra.mxu0 0.0
    %494 = vmatprep.subr.mxu0 0.0
    %495 = vmatpush1.msra.mxu0 0.0
    %496 = vmatprep.subr.mxu0 0.0
    %497 = vmatpush1.msra.mxu0 0.0
    %498 = vmatprep.subr.mxu0 0.0
    %499 = vmatpush1.msra.mxu0 0.0
    %500 = vmatprep.subr.mxu0 0.0
    %501 = vmatpush1.msra.mxu0 0.0
    %502 = vmatprep.subr.mxu0 0.0
    %503 = vmatpush1.msra.mxu0 0.0
    %504 = vmatprep.subr.mxu0 0.0
    %505 = vmatpush1.msra.mxu0 0.0
    %506 = vmatprep.mubr.f32.mxu0 0.0
    %v507 = vand.u32 %v139, 4294901760
    %v508 = vsub.f32 %v139, %v507
    %v509 = vand.u32 %v508, 4294901760
    %510 = vmatmul.mubr.f32.gmra.mrb[0].mxu0 %v509
    %v511 = vpop.f32.mrb[0].mxu0
    %v512 = vadd.f32 %v422, %v511
    %v513 = vpop.f32.mrb[0].mxu0
    %514 = vmatprep.mubr.f32.mxu0 0.0
    %v515 = vand.u32 %v142, 4294901760
    %v516 = vsub.f32 %v142, %v515
    %v517 = vand.u32 %v516, 4294901760
    %518 = vmatmul.mubr.f32.gmra.mrb[0].mxu0 %v517
    %v519 = vpop.f32.mrb[0].mxu0
    %v520 = vadd.f32 %v429, %v519
    %v521 = vpop.f32.mrb[0].mxu0
    %522 = vmatprep.mubr.f32.mxu0 0.0
    %v523 = vand.u32 %v145, 4294901760
    %v524 = vsub.f32 %v145, %v523
    %v525 = vand.u32 %v524, 4294901760
    %526 = vmatmul.mubr.f32.gmra.mrb[0].mxu0 %v525
    %v527 = vpop.f32.mrb[0].mxu0
    %v528 = vadd.f32 %v436, %v527
    %v529 = vpop.f32.mrb[0].mxu0
    %530 = vdwg.mxu0
    %531 = vmatprep.subr.mxu0 0.0
    %v532 = vand.u32 %v113, 4294901760
    %v533 = vsub.f32 %v113, %v532
    %v534 = vand.u32 %v533, 4294901760
    %535 = vmatpush1.msra.mxu0 %v534
    %536 = vmatprep.subr.mxu0 0.0
    %v537 = vand.u32 %v114, 4294901760
    %v538 = vsub.f32 %v114, %v537
    %v539 = vand.u32 %v538, 4294901760
    %540 = vmatpush1.msra.mxu0 %v539
    %541 = vmatprep.subr.mxu0 0.0
    %v542 = vand.u32 %v149, 4294901760
    %v543 = vsub.f32 %v149, %v542
    %v544 = vand.u32 %v543, 4294901760
    %545 = vmatpush1.msra.mxu0 %v544
    %546 = vmatprep.subr.mxu0 0.0
    %547 = vmatpush1.msra.mxu0 0.0
    %548 = vmatprep.subr.mxu0 0.0
    %549 = vmatpush1.msra.mxu0 0.0
    %550 = vmatprep.subr.mxu0 0.0
    %551 = vmatpush1.msra.mxu0 0.0
    %552 = vmatprep.subr.mxu0 0.0
    %553 = vmatpush1.msra.mxu0 0.0
    %554 = vmatprep.subr.mxu0 0.0
    %555 = vmatpush1.msra.mxu0 0.0
    %556 = vmatprep.subr.mxu0 0.0
    %557 = vmatpush1.msra.mxu0 0.0
    %558 = vmatprep.subr.mxu0 0.0
    %559 = vmatpush1.msra.mxu0 0.0
    %560 = vmatprep.subr.mxu0 0.0
    %561 = vmatpush1.msra.mxu0 0.0
    %562 = vmatprep.subr.mxu0 0.0
    %563 = vmatpush1.msra.mxu0 0.0
    %564 = vmatprep.subr.mxu0 0.0
    %565 = vmatpush1.msra.mxu0 0.0
    %566 = vmatprep.subr.mxu0 0.0
    %567 = vmatpush1.msra.mxu0 0.0
    %568 = vmatprep.subr.mxu0 0.0
    %569 = vmatpush1.msra.mxu0 0.0
    %570 = vmatprep.subr.mxu0 0.0
    %571 = vmatpush1.msra.mxu0 0.0
    %572 = vmatprep.subr.mxu0 0.0
    %573 = vmatpush1.msra.mxu0 0.0
    %574 = vmatprep.subr.mxu0 0.0
    %575 = vmatpush1.msra.mxu0 0.0
    %576 = vmatprep.subr.mxu0 0.0
    %577 = vmatpush1.msra.mxu0 0.0
    %578 = vmatprep.subr.mxu0 0.0
    %579 = vmatpush1.msra.mxu0 0.0
    %580 = vmatprep.subr.mxu0 0.0
    %581 = vmatpush1.msra.mxu0 0.0
    %582 = vmatprep.subr.mxu0 0.0
    %583 = vmatpush1.msra.mxu0 0.0
    %584 = vmatprep.subr.mxu0 0.0
    %585 = vmatpush1.msra.mxu0 0.0
    %586 = vmatprep.subr.mxu0 0.0
    %587 = vmatpush1.msra.mxu0 0.0
    %588 = vmatprep.subr.mxu0 0.0
    %589 = vmatpush1.msra.mxu0 0.0
    %590 = vmatprep.subr.mxu0 0.0
    %591 = vmatpush1.msra.mxu0 0.0
    %592 = vmatprep.subr.mxu0 0.0
    %593 = vmatpush1.msra.mxu0 0.0
    %594 = vmatprep.subr.mxu0 0.0
    %595 = vmatpush1.msra.mxu0 0.0
    %596 = vmatprep.subr.mxu0 0.0
    %597 = vmatpush1.msra.mxu0 0.0
    %598 = vmatprep.subr.mxu0 0.0
    %599 = vmatpush1.msra.mxu0 0.0
    %600 = vmatprep.subr.mxu0 0.0
    %601 = vmatpush1.msra.mxu0 0.0
    %602 = vmatprep.subr.mxu0 0.0
    %603 = vmatpush1.msra.mxu0 0.0
    %604 = vmatprep.mubr.f32.mxu0 0.0
    %v605 = vand.u32 %v139, 4294901760
    %606 = vmatmul.mubr.f32.gmra.mrb[0].mxu0 %v605
    %v607 = vpop.f32.mrb[0].mxu0
    %v608 = vadd.f32 %v512, %v607
    %v609 = vpop.f32.mrb[0].mxu0
    %610 = vmatprep.mubr.f32.mxu0 0.0
    %v611 = vand.u32 %v142, 4294901760
    %612 = vmatmul.mubr.f32.gmra.mrb[0].mxu0 %v611
    %v613 = vpop.f32.mrb[0].mxu0
    %v614 = vadd.f32 %v520, %v613
    %v615 = vpop.f32.mrb[0].mxu0
    %616 = vmatprep.mubr.f32.mxu0 0.0
    %v617 = vand.u32 %v145, 4294901760
    %618 = vmatmul.mubr.f32.gmra.mrb[0].mxu0 %v617
    %v619 = vpop.f32.mrb[0].mxu0
    %v620 = vadd.f32 %v528, %v619
    %v621 = vpop.f32.mrb[0].mxu0
    %622 = vdwg.mxu0
    %623 = vmatprep.subr.mxu0 0.0
    %v624 = vand.u32 %v113, 4294901760
    %625 = vmatpush1.msra.mxu0 %v624
    %626 = vmatprep.subr.mxu0 0.0
    %v627 = vand.u32 %v114, 4294901760
    %628 = vmatpush1.msra.mxu0 %v627
    %629 = vmatprep.subr.mxu0 0.0
    %v630 = vand.u32 %v149, 4294901760
    %631 = vmatpush1.msra.mxu0 %v630
    %632 = vmatprep.subr.mxu0 0.0
    %633 = vmatpush1.msra.mxu0 0.0
    %634 = vmatprep.subr.mxu0 0.0
    %635 = vmatpush1.msra.mxu0 0.0
    %636 = vmatprep.subr.mxu0 0.0
    %637 = vmatpush1.msra.mxu0 0.0
    %638 = vmatprep.subr.mxu0 0.0
    %639 = vmatpush1.msra.mxu0 0.0
    %640 = vmatprep.subr.mxu0 0.0
    %641 = vmatpush1.msra.mxu0 0.0
    %642 = vmatprep.subr.mxu0 0.0
    %643 = vmatpush1.msra.mxu0 0.0
    %644 = vmatprep.subr.mxu0 0.0
    %645 = vmatpush1.msra.mxu0 0.0
    %646 = vmatprep.subr.mxu0 0.0
    %647 = vmatpush1.msra.mxu0 0.0
    %648 = vmatprep.subr.mxu0 0.0
    %649 = vmatpush1.msra.mxu0 0.0
    %650 = vmatprep.subr.mxu0 0.0
    %651 = vmatpush1.msra.mxu0 0.0
    %652 = vmatprep.subr.mxu0 0.0
    %653 = vmatpush1.msra.mxu0 0.0
    %654 = vmatprep.subr.mxu0 0.0
    %655 = vmatpush1.msra.mxu0 0.0
    %656 = vmatprep.subr.mxu0 0.0
    %657 = vmatpush1.msra.mxu0 0.0
    %658 = vmatprep.subr.mxu0 0.0
    %659 = vmatpush1.msra.mxu0 0.0
    %660 = vmatprep.subr.mxu0 0.0
    %661 = vmatpush1.msra.mxu0 0.0
    %662 = vmatprep.subr.mxu0 0.0
    %663 = vmatpush1.msra.mxu0 0.0
    %664 = vmatprep.subr.mxu0 0.0
    %665 = vmatpush1.msra.mxu0 0.0
    %666 = vmatprep.subr.mxu0 0.0
    %667 = vmatpush1.msra.mxu0 0.0
    %668 = vmatprep.subr.mxu0 0.0
    %669 = vmatpush1.msra.mxu0 0.0
    %670 = vmatprep.subr.mxu0 0.0
    %671 = vmatpush1.msra.mxu0 0.0
    %672 = vmatprep.subr.mxu0 0.0
    %673 = vmatpush1.msra.mxu0 0.0
    %674 = vmatprep.subr.mxu0 0.0
    %675 = vmatpush1.msra.mxu0 0.0
    %676 = vmatprep.subr.mxu0 0.0
    %677 = vmatpush1.msra.mxu0 0.0
    %678 = vmatprep.subr.mxu0 0.0
    %679 = vmatpush1.msra.mxu0 0.0
    %680 = vmatprep.subr.mxu0 0.0
    %681 = vmatpush1.msra.mxu0 0.0
    %682 = vmatprep.subr.mxu0 0.0
    %683 = vmatpush1.msra.mxu0 0.0
    %684 = vmatprep.subr.mxu0 0.0
    %685 = vmatpush1.msra.mxu0 0.0
    %686 = vmatprep.subr.mxu0 0.0
    %687 = vmatpush1.msra.mxu0 0.0
    %688 = vmatprep.subr.mxu0 0.0
    %689 = vmatpush1.msra.mxu0 0.0
    %690 = vmatprep.mubr.f32.mxu0 0.0
    %v691 = vand.u32 %v139, 4294901760
    %692 = vmatmul.mubr.f32.gmra.mrb[0].mxu0 %v691
    %v693 = vpop.f32.mrb[0].mxu0
    %v694 = vadd.f32 %v608, %v693
    %v695 = vpop.f32.mrb[0].mxu0
    %696 = vmatprep.mubr.f32.mxu0 0.0
    %v697 = vand.u32 %v142, 4294901760
    %698 = vmatmul.mubr.f32.gmra.mrb[0].mxu0 %v697
    %v699 = vpop.f32.mrb[0].mxu0
    %v700 = vadd.f32 %v614, %v699
    %v701 = vpop.f32.mrb[0].mxu0
    %702 = vmatprep.mubr.f32.mxu0 0.0
    %v703 = vand.u32 %v145, 4294901760
    %704 = vmatmul.mubr.f32.gmra.mrb[0].mxu0 %v703
    %v705 = vpop.f32.mrb[0].mxu0
    %v706 = vadd.f32 %v620, %v705
    %v707 = vpop.f32.mrb[0].mxu0
    %708 = vdwg.mxu0
    %v709 = vtanh.pop %v694
    %v710 = vtanh.pop %v700
    %v711 = vtanh.pop %v706
    %v712 = vld [vmem:[%s6] sm:$0xff]
    %v713 = vld [vmem:[%s6 + $0x8] sm:$0xff]
    %v714 = vld [vmem:[%s6 + $0x10] sm:$0xf]
    %v715 = vld [vmem:[%s7] sm:$0xff]
    %v716 = vld [vmem:[%s7 + $0x8] sm:$0xff]
    %v717 = vld [vmem:[%s7 + $0x10] sm:$0xf]
    %719 = vset.pattern.permute.xlu0 0
    %720 = vperm.xlu0 %719, %v715
    %v721 = vpop.permute.xlu0 %720
    %724 = vset.pattern.permute.xlu0 0
    %725 = vperm.xlu0 %724, %v716
    %v726 = vpop.permute.xlu0 %725
    %729 = vset.pattern.permute.xlu0 0
    %730 = vperm.xlu0 %729, %v717
    %v731 = vpop.permute.xlu0 %730
    %v734 = vsel %vm137, %v712, 0
    %v737 = vsel %vm137, %v713, 0
    %v740 = vsel %vm137, %v714, 0
    %v743 = vsel %vm147, %v711, 0
    %745 = vmatprep.subr.mxu0 0.0
    %v746 = vand.u32 %v709, 4294901760
    %747 = vmatpush1.msra.mxu0 %v746
    %748 = vmatprep.subr.mxu0 0.0
    %v749 = vand.u32 %v710, 4294901760
    %750 = vmatpush1.msra.mxu0 %v749
    %751 = vmatprep.subr.mxu0 0.0
    %v752 = vand.u32 %v743, 4294901760
    %753 = vmatpush1.msra.mxu0 %v752
    %754 = vmatprep.subr.mxu0 0.0
    %755 = vmatpush1.msra.mxu0 0.0
    %756 = vmatprep.subr.mxu0 0.0
    %757 = vmatpush1.msra.mxu0 0.0
    %758 = vmatprep.subr.mxu0 0.0
    %759 = vmatpush1.msra.mxu0 0.0
    %760 = vmatprep.subr.mxu0 0.0
    %761 = vmatpush1.msra.mxu0 0.0
    %762 = vmatprep.subr.mxu0 0.0
    %763 = vmatpush1.msra.mxu0 0.0
    %764 = vmatprep.subr.mxu0 0.0
    %765 = vmatpush1.msra.mxu0 0.0
    %766 = vmatprep.subr.mxu0 0.0
    %767 = vmatpush1.msra.mxu0 0.0
    %768 = vmatprep.subr.mxu0 0.0
    %769 = vmatpush1.msra.mxu0 0.0
    %770 = vmatprep.subr.mxu0 0.0
    %771 = vmatpush1.msra.mxu0 0.0
    %772 = vmatprep.subr.mxu0 0.0
    %773 = vmatpush1.msra.mxu0 0.0
    %774 = vmatprep.subr.mxu0 0.0
    %775 = vmatpush1.msra.mxu0 0.0
    %776 = vmatprep.subr.mxu0 0.0
    %777 = vmatpush1.msra.mxu0 0.0
    %778 = vmatprep.subr.mxu0 0.0
    %779 = vmatpush1.msra.mxu0 0.0
    %780 = vmatprep.subr.mxu0 0.0
    %781 = vmatpush1.msra.mxu0 0.0
    %782 = vmatprep.subr.mxu0 0.0
    %783 = vmatpush1.msra.mxu0 0.0
    %784 = vmatprep.subr.mxu0 0.0
    %785 = vmatpush1.msra.mxu0 0.0
    %786 = vmatprep.subr.mxu0 0.0
    %787 = vmatpush1.msra.mxu0 0.0
    %788 = vmatprep.subr.mxu0 0.0
    %789 = vmatpush1.msra.mxu0 0.0
    %790 = vmatprep.subr.mxu0 0.0
    %791 = vmatpush1.msra.mxu0 0.0
    %792 = vmatprep.subr.mxu0 0.0
    %793 = vmatpush1.msra.mxu0 0.0
    %794 = vmatprep.subr.mxu0 0.0
    %795 = vmatpush1.msra.mxu0 0.0
    %796 = vmatprep.subr.mxu0 0.0
    %797 = vmatpush1.msra.mxu0 0.0
    %798 = vmatprep.subr.mxu0 0.0
    %799 = vmatpush1.msra.mxu0 0.0
    %800 = vmatprep.subr.mxu0 0.0
    %801 = vmatpush1.msra.mxu0 0.0
    %802 = vmatprep.subr.mxu0 0.0
    %803 = vmatpush1.msra.mxu0 0.0
    %804 = vmatprep.subr.mxu0 0.0
    %805 = vmatpush1.msra.mxu0 0.0
    %806 = vmatprep.subr.mxu0 0.0
    %807 = vmatpush1.msra.mxu0 0.0
    %808 = vmatprep.subr.mxu0 0.0
    %809 = vmatpush1.msra.mxu0 0.0
    %810 = vmatprep.subr.mxu0 0.0
    %811 = vmatpush1.msra.mxu0 0.0
    %812 = vmatprep.mubr.f32.mxu0 0.0
    %v813 = vand.u32 %v734, 4294901760
    %v814 = vsub.f32 %v734, %v813
    %v815 = vand.u32 %v814, 4294901760
    %v816 = vsub.f32 %v814, %v815
    %v817 = vand.u32 %v816, 4294901760
    %818 = vmatmul.mubr.f32.gmra.mrb[0].mxu0 %v817
    %v819 = vpop.f32.mrb[0].mxu0
    %v820 = vadd.f32 %v721, %v819
    %v821 = vpop.f32.mrb[0].mxu0
    %822 = vmatprep.mubr.f32.mxu0 0.0
    %v823 = vand.u32 %v737, 4294901760
    %v824 = vsub.f32 %v737, %v823
    %v825 = vand.u32 %v824, 4294901760
    %v826 = vsub.f32 %v824, %v825
    %v827 = vand.u32 %v826, 4294901760
    %828 = vmatmul.mubr.f32.gmra.mrb[0].mxu0 %v827
    %v829 = vpop.f32.mrb[0].mxu0
    %v830 = vadd.f32 %v726, %v829
    %v831 = vpop.f32.mrb[0].mxu0
    %832 = vmatprep.mubr.f32.mxu0 0.0
    %v833 = vand.u32 %v740, 4294901760
    %v834 = vsub.f32 %v740, %v833
    %v835 = vand.u32 %v834, 4294901760
    %v836 = vsub.f32 %v834, %v835
    %v837 = vand.u32 %v836, 4294901760
    %838 = vmatmul.mubr.f32.gmra.mrb[0].mxu0 %v837
    %v839 = vpop.f32.mrb[0].mxu0
    %v840 = vadd.f32 %v731, %v839
    %v841 = vpop.f32.mrb[0].mxu0
    %842 = vdwg.mxu0
    %843 = vmatprep.subr.mxu0 0.0
    %v844 = vand.u32 %v709, 4294901760
    %v845 = vsub.f32 %v709, %v844
    %v846 = vand.u32 %v845, 4294901760
    %v847 = vsub.f32 %v845, %v846
    %v848 = vand.u32 %v847, 4294901760
    %849 = vmatpush1.msra.mxu0 %v848
    %850 = vmatprep.subr.mxu0 0.0
    %v851 = vand.u32 %v710, 4294901760
    %v852 = vsub.f32 %v710, %v851
    %v853 = vand.u32 %v852, 4294901760
    %v854 = vsub.f32 %v852, %v853
    %v855 = vand.u32 %v854, 4294901760
    %856 = vmatpush1.msra.mxu0 %v855
    %857 = vmatprep.subr.mxu0 0.0
    %v858 = vand.u32 %v743, 4294901760
    %v859 = vsub.f32 %v743, %v858
    %v860 = vand.u32 %v859, 4294901760
    %v861 = vsub.f32 %v859, %v860
    %v862 = vand.u32 %v861, 4294901760
    %863 = vmatpush1.msra.mxu0 %v862
    %864 = vmatprep.subr.mxu0 0.0
    %865 = vmatpush1.msra.mxu0 0.0
    %866 = vmatprep.subr.mxu0 0.0
    %867 = vmatpush1.msra.mxu0 0.0
    %868 = vmatprep.subr.mxu0 0.0
    %869 = vmatpush1.msra.mxu0 0.0
    %870 = vmatprep.subr.mxu0 0.0
    %871 = vmatpush1.msra.mxu0 0.0
    %872 = vmatprep.subr.mxu0 0.0
    %873 = vmatpush1.msra.mxu0 0.0
    %874 = vmatprep.subr.mxu0 0.0
    %875 = vmatpush1.msra.mxu0 0.0
    %876 = vmatprep.subr.mxu0 0.0
    %877 = vmatpush1.msra.mxu0 0.0
    %878 = vmatprep.subr.mxu0 0.0
    %879 = vmatpush1.msra.mxu0 0.0
    %880 = vmatprep.subr.mxu0 0.0
    %881 = vmatpush1.msra.mxu0 0.0
    %882 = vmatprep.subr.mxu0 0.0
    %883 = vmatpush1.msra.mxu0 0.0
    %884 = vmatprep.subr.mxu0 0.0
    %885 = vmatpush1.msra.mxu0 0.0
    %886 = vmatprep.subr.mxu0 0.0
    %887 = vmatpush1.msra.mxu0 0.0
    %888 = vmatprep.subr.mxu0 0.0
    %889 = vmatpush1.msra.mxu0 0.0
    %890 = vmatprep.subr.mxu0 0.0
    %891 = vmatpush1.msra.mxu0 0.0
    %892 = vmatprep.subr.mxu0 0.0
    %893 = vmatpush1.msra.mxu0 0.0
    %894 = vmatprep.subr.mxu0 0.0
    %895 = vmatpush1.msra.mxu0 0.0
    %896 = vmatprep.subr.mxu0 0.0
    %897 = vmatpush1.msra.mxu0 0.0
    %898 = vmatprep.subr.mxu0 0.0
    %899 = vmatpush1.msra.mxu0 0.0
    %900 = vmatprep.subr.mxu0 0.0
    %901 = vmatpush1.msra.mxu0 0.0
    %902 = vmatprep.subr.mxu0 0.0
    %903 = vmatpush1.msra.mxu0 0.0
    %904 = vmatprep.subr.mxu0 0.0
    %905 = vmatpush1.msra.mxu0 0.0
    %906 = vmatprep.subr.mxu0 0.0
    %907 = vmatpush1.msra.mxu0 0.0
    %908 = vmatprep.subr.mxu0 0.0
    %909 = vmatpush1.msra.mxu0 0.0
    %910 = vmatprep.subr.mxu0 0.0
    %911 = vmatpush1.msra.mxu0 0.0
    %912 = vmatprep.subr.mxu0 0.0
    %913 = vmatpush1.msra.mxu0 0.0
    %914 = vmatprep.subr.mxu0 0.0
    %915 = vmatpush1.msra.mxu0 0.0
    %916 = vmatprep.subr.mxu0 0.0
    %917 = vmatpush1.msra.mxu0 0.0
    %918 = vmatprep.subr.mxu0 0.0
    %919 = vmatpush1.msra.mxu0 0.0
    %920 = vmatprep.subr.mxu0 0.0
    %921 = vmatpush1.msra.mxu0 0.0
    %922 = vmatprep.mubr.f32.mxu0 0.0
    %v923 = vand.u32 %v734, 4294901760
    %924 = vmatmul.mubr.f32.gmra.mrb[0].mxu0 %v923
    %v925 = vpop.f32.mrb[0].mxu0
    %v926 = vadd.f32 %v820, %v925
    %v927 = vpop.f32.mrb[0].mxu0
    %928 = vmatprep.mubr.f32.mxu0 0.0
    %v929 = vand.u32 %v737, 4294901760
    %930 = vmatmul.mubr.f32.gmra.mrb[0].mxu0 %v929
    %v931 = vpop.f32.mrb[0].mxu0
    %v932 = vadd.f32 %v830, %v931
    %v933 = vpop.f32.mrb[0].mxu0
    %934 = vmatprep.mubr.f32.mxu0 0.0
    %v935 = vand.u32 %v740, 4294901760
    %936 = vmatmul.mubr.f32.gmra.mrb[0].mxu0 %v935
    %v937 = vpop.f32.mrb[0].mxu0
    %v938 = vadd.f32 %v840, %v937
    %v939 = vpop.f32.mrb[0].mxu0
    %940 = vdwg.mxu0
    %941 = vmatprep.subr.mxu0 0.0
    %v942 = vand.u32 %v709, 4294901760
    %v943 = vsub.f32 %v709, %v942
    %944 = vmatpush1.msra.mxu0 %v943
    %945 = vmatprep.subr.mxu0 0.0
    %v946 = vand.u32 %v710, 4294901760
    %v947 = vsub.f32 %v710, %v946
    %948 = vmatpush1.msra.mxu0 %v947
    %949 = vmatprep.subr.mxu0 0.0
    %v950 = vand.u32 %v743, 4294901760
    %v951 = vsub.f32 %v743, %v950
    %952 = vmatpush1.msra.mxu0 %v951
    %953 = vmatprep.subr.mxu0 0.0
    %954 = vmatpush1.msra.mxu0 0.0
    %955 = vmatprep.subr.mxu0 0.0
    %956 = vmatpush1.msra.mxu0 0.0
    %957 = vmatprep.subr.mxu0 0.0
    %958 = vmatpush1.msra.mxu0 0.0
    %959 = vmatprep.subr.mxu0 0.0
    %960 = vmatpush1.msra.mxu0 0.0
    %961 = vmatprep.subr.mxu0 0.0
    %962 = vmatpush1.msra.mxu0 0.0
    %963 = vmatprep.subr.mxu0 0.0
    %964 = vmatpush1.msra.mxu0 0.0
    %965 = vmatprep.subr.mxu0 0.0
    %966 = vmatpush1.msra.mxu0 0.0
    %967 = vmatprep.subr.mxu0 0.0
    %968 = vmatpush1.msra.mxu0 0.0
    %969 = vmatprep.subr.mxu0 0.0
    %970 = vmatpush1.msra.mxu0 0.0
    %971 = vmatprep.subr.mxu0 0.0
    %972 = vmatpush1.msra.mxu0 0.0
    %973 = vmatprep.subr.mxu0 0.0
    %974 = vmatpush1.msra.mxu0 0.0
    %975 = vmatprep.subr.mxu0 0.0
    %976 = vmatpush1.msra.mxu0 0.0
    %977 = vmatprep.subr.mxu0 0.0
    %978 = vmatpush1.msra.mxu0 0.0
    %979 = vmatprep.subr.mxu0 0.0
    %980 = vmatpush1.msra.mxu0 0.0
    %981 = vmatprep.subr.mxu0 0.0
    %982 = vmatpush1.msra.mxu0 0.0
    %983 = vmatprep.subr.mxu0 0.0
    %984 = vmatpush1.msra.mxu0 0.0
    %985 = vmatprep.subr.mxu0 0.0
    %986 = vmatpush1.msra.mxu0 0.0
    %987 = vmatprep.subr.mxu0 0.0
    %988 = vmatpush1.msra.mxu0 0.0
    %989 = vmatprep.subr.mxu0 0.0
    %990 = vmatpush1.msra.mxu0 0.0
    %991 = vmatprep.subr.mxu0 0.0
    %992 = vmatpush1.msra.mxu0 0.0
    %993 = vmatprep.subr.mxu0 0.0
    %994 = vmatpush1.msra.mxu0 0.0
    %995 = vmatprep.subr.mxu0 0.0
    %996 = vmatpush1.msra.mxu0 0.0
    %997 = vmatprep.subr.mxu0 0.0
    %998 = vmatpush1.msra.mxu0 0.0
    %999 = vmatprep.subr.mxu0 0.0
    %1000 = vmatpush1.msra.mxu0 0.0
    %1001 = vmatprep.subr.mxu0 0.0
    %1002 = vmatpush1.msra.mxu0 0.0
    %1003 = vmatprep.subr.mxu0 0.0
    %1004 = vmatpush1.msra.mxu0 0.0
    %1005 = vmatprep.subr.mxu0 0.0
    %1006 = vmatpush1.msra.mxu0 0.0
    %1007 = vmatprep.subr.mxu0 0.0
    %1008 = vmatpush1.msra.mxu0 0.0
    %1009 = vmatprep.subr.mxu0 0.0
    %1010 = vmatpush1.msra.mxu0 0.0
    %1011 = vmatprep.mubr.f32.mxu0 0.0
    %v1012 = vand.u32 %v734, 4294901760
    %v1013 = vsub.f32 %v734, %v1012
    %1014 = vmatmul.mubr.f32.gmra.mrb[0].mxu0 %v1013
    %v1015 = vpop.f32.mrb[0].mxu0
    %v1016 = vadd.f32 %v926, %v1015
    %v1017 = vpop.f32.mrb[0].mxu0
    %1018 = vmatprep.mubr.f32.mxu0 0.0
    %v1019 = vand.u32 %v737, 4294901760
    %v1020 = vsub.f32 %v737, %v1019
    %1021 = vmatmul.mubr.f32.gmra.mrb[0].mxu0 %v1020
    %v1022 = vpop.f32.mrb[0].mxu0
    %v1023 = vadd.f32 %v932, %v1022
    %v1024 = vpop.f32.mrb[0].mxu0
    %1025 = vmatprep.mubr.f32.mxu0 0.0
    %v1026 = vand.u32 %v740, 4294901760
    %v1027 = vsub.f32 %v740, %v1026
    %1028 = vmatmul.mubr.f32.gmra.mrb[0].mxu0 %v1027
    %v1029 = vpop.f32.mrb[0].mxu0
    %v1030 = vadd.f32 %v938, %v1029
    %v1031 = vpop.f32.mrb[0].mxu0
    %1032 = vdwg.mxu0
    %1033 = vmatprep.subr.mxu0 0.0
    %v1034 = vand.u32 %v709, 4294901760
    %1035 = vmatpush1.msra.mxu0 %v1034
    %1036 = vmatprep.subr.mxu0 0.0
    %v1037 = vand.u32 %v710, 4294901760
    %1038 = vmatpush1.msra.mxu0 %v1037
    %1039 = vmatprep.subr.mxu0 0.0
    %v1040 = vand.u32 %v743, 4294901760
    %1041 = vmatpush1.msra.mxu0 %v1040
    %1042 = vmatprep.subr.mxu0 0.0
    %1043 = vmatpush1.msra.mxu0 0.0
    %1044 = vmatprep.subr.mxu0 0.0
    %1045 = vmatpush1.msra.mxu0 0.0
    %1046 = vmatprep.subr.mxu0 0.0
    %1047 = vmatpush1.msra.mxu0 0.0
    %1048 = vmatprep.subr.mxu0 0.0
    %1049 = vmatpush1.msra.mxu0 0.0
    %1050 = vmatprep.subr.mxu0 0.0
    %1051 = vmatpush1.msra.mxu0 0.0
    %1052 = vmatprep.subr.mxu0 0.0
    %1053 = vmatpush1.msra.mxu0 0.0
    %1054 = vmatprep.subr.mxu0 0.0
    %1055 = vmatpush1.msra.mxu0 0.0
    %1056 = vmatprep.subr.mxu0 0.0
    %1057 = vmatpush1.msra.mxu0 0.0
    %1058 = vmatprep.subr.mxu0 0.0
    %1059 = vmatpush1.msra.mxu0 0.0
    %1060 = vmatprep.subr.mxu0 0.0
    %1061 = vmatpush1.msra.mxu0 0.0
    %1062 = vmatprep.subr.mxu0 0.0
    %1063 = vmatpush1.msra.mxu0 0.0
    %1064 = vmatprep.subr.mxu0 0.0
    %1065 = vmatpush1.msra.mxu0 0.0
    %1066 = vmatprep.subr.mxu0 0.0
    %1067 = vmatpush1.msra.mxu0 0.0
    %1068 = vmatprep.subr.mxu0 0.0
    %1069 = vmatpush1.msra.mxu0 0.0
    %1070 = vmatprep.subr.mxu0 0.0
    %1071 = vmatpush1.msra.mxu0 0.0
    %1072 = vmatprep.subr.mxu0 0.0
    %1073 = vmatpush1.msra.mxu0 0.0
    %1074 = vmatprep.subr.mxu0 0.0
    %1075 = vmatpush1.msra.mxu0 0.0
    %1076 = vmatprep.subr.mxu0 0.0
    %1077 = vmatpush1.msra.mxu0 0.0
    %1078 = vmatprep.subr.mxu0 0.0
    %1079 = vmatpush1.msra.mxu0 0.0
    %1080 = vmatprep.subr.mxu0 0.0
    %1081 = vmatpush1.msra.mxu0 0.0
    %1082 = vmatprep.subr.mxu0 0.0
    %1083 = vmatpush1.msra.mxu0 0.0
    %1084 = vmatprep.subr.mxu0 0.0
    %1085 = vmatpush1.msra.mxu0 0.0
    %1086 = vmatprep.subr.mxu0 0.0
    %1087 = vmatpush1.msra.mxu0 0.0
    %1088 = vmatprep.subr.mxu0 0.0
    %1089 = vmatpush1.msra.mxu0 0.0
    %1090 = vmatprep.subr.mxu0 0.0
    %1091 = vmatpush1.msra.mxu0 0.0
    %1092 = vmatprep.subr.mxu0 0.0
    %1093 = vmatpush1.msra.mxu0 0.0
    %1094 = vmatprep.subr.mxu0 0.0
    %1095 = vmatpush1.msra.mxu0 0.0
    %1096 = vmatprep.subr.mxu0 0.0
    %1097 = vmatpush1.msra.mxu0 0.0
    %1098 = vmatprep.subr.mxu0 0.0
    %1099 = vmatpush1.msra.mxu0 0.0
    %1100 = vmatprep.mubr.f32.mxu0 0.0
    %v1101 = vand.u32 %v734, 4294901760
    %v1102 = vsub.f32 %v734, %v1101
    %v1103 = vand.u32 %v1102, 4294901760
    %1104 = vmatmul.mubr.f32.gmra.mrb[0].mxu0 %v1103
    %v1105 = vpop.f32.mrb[0].mxu0
    %v1106 = vadd.f32 %v1016, %v1105
    %v1107 = vpop.f32.mrb[0].mxu0
    %1108 = vmatprep.mubr.f32.mxu0 0.0
    %v1109 = vand.u32 %v737, 4294901760
    %v1110 = vsub.f32 %v737, %v1109
    %v1111 = vand.u32 %v1110, 4294901760
    %1112 = vmatmul.mubr.f32.gmra.mrb[0].mxu0 %v1111
    %v1113 = vpop.f32.mrb[0].mxu0
    %v1114 = vadd.f32 %v1023, %v1113
    %v1115 = vpop.f32.mrb[0].mxu0
    %1116 = vmatprep.mubr.f32.mxu0 0.0
    %v1117 = vand.u32 %v740, 4294901760
    %v1118 = vsub.f32 %v740, %v1117
    %v1119 = vand.u32 %v1118, 4294901760
    %1120 = vmatmul.mubr.f32.gmra.mrb[0].mxu0 %v1119
    %v1121 = vpop.f32.mrb[0].mxu0
    %v1122 = vadd.f32 %v1030, %v1121
    %v1123 = vpop.f32.mrb[0].mxu0
    %1124 = vdwg.mxu0
    %1125 = vmatprep.subr.mxu0 0.0
    %v1126 = vand.u32 %v709, 4294901760
    %v1127 = vsub.f32 %v709, %v1126
    %v1128 = vand.u32 %v1127, 4294901760
    %1129 = vmatpush1.msra.mxu0 %v1128
    %1130 = vmatprep.subr.mxu0 0.0
    %v1131 = vand.u32 %v710, 4294901760
    %v1132 = vsub.f32 %v710, %v1131
    %v1133 = vand.u32 %v1132, 4294901760
    %1134 = vmatpush1.msra.mxu0 %v1133
    %1135 = vmatprep.subr.mxu0 0.0
    %v1136 = vand.u32 %v743, 4294901760
    %v1137 = vsub.f32 %v743, %v1136
    %v1138 = vand.u32 %v1137, 4294901760
    %1139 = vmatpush1.msra.mxu0 %v1138
    %1140 = vmatprep.subr.mxu0 0.0
    %1141 = vmatpush1.msra.mxu0 0.0
    %1142 = vmatprep.subr.mxu0 0.0
    %1143 = vmatpush1.msra.mxu0 0.0
    %1144 = vmatprep.subr.mxu0 0.0
    %1145 = vmatpush1.msra.mxu0 0.0
    %1146 = vmatprep.subr.mxu0 0.0
    %1147 = vmatpush1.msra.mxu0 0.0
    %1148 = vmatprep.subr.mxu0 0.0
    %1149 = vmatpush1.msra.mxu0 0.0
    %1150 = vmatprep.subr.mxu0 0.0
    %1151 = vmatpush1.msra.mxu0 0.0
    %1152 = vmatprep.subr.mxu0 0.0
    %1153 = vmatpush1.msra.mxu0 0.0
    %1154 = vmatprep.subr.mxu0 0.0
    %1155 = vmatpush1.msra.mxu0 0.0
    %1156 = vmatprep.subr.mxu0 0.0
    %1157 = vmatpush1.msra.mxu0 0.0
    %1158 = vmatprep.subr.mxu0 0.0
    %1159 = vmatpush1.msra.mxu0 0.0
    %1160 = vmatprep.subr.mxu0 0.0
    %1161 = vmatpush1.msra.mxu0 0.0
    %1162 = vmatprep.subr.mxu0 0.0
    %1163 = vmatpush1.msra.mxu0 0.0
    %1164 = vmatprep.subr.mxu0 0.0
    %1165 = vmatpush1.msra.mxu0 0.0
    %1166 = vmatprep.subr.mxu0 0.0
    %1167 = vmatpush1.msra.mxu0 0.0
    %1168 = vmatprep.subr.mxu0 0.0
    %1169 = vmatpush1.msra.mxu0 0.0
    %1170 = vmatprep.subr.mxu0 0.0
    %1171 = vmatpush1.msra.mxu0 0.0
    %1172 = vmatprep.subr.mxu0 0.0
    %1173 = vmatpush1.msra.mxu0 0.0
    %1174 = vmatprep.subr.mxu0 0.0
    %1175 = vmatpush1.msra.mxu0 0.0
    %1176 = vmatprep.subr.mxu0 0.0
    %1177 = vmatpush1.msra.mxu0 0.0
    %1178 = vmatprep.subr.mxu0 0.0
    %1179 = vmatpush1.msra.mxu0 0.0
    %1180 = vmatprep.subr.mxu0 0.0
    %1181 = vmatpush1.msra.mxu0 0.0
    %1182 = vmatprep.subr.mxu0 0.0
    %1183 = vmatpush1.msra.mxu0 0.0
    %1184 = vmatprep.subr.mxu0 0.0
    %1185 = vmatpush1.msra.mxu0 0.0
    %1186 = vmatprep.subr.mxu0 0.0
    %1187 = vmatpush1.msra.mxu0 0.0
    %1188 = vmatprep.subr.mxu0 0.0
    %1189 = vmatpush1.msra.mxu0 0.0
    %1190 = vmatprep.subr.mxu0 0.0
    %1191 = vmatpush1.msra.mxu0 0.0
    %1192 = vmatprep.subr.mxu0 0.0
    %1193 = vmatpush1.msra.mxu0 0.0
    %1194 = vmatprep.subr.mxu0 0.0
    %1195 = vmatpush1.msra.mxu0 0.0
    %1196 = vmatprep.subr.mxu0 0.0
    %1197 = vmatpush1.msra.mxu0 0.0
    %1198 = vmatprep.mubr.f32.mxu0 0.0
    %v1199 = vand.u32 %v734, 4294901760
    %1200 = vmatmul.mubr.f32.gmra.mrb[0].mxu0 %v1199
    %v1201 = vpop.f32.mrb[0].mxu0
    %v1202 = vadd.f32 %v1106, %v1201
    %v1203 = vpop.f32.mrb[0].mxu0
    %1204 = vmatprep.mubr.f32.mxu0 0.0
    %v1205 = vand.u32 %v737, 4294901760
    %1206 = vmatmul.mubr.f32.gmra.mrb[0].mxu0 %v1205
    %v1207 = vpop.f32.mrb[0].mxu0
    %v1208 = vadd.f32 %v1114, %v1207
    %v1209 = vpop.f32.mrb[0].mxu0
    %1210 = vmatprep.mubr.f32.mxu0 0.0
    %v1211 = vand.u32 %v740, 4294901760
    %1212 = vmatmul.mubr.f32.gmra.mrb[0].mxu0 %v1211
    %v1213 = vpop.f32.mrb[0].mxu0
    %v1214 = vadd.f32 %v1122, %v1213
    %v1215 = vpop.f32.mrb[0].mxu0
    %1216 = vdwg.mxu0
    %1217 = vmatprep.subr.mxu0 0.0
    %v1218 = vand.u32 %v709, 4294901760
    %1219 = vmatpush1.msra.mxu0 %v1218
    %1220 = vmatprep.subr.mxu0 0.0
    %v1221 = vand.u32 %v710, 4294901760
    %1222 = vmatpush1.msra.mxu0 %v1221
    %1223 = vmatprep.subr.mxu0 0.0
    %v1224 = vand.u32 %v743, 4294901760
    %1225 = vmatpush1.msra.mxu0 %v1224
    %1226 = vmatprep.subr.mxu0 0.0
    %1227 = vmatpush1.msra.mxu0 0.0
    %1228 = vmatprep.subr.mxu0 0.0
    %1229 = vmatpush1.msra.mxu0 0.0
    %1230 = vmatprep.subr.mxu0 0.0
    %1231 = vmatpush1.msra.mxu0 0.0
    %1232 = vmatprep.subr.mxu0 0.0
    %1233 = vmatpush1.msra.mxu0 0.0
    %1234 = vmatprep.subr.mxu0 0.0
    %1235 = vmatpush1.msra.mxu0 0.0
    %1236 = vmatprep.subr.mxu0 0.0
    %1237 = vmatpush1.msra.mxu0 0.0
    %1238 = vmatprep.subr.mxu0 0.0
    %1239 = vmatpush1.msra.mxu0 0.0
    %1240 = vmatprep.subr.mxu0 0.0
    %1241 = vmatpush1.msra.mxu0 0.0
    %1242 = vmatprep.subr.mxu0 0.0
    %1243 = vmatpush1.msra.mxu0 0.0
    %1244 = vmatprep.subr.mxu0 0.0
    %1245 = vmatpush1.msra.mxu0 0.0
    %1246 = vmatprep.subr.mxu0 0.0
    %1247 = vmatpush1.msra.mxu0 0.0
    %1248 = vmatprep.subr.mxu0 0.0
    %1249 = vmatpush1.msra.mxu0 0.0
    %1250 = vmatprep.subr.mxu0 0.0
    %1251 = vmatpush1.msra.mxu0 0.0
    %1252 = vmatprep.subr.mxu0 0.0
    %1253 = vmatpush1.msra.mxu0 0.0
    %1254 = vmatprep.subr.mxu0 0.0
    %1255 = vmatpush1.msra.mxu0 0.0
    %1256 = vmatprep.subr.mxu0 0.0
    %1257 = vmatpush1.msra.mxu0 0.0
    %1258 = vmatprep.subr.mxu0 0.0
    %1259 = vmatpush1.msra.mxu0 0.0
    %1260 = vmatprep.subr.mxu0 0.0
    %1261 = vmatpush1.msra.mxu0 0.0
    %1262 = vmatprep.subr.mxu0 0.0
    %1263 = vmatpush1.msra.mxu0 0.0
    %1264 = vmatprep.subr.mxu0 0.0
    %1265 = vmatpush1.msra.mxu0 0.0
    %1266 = vmatprep.subr.mxu0 0.0
    %1267 = vmatpush1.msra.mxu0 0.0
    %1268 = vmatprep.subr.mxu0 0.0
    %1269 = vmatpush1.msra.mxu0 0.0
    %1270 = vmatprep.subr.mxu0 0.0
    %1271 = vmatpush1.msra.mxu0 0.0
    %1272 = vmatprep.subr.mxu0 0.0
    %1273 = vmatpush1.msra.mxu0 0.0
    %1274 = vmatprep.subr.mxu0 0.0
    %1275 = vmatpush1.msra.mxu0 0.0
    %1276 = vmatprep.subr.mxu0 0.0
    %1277 = vmatpush1.msra.mxu0 0.0
    %1278 = vmatprep.subr.mxu0 0.0
    %1279 = vmatpush1.msra.mxu0 0.0
    %1280 = vmatprep.subr.mxu0 0.0
    %1281 = vmatpush1.msra.mxu0 0.0
    %1282 = vmatprep.subr.mxu0 0.0
    %1283 = vmatpush1.msra.mxu0 0.0
    %1284 = vmatprep.mubr.f32.mxu0 0.0
    %v1285 = vand.u32 %v734, 4294901760
    %1286 = vmatmul.mubr.f32.gmra.mrb[0].mxu0 %v1285
    %v1287 = vpop.f32.mrb[0].mxu0
    %v1288 = vadd.f32 %v1202, %v1287
    %v1289 = vpop.f32.mrb[0].mxu0
    %1290 = vmatprep.mubr.f32.mxu0 0.0
    %v1291 = vand.u32 %v737, 4294901760
    %1292 = vmatmul.mubr.f32.gmra.mrb[0].mxu0 %v1291
    %v1293 = vpop.f32.mrb[0].mxu0
    %v1294 = vadd.f32 %v1208, %v1293
    %v1295 = vpop.f32.mrb[0].mxu0
    %1296 = vmatprep.mubr.f32.mxu0 0.0
    %v1297 = vand.u32 %v740, 4294901760
    %1298 = vmatmul.mubr.f32.gmra.mrb[0].mxu0 %v1297
    %v1299 = vpop.f32.mrb[0].mxu0
    %v1300 = vadd.f32 %v1214, %v1299
    %v1301 = vpop.f32.mrb[0].mxu0
    %1302 = vdwg.mxu0
    %v1303 = vtanh.pop %v1288
    %v1304 = vtanh.pop %v1294
    %v1305 = vtanh.pop %v1300
    %v1306 = vadd.f32 %v1303, %v113
    %v1307 = vadd.f32 %v1304, %v114
    %v1308 = vadd.f32 %v1305, %v115
    %s1309 = scalar_lea.vmem %s4, 24
    %v1310 = vld [vmem:[%s1309] sm:$0xff]
    %v1311 = vld [vmem:[%s1309 + $0x8] sm:$0xff]
    %v1312 = vld [vmem:[%s1309 + $0x10] sm:$0xf]
    %s1313 = scalar_lea.vmem %s5, 24
    %v1314 = vld [vmem:[%s1313] sm:$0xff]
    %v1315 = vld [vmem:[%s1313 + $0x8] sm:$0xff]
    %v1316 = vld [vmem:[%s1313 + $0x10] sm:$0xf]
    %1318 = vset.pattern.permute.xlu0 0
    %1319 = vperm.xlu0 %1318, %v1314
    %v1320 = vpop.permute.xlu0 %1319
    %1323 = vset.pattern.permute.xlu0 0
    %1324 = vperm.xlu0 %1323, %v1315
    %v1325 = vpop.permute.xlu0 %1324
    %1328 = vset.pattern.permute.xlu0 0
    %1329 = vperm.xlu0 %1328, %v1316
    %v1330 = vpop.permute.xlu0 %1329
    %v1333 = vsel %vm137, %v1310, 0
    %v1336 = vsel %vm137, %v1311, 0
    %v1339 = vsel %vm137, %v1312, 0
    %v1342 = vsel %vm147, %v1308, 0
    %1344 = vmatprep.subr.mxu0 0.0
    %v1345 = vand.u32 %v1306, 4294901760
    %1346 = vmatpush1.msra.mxu0 %v1345
    %1347 = vmatprep.subr.mxu0 0.0
    %v1348 = vand.u32 %v1307, 4294901760
    %1349 = vmatpush1.msra.mxu0 %v1348
    %1350 = vmatprep.subr.mxu0 0.0
    %v1351 = vand.u32 %v1342, 4294901760
    %1352 = vmatpush1.msra.mxu0 %v1351
    %1353 = vmatprep.subr.mxu0 0.0
    %1354 = vmatpush1.msra.mxu0 0.0
    %1355 = vmatprep.subr.mxu0 0.0
    %1356 = vmatpush1.msra.mxu0 0.0
    %1357 = vmatprep.subr.mxu0 0.0
    %1358 = vmatpush1.msra.mxu0 0.0
    %1359 = vmatprep.subr.mxu0 0.0
    %1360 = vmatpush1.msra.mxu0 0.0
    %1361 = vmatprep.subr.mxu0 0.0
    %1362 = vmatpush1.msra.mxu0 0.0
    %1363 = vmatprep.subr.mxu0 0.0
    %1364 = vmatpush1.msra.mxu0 0.0
    %1365 = vmatprep.subr.mxu0 0.0
    %1366 = vmatpush1.msra.mxu0 0.0
    %1367 = vmatprep.subr.mxu0 0.0
    %1368 = vmatpush1.msra.mxu0 0.0
    %1369 = vmatprep.subr.mxu0 0.0
    %1370 = vmatpush1.msra.mxu0 0.0
    %1371 = vmatprep.subr.mxu0 0.0
    %1372 = vmatpush1.msra.mxu0 0.0
    %1373 = vmatprep.subr.mxu0 0.0
    %1374 = vmatpush1.msra.mxu0 0.0
    %1375 = vmatprep.subr.mxu0 0.0
    %1376 = vmatpush1.msra.mxu0 0.0
    %1377 = vmatprep.subr.mxu0 0.0
    %1378 = vmatpush1.msra.mxu0 0.0
    %1379 = vmatprep.subr.mxu0 0.0
    %1380 = vmatpush1.msra.mxu0 0.0
    %1381 = vmatprep.subr.mxu0 0.0
    %1382 = vmatpush1.msra.mxu0 0.0
    %1383 = vmatprep.subr.mxu0 0.0
    %1384 = vmatpush1.msra.mxu0 0.0
    %1385 = vmatprep.subr.mxu0 0.0
    %1386 = vmatpush1.msra.mxu0 0.0
    %1387 = vmatprep.subr.mxu0 0.0
    %1388 = vmatpush1.msra.mxu0 0.0
    %1389 = vmatprep.subr.mxu0 0.0
    %1390 = vmatpush1.msra.mxu0 0.0
    %1391 = vmatprep.subr.mxu0 0.0
    %1392 = vmatpush1.msra.mxu0 0.0
    %1393 = vmatprep.subr.mxu0 0.0
    %1394 = vmatpush1.msra.mxu0 0.0
    %1395 = vmatprep.subr.mxu0 0.0
    %1396 = vmatpush1.msra.mxu0 0.0
    %1397 = vmatprep.subr.mxu0 0.0
    %1398 = vmatpush1.msra.mxu0 0.0
    %1399 = vmatprep.subr.mxu0 0.0
    %1400 = vmatpush1.msra.mxu0 0.0
    %1401 = vmatprep.subr.mxu0 0.0
    %1402 = vmatpush1.msra.mxu0 0.0
    %1403 = vmatprep.subr.mxu0 0.0
    %1404 = vmatpush1.msra.mxu0 0.0
    %1405 = vmatprep.subr.mxu0 0.0
    %1406 = vmatpush1.msra.mxu0 0.0
    %1407 = vmatprep.subr.mxu0 0.0
    %1408 = vmatpush1.msra.mxu0 0.0
    %1409 = vmatprep.subr.mxu0 0.0
    %1410 = vmatpush1.msra.mxu0 0.0
    %1411 = vmatprep.mubr.f32.mxu0 0.0
    %v1412 = vand.u32 %v1333, 4294901760
    %v1413 = vsub.f32 %v1333, %v1412
    %v1414 = vand.u32 %v1413, 4294901760
    %v1415 = vsub.f32 %v1413, %v1414
    %v1416 = vand.u32 %v1415, 4294901760
    %1417 = vmatmul.mubr.f32.gmra.mrb[0].mxu0 %v1416
    %v1418 = vpop.f32.mrb[0].mxu0
    %v1419 = vadd.f32 %v1320, %v1418
    %v1420 = vpop.f32.mrb[0].mxu0
    %1421 = vmatprep.mubr.f32.mxu0 0.0
    %v1422 = vand.u32 %v1336, 4294901760
    %v1423 = vsub.f32 %v1336, %v1422
    %v1424 = vand.u32 %v1423, 4294901760
    %v1425 = vsub.f32 %v1423, %v1424
    %v1426 = vand.u32 %v1425, 4294901760
    %1427 = vmatmul.mubr.f32.gmra.mrb[0].mxu0 %v1426
    %v1428 = vpop.f32.mrb[0].mxu0
    %v1429 = vadd.f32 %v1325, %v1428
    %v1430 = vpop.f32.mrb[0].mxu0
    %1431 = vmatprep.mubr.f32.mxu0 0.0
    %v1432 = vand.u32 %v1339, 4294901760
    %v1433 = vsub.f32 %v1339, %v1432
    %v1434 = vand.u32 %v1433, 4294901760
    %v1435 = vsub.f32 %v1433, %v1434
    %v1436 = vand.u32 %v1435, 4294901760
    %1437 = vmatmul.mubr.f32.gmra.mrb[0].mxu0 %v1436
    %v1438 = vpop.f32.mrb[0].mxu0
    %v1439 = vadd.f32 %v1330, %v1438
    %v1440 = vpop.f32.mrb[0].mxu0
    %1441 = vdwg.mxu0
    %1442 = vmatprep.subr.mxu0 0.0
    %v1443 = vand.u32 %v1306, 4294901760
    %v1444 = vsub.f32 %v1306, %v1443
    %v1445 = vand.u32 %v1444, 4294901760
    %v1446 = vsub.f32 %v1444, %v1445
    %v1447 = vand.u32 %v1446, 4294901760
    %1448 = vmatpush1.msra.mxu0 %v1447
    %1449 = vmatprep.subr.mxu0 0.0
    %v1450 = vand.u32 %v1307, 4294901760
    %v1451 = vsub.f32 %v1307, %v1450
    %v1452 = vand.u32 %v1451, 4294901760
    %v1453 = vsub.f32 %v1451, %v1452
    %v1454 = vand.u32 %v1453, 4294901760
    %1455 = vmatpush1.msra.mxu0 %v1454
    %1456 = vmatprep.subr.mxu0 0.0
    %v1457 = vand.u32 %v1342, 4294901760
    %v1458 = vsub.f32 %v1342, %v1457
    %v1459 = vand.u32 %v1458, 4294901760
    %v1460 = vsub.f32 %v1458, %v1459
    %v1461 = vand.u32 %v1460, 4294901760
    %1462 = vmatpush1.msra.mxu0 %v1461
    %1463 = vmatprep.subr.mxu0 0.0
    %1464 = vmatpush1.msra.mxu0 0.0
    %1465 = vmatprep.subr.mxu0 0.0
    %1466 = vmatpush1.msra.mxu0 0.0
    %1467 = vmatprep.subr.mxu0 0.0
    %1468 = vmatpush1.msra.mxu0 0.0
    %1469 = vmatprep.subr.mxu0 0.0
    %1470 = vmatpush1.msra.mxu0 0.0
    %1471 = vmatprep.subr.mxu0 0.0
    %1472 = vmatpush1.msra.mxu0 0.0
    %1473 = vmatprep.subr.mxu0 0.0
    %1474 = vmatpush1.msra.mxu0 0.0
    %1475 = vmatprep.subr.mxu0 0.0
    %1476 = vmatpush1.msra.mxu0 0.0
    %1477 = vmatprep.subr.mxu0 0.0
    %1478 = vmatpush1.msra.mxu0 0.0
    %1479 = vmatprep.subr.mxu0 0.0
    %1480 = vmatpush1.msra.mxu0 0.0
    %1481 = vmatprep.subr.mxu0 0.0
    %1482 = vmatpush1.msra.mxu0 0.0
    %1483 = vmatprep.subr.mxu0 0.0
    %1484 = vmatpush1.msra.mxu0 0.0
    %1485 = vmatprep.subr.mxu0 0.0
    %1486 = vmatpush1.msra.mxu0 0.0
    %1487 = vmatprep.subr.mxu0 0.0
    %1488 = vmatpush1.msra.mxu0 0.0
    %1489 = vmatprep.subr.mxu0 0.0
    %1490 = vmatpush1.msra.mxu0 0.0
    %1491 = vmatprep.subr.mxu0 0.0
    %1492 = vmatpush1.msra.mxu0 0.0
    %1493 = vmatprep.subr.mxu0 0.0
    %1494 = vmatpush1.msra.mxu0 0.0
    %1495 = vmatprep.subr.mxu0 0.0
    %1496 = vmatpush1.msra.mxu0 0.0
    %1497 = vmatprep.subr.mxu0 0.0
    %1498 = vmatpush1.msra.mxu0 0.0
    %1499 = vmatprep.subr.mxu0 0.0
    %1500 = vmatpush1.msra.mxu0 0.0
    %1501 = vmatprep.subr.mxu0 0.0
    %1502 = vmatpush1.msra.mxu0 0.0
    %1503 = vmatprep.subr.mxu0 0.0
    %1504 = vmatpush1.msra.mxu0 0.0
    %1505 = vmatprep.subr.mxu0 0.0
    %1506 = vmatpush1.msra.mxu0 0.0
    %1507 = vmatprep.subr.mxu0 0.0
    %1508 = vmatpush1.msra.mxu0 0.0
    %1509 = vmatprep.subr.mxu0 0.0
    %1510 = vmatpush1.msra.mxu0 0.0
    %1511 = vmatprep.subr.mxu0 0.0
    %1512 = vmatpush1.msra.mxu0 0.0
    %1513 = vmatprep.subr.mxu0 0.0
    %1514 = vmatpush1.msra.mxu0 0.0
    %1515 = vmatprep.subr.mxu0 0.0
    %1516 = vmatpush1.msra.mxu0 0.0
    %1517 = vmatprep.subr.mxu0 0.0
    %1518 = vmatpush1.msra.mxu0 0.0
    %1519 = vmatprep.subr.mxu0 0.0
    %1520 = vmatpush1.msra.mxu0 0.0
    %1521 = vmatprep.mubr.f32.mxu0 0.0
    %v1522 = vand.u32 %v1333, 4294901760
    %1523 = vmatmul.mubr.f32.gmra.mrb[0].mxu0 %v1522
    %v1524 = vpop.f32.mrb[0].mxu0
    %v1525 = vadd.f32 %v1419, %v1524
    %v1526 = vpop.f32.mrb[0].mxu0
    %1527 = vmatprep.mubr.f32.mxu0 0.0
    %v1528 = vand.u32 %v1336, 4294901760
    %1529 = vmatmul.mubr.f32.gmra.mrb[0].mxu0 %v1528
    %v1530 = vpop.f32.mrb[0].mxu0
    %v1531 = vadd.f32 %v1429, %v1530
    %v1532 = vpop.f32.mrb[0].mxu0
    %1533 = vmatprep.mubr.f32.mxu0 0.0
    %v1534 = vand.u32 %v1339, 4294901760
    %1535 = vmatmul.mubr.f32.gmra.mrb[0].mxu0 %v1534
    %v1536 = vpop.f32.mrb[0].mxu0
    %v1537 = vadd.f32 %v1439, %v1536
    %v1538 = vpop.f32.mrb[0].mxu0
    %1539 = vdwg.mxu0
    %1540 = vmatprep.subr.mxu0 0.0
    %v1541 = vand.u32 %v1306, 4294901760
    %v1542 = vsub.f32 %v1306, %v1541
    %1543 = vmatpush1.msra.mxu0 %v1542
    %1544 = vmatprep.subr.mxu0 0.0
    %v1545 = vand.u32 %v1307, 4294901760
    %v1546 = vsub.f32 %v1307, %v1545
    %1547 = vmatpush1.msra.mxu0 %v1546
    %1548 = vmatprep.subr.mxu0 0.0
    %v1549 = vand.u32 %v1342, 4294901760
    %v1550 = vsub.f32 %v1342, %v1549
    %1551 = vmatpush1.msra.mxu0 %v1550
    %1552 = vmatprep.subr.mxu0 0.0
    %1553 = vmatpush1.msra.mxu0 0.0
    %1554 = vmatprep.subr.mxu0 0.0
    %1555 = vmatpush1.msra.mxu0 0.0
    %1556 = vmatprep.subr.mxu0 0.0
    %1557 = vmatpush1.msra.mxu0 0.0
    %1558 = vmatprep.subr.mxu0 0.0
    %1559 = vmatpush1.msra.mxu0 0.0
    %1560 = vmatprep.subr.mxu0 0.0
    %1561 = vmatpush1.msra.mxu0 0.0
    %1562 = vmatprep.subr.mxu0 0.0
    %1563 = vmatpush1.msra.mxu0 0.0
    %1564 = vmatprep.subr.mxu0 0.0
    %1565 = vmatpush1.msra.mxu0 0.0
    %1566 = vmatprep.subr.mxu0 0.0
    %1567 = vmatpush1.msra.mxu0 0.0
    %1568 = vmatprep.subr.mxu0 0.0
    %1569 = vmatpush1.msra.mxu0 0.0
    %1570 = vmatprep.subr.mxu0 0.0
    %1571 = vmatpush1.msra.mxu0 0.0
    %1572 = vmatprep.subr.mxu0 0.0
    %1573 = vmatpush1.msra.mxu0 0.0
    %1574 = vmatprep.subr.mxu0 0.0
    %1575 = vmatpush1.msra.mxu0 0.0
    %1576 = vmatprep.subr.mxu0 0.0
    %1577 = vmatpush1.msra.mxu0 0.0
    %1578 = vmatprep.subr.mxu0 0.0
    %1579 = vmatpush1.msra.mxu0 0.0
    %1580 = vmatprep.subr.mxu0 0.0
    %1581 = vmatpush1.msra.mxu0 0.0
    %1582 = vmatprep.subr.mxu0 0.0
    %1583 = vmatpush1.msra.mxu0 0.0
    %1584 = vmatprep.subr.mxu0 0.0
    %1585 = vmatpush1.msra.mxu0 0.0
    %1586 = vmatprep.subr.mxu0 0.0
    %1587 = vmatpush1.msra.mxu0 0.0
    %1588 = vmatprep.subr.mxu0 0.0
    %1589 = vmatpush1.msra.mxu0 0.0
    %1590 = vmatprep.subr.mxu0 0.0
    %1591 = vmatpush1.msra.mxu0 0.0
    %1592 = vmatprep.subr.mxu0 0.0
    %1593 = vmatpush1.msra.mxu0 0.0
    %1594 = vmatprep.subr.mxu0 0.0
    %1595 = vmatpush1.msra.mxu0 0.0
    %1596 = vmatprep.subr.mxu0 0.0
    %1597 = vmatpush1.msra.mxu0 0.0
    %1598 = vmatprep.subr.mxu0 0.0
    %1599 = vmatpush1.msra.mxu0 0.0
    %1600 = vmatprep.subr.mxu0 0.0
    %1601 = vmatpush1.msra.mxu0 0.0
    %1602 = vmatprep.subr.mxu0 0.0
    %1603 = vmatpush1.msra.mxu0 0.0
    %1604 = vmatprep.subr.mxu0 0.0
    %1605 = vmatpush1.msra.mxu0 0.0
    %1606 = vmatprep.subr.mxu0 0.0
    %1607 = vmatpush1.msra.mxu0 0.0
    %1608 = vmatprep.subr.mxu0 0.0
    %1609 = vmatpush1.msra.mxu0 0.0
    %1610 = vmatprep.mubr.f32.mxu0 0.0
    %v1611 = vand.u32 %v1333, 4294901760
    %v1612 = vsub.f32 %v1333, %v1611
    %1613 = vmatmul.mubr.f32.gmra.mrb[0].mxu0 %v1612
    %v1614 = vpop.f32.mrb[0].mxu0
    %v1615 = vadd.f32 %v1525, %v1614
    %v1616 = vpop.f32.mrb[0].mxu0
    %1617 = vmatprep.mubr.f32.mxu0 0.0
    %v1618 = vand.u32 %v1336, 4294901760
    %v1619 = vsub.f32 %v1336, %v1618
    %1620 = vmatmul.mubr.f32.gmra.mrb[0].mxu0 %v1619
    %v1621 = vpop.f32.mrb[0].mxu0
    %v1622 = vadd.f32 %v1531, %v1621
    %v1623 = vpop.f32.mrb[0].mxu0
    %1624 = vmatprep.mubr.f32.mxu0 0.0
    %v1625 = vand.u32 %v1339, 4294901760
    %v1626 = vsub.f32 %v1339, %v1625
    %1627 = vmatmul.mubr.f32.gmra.mrb[0].mxu0 %v1626
    %v1628 = vpop.f32.mrb[0].mxu0
    %v1629 = vadd.f32 %v1537, %v1628
    %v1630 = vpop.f32.mrb[0].mxu0
    %1631 = vdwg.mxu0
    %1632 = vmatprep.subr.mxu0 0.0
    %v1633 = vand.u32 %v1306, 4294901760
    %1634 = vmatpush1.msra.mxu0 %v1633
    %1635 = vmatprep.subr.mxu0 0.0
    %v1636 = vand.u32 %v1307, 4294901760
    %1637 = vmatpush1.msra.mxu0 %v1636
    %1638 = vmatprep.subr.mxu0 0.0
    %v1639 = vand.u32 %v1342, 4294901760
    %1640 = vmatpush1.msra.mxu0 %v1639
    %1641 = vmatprep.subr.mxu0 0.0
    %1642 = vmatpush1.msra.mxu0 0.0
    %1643 = vmatprep.subr.mxu0 0.0
    %1644 = vmatpush1.msra.mxu0 0.0
    %1645 = vmatprep.subr.mxu0 0.0
    %1646 = vmatpush1.msra.mxu0 0.0
    %1647 = vmatprep.subr.mxu0 0.0
    %1648 = vmatpush1.msra.mxu0 0.0
    %1649 = vmatprep.subr.mxu0 0.0
    %1650 = vmatpush1.msra.mxu0 0.0
    %1651 = vmatprep.subr.mxu0 0.0
    %1652 = vmatpush1.msra.mxu0 0.0
    %1653 = vmatprep.subr.mxu0 0.0
    %1654 = vmatpush1.msra.mxu0 0.0
    %1655 = vmatprep.subr.mxu0 0.0
    %1656 = vmatpush1.msra.mxu0 0.0
    %1657 = vmatprep.subr.mxu0 0.0
    %1658 = vmatpush1.msra.mxu0 0.0
    %1659 = vmatprep.subr.mxu0 0.0
    %1660 = vmatpush1.msra.mxu0 0.0
    %1661 = vmatprep.subr.mxu0 0.0
    %1662 = vmatpush1.msra.mxu0 0.0
    %1663 = vmatprep.subr.mxu0 0.0
    %1664 = vmatpush1.msra.mxu0 0.0
    %1665 = vmatprep.subr.mxu0 0.0
    %1666 = vmatpush1.msra.mxu0 0.0
    %1667 = vmatprep.subr.mxu0 0.0
    %1668 = vmatpush1.msra.mxu0 0.0
    %1669 = vmatprep.subr.mxu0 0.0
    %1670 = vmatpush1.msra.mxu0 0.0
    %1671 = vmatprep.subr.mxu0 0.0
    %1672 = vmatpush1.msra.mxu0 0.0
    %1673 = vmatprep.subr.mxu0 0.0
    %1674 = vmatpush1.msra.mxu0 0.0
    %1675 = vmatprep.subr.mxu0 0.0
    %1676 = vmatpush1.msra.mxu0 0.0
    %1677 = vmatprep.subr.mxu0 0.0
    %1678 = vmatpush1.msra.mxu0 0.0
    %1679 = vmatprep.subr.mxu0 0.0
    %1680 = vmatpush1.msra.mxu0 0.0
    %1681 = vmatprep.subr.mxu0 0.0
    %1682 = vmatpush1.msra.mxu0 0.0
    %1683 = vmatprep.subr.mxu0 0.0
    %1684 = vmatpush1.msra.mxu0 0.0
    %1685 = vmatprep.subr.mxu0 0.0
    %1686 = vmatpush1.msra.mxu0 0.0
    %1687 = vmatprep.subr.mxu0 0.0
    %1688 = vmatpush1.msra.mxu0 0.0
    %1689 = vmatprep.subr.mxu0 0.0
    %1690 = vmatpush1.msra.mxu0 0.0
    %1691 = vmatprep.subr.mxu0 0.0
    %1692 = vmatpush1.msra.mxu0 0.0
    %1693 = vmatprep.subr.mxu0 0.0
    %1694 = vmatpush1.msra.mxu0 0.0
    %1695 = vmatprep.subr.mxu0 0.0
    %1696 = vmatpush1.msra.mxu0 0.0
    %1697 = vmatprep.subr.mxu0 0.0
    %1698 = vmatpush1.msra.mxu0 0.0
    %1699 = vmatprep.mubr.f32.mxu0 0.0
    %v1700 = vand.u32 %v1333, 4294901760
    %v1701 = vsub.f32 %v1333, %v1700
    %v1702 = vand.u32 %v1701, 4294901760
    %1703 = vmatmul.mubr.f32.gmra.mrb[0].mxu0 %v1702
    %v1704 = vpop.f32.mrb[0].mxu0
    %v1705 = vadd.f32 %v1615, %v1704
    %v1706 = vpop.f32.mrb[0].mxu0
    %1707 = vmatprep.mubr.f32.mxu0 0.0
    %v1708 = vand.u32 %v1336, 4294901760
    %v1709 = vsub.f32 %v1336, %v1708
    %v1710 = vand.u32 %v1709, 4294901760
    %1711 = vmatmul.mubr.f32.gmra.mrb[0].mxu0 %v1710
    %v1712 = vpop.f32.mrb[0].mxu0
    %v1713 = vadd.f32 %v1622, %v1712
    %v1714 = vpop.f32.mrb[0].mxu0
    %1715 = vmatprep.mubr.f32.mxu0 0.0
    %v1716 = vand.u32 %v1339, 4294901760
    %v1717 = vsub.f32 %v1339, %v1716
    %v1718 = vand.u32 %v1717, 4294901760
    %1719 = vmatmul.mubr.f32.gmra.mrb[0].mxu0 %v1718
    %v1720 = vpop.f32.mrb[0].mxu0
    %v1721 = vadd.f32 %v1629, %v1720
    %v1722 = vpop.f32.mrb[0].mxu0
    %1723 = vdwg.mxu0
    %1724 = vmatprep.subr.mxu0 0.0
    %v1725 = vand.u32 %v1306, 4294901760
    %v1726 = vsub.f32 %v1306, %v1725
    %v1727 = vand.u32 %v1726, 4294901760
    %1728 = vmatpush1.msra.mxu0 %v1727
    %1729 = vmatprep.subr.mxu0 0.0
    %v1730 = vand.u32 %v1307, 4294901760
    %v1731 = vsub.f32 %v1307, %v1730
    %v1732 = vand.u32 %v1731, 4294901760
    %1733 = vmatpush1.msra.mxu0 %v1732
    %1734 = vmatprep.subr.mxu0 0.0
    %v1735 = vand.u32 %v1342, 4294901760
    %v1736 = vsub.f32 %v1342, %v1735
    %v1737 = vand.u32 %v1736, 4294901760
    %1738 = vmatpush1.msra.mxu0 %v1737
    %1739 = vmatprep.subr.mxu0 0.0
    %1740 = vmatpush1.msra.mxu0 0.0
    %1741 = vmatprep.subr.mxu0 0.0
    %1742 = vmatpush1.msra.mxu0 0.0
    %1743 = vmatprep.subr.mxu0 0.0
    %1744 = vmatpush1.msra.mxu0 0.0
    %1745 = vmatprep.subr.mxu0 0.0
    %1746 = vmatpush1.msra.mxu0 0.0
    %1747 = vmatprep.subr.mxu0 0.0
    %1748 = vmatpush1.msra.mxu0 0.0
    %1749 = vmatprep.subr.mxu0 0.0
    %1750 = vmatpush1.msra.mxu0 0.0
    %1751 = vmatprep.subr.mxu0 0.0
    %1752 = vmatpush1.msra.mxu0 0.0
    %1753 = vmatprep.subr.mxu0 0.0
    %1754 = vmatpush1.msra.mxu0 0.0
    %1755 = vmatprep.subr.mxu0 0.0
    %1756 = vmatpush1.msra.mxu0 0.0
    %1757 = vmatprep.subr.mxu0 0.0
    %1758 = vmatpush1.msra.mxu0 0.0
    %1759 = vmatprep.subr.mxu0 0.0
    %1760 = vmatpush1.msra.mxu0 0.0
    %1761 = vmatprep.subr.mxu0 0.0
    %1762 = vmatpush1.msra.mxu0 0.0
    %1763 = vmatprep.subr.mxu0 0.0
    %1764 = vmatpush1.msra.mxu0 0.0
    %1765 = vmatprep.subr.mxu0 0.0
    %1766 = vmatpush1.msra.mxu0 0.0
    %1767 = vmatprep.subr.mxu0 0.0
    %1768 = vmatpush1.msra.mxu0 0.0
    %1769 = vmatprep.subr.mxu0 0.0
    %1770 = vmatpush1.msra.mxu0 0.0
    %1771 = vmatprep.subr.mxu0 0.0
    %1772 = vmatpush1.msra.mxu0 0.0
    %1773 = vmatprep.subr.mxu0 0.0
    %1774 = vmatpush1.msra.mxu0 0.0
    %1775 = vmatprep.subr.mxu0 0.0
    %1776 = vmatpush1.msra.mxu0 0.0
    %1777 = vmatprep.subr.mxu0 0.0
    %1778 = vmatpush1.msra.mxu0 0.0
    %1779 = vmatprep.subr.mxu0 0.0
    %1780 = vmatpush1.msra.mxu0 0.0
    %1781 = vmatprep.subr.mxu0 0.0
    %1782 = vmatpush1.msra.mxu0 0.0
    %1783 = vmatprep.subr.mxu0 0.0
    %1784 = vmatpush1.msra.mxu0 0.0
    %1785 = vmatprep.subr.mxu0 0.0
    %1786 = vmatpush1.msra.mxu0 0.0
    %1787 = vmatprep.subr.mxu0 0.0
    %1788 = vmatpush1.msra.mxu0 0.0
    %1789 = vmatprep.subr.mxu0 0.0
    %1790 = vmatpush1.msra.mxu0 0.0
    %1791 = vmatprep.subr.mxu0 0.0
    %1792 = vmatpush1.msra.mxu0 0.0
    %1793 = vmatprep.subr.mxu0 0.0
    %1794 = vmatpush1.msra.mxu0 0.0
    %1795 = vmatprep.subr.mxu0 0.0
    %1796 = vmatpush1.msra.mxu0 0.0
    %1797 = vmatprep.mubr.f32.mxu0 0.0
    %v1798 = vand.u32 %v1333, 4294901760
    %1799 = vmatmul.mubr.f32.gmra.mrb[0].mxu0 %v1798
    %v1800 = vpop.f32.mrb[0].mxu0
    %v1801 = vadd.f32 %v1705, %v1800
    %v1802 = vpop.f32.mrb[0].mxu0
    %1803 = vmatprep.mubr.f32.mxu0 0.0
    %v1804 = vand.u32 %v1336, 4294901760
    %1805 = vmatmul.mubr.f32.gmra.mrb[0].mxu0 %v1804
    %v1806 = vpop.f32.mrb[0].mxu0
    %v1807 = vadd.f32 %v1713, %v1806
    %v1808 = vpop.f32.mrb[0].mxu0
    %1809 = vmatprep.mubr.f32.mxu0 0.0
    %v1810 = vand.u32 %v1339, 4294901760
    %1811 = vmatmul.mubr.f32.gmra.mrb[0].mxu0 %v1810
    %v1812 = vpop.f32.mrb[0].mxu0
    %v1813 = vadd.f32 %v1721, %v1812
    %v1814 = vpop.f32.mrb[0].mxu0
    %1815 = vdwg.mxu0
    %1816 = vmatprep.subr.mxu0 0.0
    %v1817 = vand.u32 %v1306, 4294901760
    %1818 = vmatpush1.msra.mxu0 %v1817
    %1819 = vmatprep.subr.mxu0 0.0
    %v1820 = vand.u32 %v1307, 4294901760
    %1821 = vmatpush1.msra.mxu0 %v1820
    %1822 = vmatprep.subr.mxu0 0.0
    %v1823 = vand.u32 %v1342, 4294901760
    %1824 = vmatpush1.msra.mxu0 %v1823
    %1825 = vmatprep.subr.mxu0 0.0
    %1826 = vmatpush1.msra.mxu0 0.0
    %1827 = vmatprep.subr.mxu0 0.0
    %1828 = vmatpush1.msra.mxu0 0.0
    %1829 = vmatprep.subr.mxu0 0.0
    %1830 = vmatpush1.msra.mxu0 0.0
    %1831 = vmatprep.subr.mxu0 0.0
    %1832 = vmatpush1.msra.mxu0 0.0
    %1833 = vmatprep.subr.mxu0 0.0
    %1834 = vmatpush1.msra.mxu0 0.0
    %1835 = vmatprep.subr.mxu0 0.0
    %1836 = vmatpush1.msra.mxu0 0.0
    %1837 = vmatprep.subr.mxu0 0.0
    %1838 = vmatpush1.msra.mxu0 0.0
    %1839 = vmatprep.subr.mxu0 0.0
    %1840 = vmatpush1.msra.mxu0 0.0
    %1841 = vmatprep.subr.mxu0 0.0
    %1842 = vmatpush1.msra.mxu0 0.0
    %1843 = vmatprep.subr.mxu0 0.0
    %1844 = vmatpush1.msra.mxu0 0.0
    %1845 = vmatprep.subr.mxu0 0.0
    %1846 = vmatpush1.msra.mxu0 0.0
    %1847 = vmatprep.subr.mxu0 0.0
    %1848 = vmatpush1.msra.mxu0 0.0
    %1849 = vmatprep.subr.mxu0 0.0
    %1850 = vmatpush1.msra.mxu0 0.0
    %1851 = vmatprep.subr.mxu0 0.0
    %1852 = vmatpush1.msra.mxu0 0.0
    %1853 = vmatprep.subr.mxu0 0.0
    %1854 = vmatpush1.msra.mxu0 0.0
    %1855 = vmatprep.subr.mxu0 0.0
    %1856 = vmatpush1.msra.mxu0 0.0
    %1857 = vmatprep.subr.mxu0 0.0
    %1858 = vmatpush1.msra.mxu0 0.0
    %1859 = vmatprep.subr.mxu0 0.0
    %1860 = vmatpush1.msra.mxu0 0.0
    %1861 = vmatprep.subr.mxu0 0.0
    %1862 = vmatpush1.msra.mxu0 0.0
    %1863 = vmatprep.subr.mxu0 0.0
    %1864 = vmatpush1.msra.mxu0 0.0
    %1865 = vmatprep.subr.mxu0 0.0
    %1866 = vmatpush1.msra.mxu0 0.0
    %1867 = vmatprep.subr.mxu0 0.0
    %1868 = vmatpush1.msra.mxu0 0.0
    %1869 = vmatprep.subr.mxu0 0.0
    %1870 = vmatpush1.msra.mxu0 0.0
    %1871 = vmatprep.subr.mxu0 0.0
    %1872 = vmatpush1.msra.mxu0 0.0
    %1873 = vmatprep.subr.mxu0 0.0
    %1874 = vmatpush1.msra.mxu0 0.0
    %1875 = vmatprep.subr.mxu0 0.0
    %1876 = vmatpush1.msra.mxu0 0.0
    %1877 = vmatprep.subr.mxu0 0.0
    %1878 = vmatpush1.msra.mxu0 0.0
    %1879 = vmatprep.subr.mxu0 0.0
    %1880 = vmatpush1.msra.mxu0 0.0
    %1881 = vmatprep.subr.mxu0 0.0
    %1882 = vmatpush1.msra.mxu0 0.0
    %1883 = vmatprep.mubr.f32.mxu0 0.0
    %v1884 = vand.u32 %v1333, 4294901760
    %1885 = vmatmul.mubr.f32.gmra.mrb[0].mxu0 %v1884
    %v1886 = vpop.f32.mrb[0].mxu0
    %v1887 = vadd.f32 %v1801, %v1886
    %v1888 = vpop.f32.mrb[0].mxu0
    %1889 = vmatprep.mubr.f32.mxu0 0.0
    %v1890 = vand.u32 %v1336, 4294901760
    %1891 = vmatmul.mubr.f32.gmra.mrb[0].mxu0 %v1890
    %v1892 = vpop.f32.mrb[0].mxu0
    %v1893 = vadd.f32 %v1807, %v1892
    %v1894 = vpop.f32.mrb[0].mxu0
    %1895 = vmatprep.mubr.f32.mxu0 0.0
    %v1896 = vand.u32 %v1339, 4294901760
    %1897 = vmatmul.mubr.f32.gmra.mrb[0].mxu0 %v1896
    %v1898 = vpop.f32.mrb[0].mxu0
    %v1899 = vadd.f32 %v1813, %v1898
    %v1900 = vpop.f32.mrb[0].mxu0
    %1901 = vdwg.mxu0
    %v1902 = vtanh.pop %v1887
    %v1903 = vtanh.pop %v1893
    %v1904 = vtanh.pop %v1899
    %s1905 = scalar_lea.vmem %s6, 24
    %v1906 = vld [vmem:[%s1905] sm:$0xff]
    %v1907 = vld [vmem:[%s1905 + $0x8] sm:$0xff]
    %v1908 = vld [vmem:[%s1905 + $0x10] sm:$0xf]
    %s1909 = scalar_lea.vmem %s7, 24
    %v1910 = vld [vmem:[%s1909] sm:$0xff]
    %v1911 = vld [vmem:[%s1909 + $0x8] sm:$0xff]
    %v1912 = vld [vmem:[%s1909 + $0x10] sm:$0xf]
    %1914 = vset.pattern.permute.xlu0 0
    %1915 = vperm.xlu0 %1914, %v1910
    %v1916 = vpop.permute.xlu0 %1915
    %1919 = vset.pattern.permute.xlu0 0
    %1920 = vperm.xlu0 %1919, %v1911
    %v1921 = vpop.permute.xlu0 %1920
    %1924 = vset.pattern.permute.xlu0 0
    %1925 = vperm.xlu0 %1924, %v1912
    %v1926 = vpop.permute.xlu0 %1925
    %v1929 = vsel %vm137, %v1906, 0
    %v1932 = vsel %vm137, %v1907, 0
    %v1935 = vsel %vm137, %v1908, 0
    %v1938 = vsel %vm147, %v1904, 0
    %1940 = vmatprep.subr.mxu0 0.0
    %v1941 = vand.u32 %v1902, 4294901760
    %1942 = vmatpush1.msra.mxu0 %v1941
    %1943 = vmatprep.subr.mxu0 0.0
    %v1944 = vand.u32 %v1903, 4294901760
    %1945 = vmatpush1.msra.mxu0 %v1944
    %1946 = vmatprep.subr.mxu0 0.0
    %v1947 = vand.u32 %v1938, 4294901760
    %1948 = vmatpush1.msra.mxu0 %v1947
    %1949 = vmatprep.subr.mxu0 0.0
    %1950 = vmatpush1.msra.mxu0 0.0
    %1951 = vmatprep.subr.mxu0 0.0
    %1952 = vmatpush1.msra.mxu0 0.0
    %1953 = vmatprep.subr.mxu0 0.0
    %1954 = vmatpush1.msra.mxu0 0.0
    %1955 = vmatprep.subr.mxu0 0.0
    %1956 = vmatpush1.msra.mxu0 0.0
    %1957 = vmatprep.subr.mxu0 0.0
    %1958 = vmatpush1.msra.mxu0 0.0
    %1959 = vmatprep.subr.mxu0 0.0
    %1960 = vmatpush1.msra.mxu0 0.0
    %1961 = vmatprep.subr.mxu0 0.0
    %1962 = vmatpush1.msra.mxu0 0.0
    %1963 = vmatprep.subr.mxu0 0.0
    %1964 = vmatpush1.msra.mxu0 0.0
    %1965 = vmatprep.subr.mxu0 0.0
    %1966 = vmatpush1.msra.mxu0 0.0
    %1967 = vmatprep.subr.mxu0 0.0
    %1968 = vmatpush1.msra.mxu0 0.0
    %1969 = vmatprep.subr.mxu0 0.0
    %1970 = vmatpush1.msra.mxu0 0.0
    %1971 = vmatprep.subr.mxu0 0.0
    %1972 = vmatpush1.msra.mxu0 0.0
    %1973 = vmatprep.subr.mxu0 0.0
    %1974 = vmatpush1.msra.mxu0 0.0
    %1975 = vmatprep.subr.mxu0 0.0
    %1976 = vmatpush1.msra.mxu0 0.0
    %1977 = vmatprep.subr.mxu0 0.0
    %1978 = vmatpush1.msra.mxu0 0.0
    %1979 = vmatprep.subr.mxu0 0.0
    %1980 = vmatpush1.msra.mxu0 0.0
    %1981 = vmatprep.subr.mxu0 0.0
    %1982 = vmatpush1.msra.mxu0 0.0
    %1983 = vmatprep.subr.mxu0 0.0
    %1984 = vmatpush1.msra.mxu0 0.0
    %1985 = vmatprep.subr.mxu0 0.0
    %1986 = vmatpush1.msra.mxu0 0.0
    %1987 = vmatprep.subr.mxu0 0.0
    %1988 = vmatpush1.msra.mxu0 0.0
    %1989 = vmatprep.subr.mxu0 0.0
    %1990 = vmatpush1.msra.mxu0 0.0
    %1991 = vmatprep.subr.mxu0 0.0
    %1992 = vmatpush1.msra.mxu0 0.0
    %1993 = vmatprep.subr.mxu0 0.0
    %1994 = vmatpush1.msra.mxu0 0.0
    %1995 = vmatprep.subr.mxu0 0.0
    %1996 = vmatpush1.msra.mxu0 0.0
    %1997 = vmatprep.subr.mxu0 0.0
    %1998 = vmatpush1.msra.mxu0 0.0
    %1999 = vmatprep.subr.mxu0 0.0
    %2000 = vmatpush1.msra.mxu0 0.0
    %2001 = vmatprep.subr.mxu0 0.0
    %2002 = vmatpush1.msra.mxu0 0.0
    %2003 = vmatprep.subr.mxu0 0.0
    %2004 = vmatpush1.msra.mxu0 0.0
    %2005 = vmatprep.subr.mxu0 0.0
    %2006 = vmatpush1.msra.mxu0 0.0
    %2007 = vmatprep.mubr.f32.mxu0 0.0
    %v2008 = vand.u32 %v1929, 4294901760
    %v2009 = vsub.f32 %v1929, %v2008
    %v2010 = vand.u32 %v2009, 4294901760
    %v2011 = vsub.f32 %v2009, %v2010
    %v2012 = vand.u32 %v2011, 4294901760
    %2013 = vmatmul.mubr.f32.gmra.mrb[0].mxu0 %v2012
    %v2014 = vpop.f32.mrb[0].mxu0
    %v2015 = vadd.f32 %v1916, %v2014
    %v2016 = vpop.f32.mrb[0].mxu0
    %2017 = vmatprep.mubr.f32.mxu0 0.0
    %v2018 = vand.u32 %v1932, 4294901760
    %v2019 = vsub.f32 %v1932, %v2018
    %v2020 = vand.u32 %v2019, 4294901760
    %v2021 = vsub.f32 %v2019, %v2020
    %v2022 = vand.u32 %v2021, 4294901760
    %2023 = vmatmul.mubr.f32.gmra.mrb[0].mxu0 %v2022
    %v2024 = vpop.f32.mrb[0].mxu0
    %v2025 = vadd.f32 %v1921, %v2024
    %v2026 = vpop.f32.mrb[0].mxu0
    %2027 = vmatprep.mubr.f32.mxu0 0.0
    %v2028 = vand.u32 %v1935, 4294901760
    %v2029 = vsub.f32 %v1935, %v2028
    %v2030 = vand.u32 %v2029, 4294901760
    %v2031 = vsub.f32 %v2029, %v2030
    %v2032 = vand.u32 %v2031, 4294901760
    %2033 = vmatmul.mubr.f32.gmra.mrb[0].mxu0 %v2032
    %v2034 = vpop.f32.mrb[0].mxu0
    %v2035 = vadd.f32 %v1926, %v2034
    %v2036 = vpop.f32.mrb[0].mxu0
    %2037 = vdwg.mxu0
    %2038 = vmatprep.subr.mxu0 0.0
    %v2039 = vand.u32 %v1902, 4294901760
    %v2040 = vsub.f32 %v1902, %v2039
    %v2041 = vand.u32 %v2040, 4294901760
    %v2042 = vsub.f32 %v2040, %v2041
    %v2043 = vand.u32 %v2042, 4294901760
    %2044 = vmatpush1.msra.mxu0 %v2043
    %2045 = vmatprep.subr.mxu0 0.0
    %v2046 = vand.u32 %v1903, 4294901760
    %v2047 = vsub.f32 %v1903, %v2046
    %v2048 = vand.u32 %v2047, 4294901760
    %v2049 = vsub.f32 %v2047, %v2048
    %v2050 = vand.u32 %v2049, 4294901760
    %2051 = vmatpush1.msra.mxu0 %v2050
    %2052 = vmatprep.subr.mxu0 0.0
    %v2053 = vand.u32 %v1938, 4294901760
    %v2054 = vsub.f32 %v1938, %v2053
    %v2055 = vand.u32 %v2054, 4294901760
    %v2056 = vsub.f32 %v2054, %v2055
    %v2057 = vand.u32 %v2056, 4294901760
    %2058 = vmatpush1.msra.mxu0 %v2057
    %2059 = vmatprep.subr.mxu0 0.0
    %2060 = vmatpush1.msra.mxu0 0.0
    %2061 = vmatprep.subr.mxu0 0.0
    %2062 = vmatpush1.msra.mxu0 0.0
    %2063 = vmatprep.subr.mxu0 0.0
    %2064 = vmatpush1.msra.mxu0 0.0
    %2065 = vmatprep.subr.mxu0 0.0
    %2066 = vmatpush1.msra.mxu0 0.0
    %2067 = vmatprep.subr.mxu0 0.0
    %2068 = vmatpush1.msra.mxu0 0.0
    %2069 = vmatprep.subr.mxu0 0.0
    %2070 = vmatpush1.msra.mxu0 0.0
    %2071 = vmatprep.subr.mxu0 0.0
    %2072 = vmatpush1.msra.mxu0 0.0
    %2073 = vmatprep.subr.mxu0 0.0
    %2074 = vmatpush1.msra.mxu0 0.0
    %2075 = vmatprep.subr.mxu0 0.0
    %2076 = vmatpush1.msra.mxu0 0.0
    %2077 = vmatprep.subr.mxu0 0.0
    %2078 = vmatpush1.msra.mxu0 0.0
    %2079 = vmatprep.subr.mxu0 0.0
    %2080 = vmatpush1.msra.mxu0 0.0
    %2081 = vmatprep.subr.mxu0 0.0
    %2082 = vmatpush1.msra.mxu0 0.0
    %2083 = vmatprep.subr.mxu0 0.0
    %2084 = vmatpush1.msra.mxu0 0.0
    %2085 = vmatprep.subr.mxu0 0.0
    %2086 = vmatpush1.msra.mxu0 0.0
    %2087 = vmatprep.subr.mxu0 0.0
    %2088 = vmatpush1.msra.mxu0 0.0
    %2089 = vmatprep.subr.mxu0 0.0
    %2090 = vmatpush1.msra.mxu0 0.0
    %2091 = vmatprep.subr.mxu0 0.0
    %2092 = vmatpush1.msra.mxu0 0.0
    %2093 = vmatprep.subr.mxu0 0.0
    %2094 = vmatpush1.msra.mxu0 0.0
    %2095 = vmatprep.subr.mxu0 0.0
    %2096 = vmatpush1.msra.mxu0 0.0
    %2097 = vmatprep.subr.mxu0 0.0
    %2098 = vmatpush1.msra.mxu0 0.0
    %2099 = vmatprep.subr.mxu0 0.0
    %2100 = vmatpush1.msra.mxu0 0.0
    %2101 = vmatprep.subr.mxu0 0.0
    %2102 = vmatpush1.msra.mxu0 0.0
    %2103 = vmatprep.subr.mxu0 0.0
    %2104 = vmatpush1.msra.mxu0 0.0
    %2105 = vmatprep.subr.mxu0 0.0
    %2106 = vmatpush1.msra.mxu0 0.0
    %2107 = vmatprep.subr.mxu0 0.0
    %2108 = vmatpush1.msra.mxu0 0.0
    %2109 = vmatprep.subr.mxu0 0.0
    %2110 = vmatpush1.msra.mxu0 0.0
    %2111 = vmatprep.subr.mxu0 0.0
    %2112 = vmatpush1.msra.mxu0 0.0
    %2113 = vmatprep.subr.mxu0 0.0
    %2114 = vmatpush1.msra.mxu0 0.0
    %2115 = vmatprep.subr.mxu0 0.0
    %2116 = vmatpush1.msra.mxu0 0.0
    %2117 = vmatprep.mubr.f32.mxu0 0.0
    %v2118 = vand.u32 %v1929, 4294901760
    %2119 = vmatmul.mubr.f32.gmra.mrb[0].mxu0 %v2118
    %v2120 = vpop.f32.mrb[0].mxu0
    %v2121 = vadd.f32 %v2015, %v2120
    %v2122 = vpop.f32.mrb[0].mxu0
    %2123 = vmatprep.mubr.f32.mxu0 0.0
    %v2124 = vand.u32 %v1932, 4294901760
    %2125 = vmatmul.mubr.f32.gmra.mrb[0].mxu0 %v2124
    %v2126 = vpop.f32.mrb[0].mxu0
    %v2127 = vadd.f32 %v2025, %v2126
    %v2128 = vpop.f32.mrb[0].mxu0
    %2129 = vmatprep.mubr.f32.mxu0 0.0
    %v2130 = vand.u32 %v1935, 4294901760
    %2131 = vmatmul.mubr.f32.gmra.mrb[0].mxu0 %v2130
    %v2132 = vpop.f32.mrb[0].mxu0
    %v2133 = vadd.f32 %v2035, %v2132
    %v2134 = vpop.f32.mrb[0].mxu0
    %2135 = vdwg.mxu0
    %2136 = vmatprep.subr.mxu0 0.0
    %v2137 = vand.u32 %v1902, 4294901760
    %v2138 = vsub.f32 %v1902, %v2137
    %2139 = vmatpush1.msra.mxu0 %v2138
    %2140 = vmatprep.subr.mxu0 0.0
    %v2141 = vand.u32 %v1903, 4294901760
    %v2142 = vsub.f32 %v1903, %v2141
    %2143 = vmatpush1.msra.mxu0 %v2142
    %2144 = vmatprep.subr.mxu0 0.0
    %v2145 = vand.u32 %v1938, 4294901760
    %v2146 = vsub.f32 %v1938, %v2145
    %2147 = vmatpush1.msra.mxu0 %v2146
    %2148 = vmatprep.subr.mxu0 0.0
    %2149 = vmatpush1.msra.mxu0 0.0
    %2150 = vmatprep.subr.mxu0 0.0
    %2151 = vmatpush1.msra.mxu0 0.0
    %2152 = vmatprep.subr.mxu0 0.0
    %2153 = vmatpush1.msra.mxu0 0.0
    %2154 = vmatprep.subr.mxu0 0.0
    %2155 = vmatpush1.msra.mxu0 0.0
    %2156 = vmatprep.subr.mxu0 0.0
    %2157 = vmatpush1.msra.mxu0 0.0
    %2158 = vmatprep.subr.mxu0 0.0
    %2159 = vmatpush1.msra.mxu0 0.0
    %2160 = vmatprep.subr.mxu0 0.0
    %2161 = vmatpush1.msra.mxu0 0.0
    %2162 = vmatprep.subr.mxu0 0.0
    %2163 = vmatpush1.msra.mxu0 0.0
    %2164 = vmatprep.subr.mxu0 0.0
    %2165 = vmatpush1.msra.mxu0 0.0
    %2166 = vmatprep.subr.mxu0 0.0
    %2167 = vmatpush1.msra.mxu0 0.0
    %2168 = vmatprep.subr.mxu0 0.0
    %2169 = vmatpush1.msra.mxu0 0.0
    %2170 = vmatprep.subr.mxu0 0.0
    %2171 = vmatpush1.msra.mxu0 0.0
    %2172 = vmatprep.subr.mxu0 0.0
    %2173 = vmatpush1.msra.mxu0 0.0
    %2174 = vmatprep.subr.mxu0 0.0
    %2175 = vmatpush1.msra.mxu0 0.0
    %2176 = vmatprep.subr.mxu0 0.0
    %2177 = vmatpush1.msra.mxu0 0.0
    %2178 = vmatprep.subr.mxu0 0.0
    %2179 = vmatpush1.msra.mxu0 0.0
    %2180 = vmatprep.subr.mxu0 0.0
    %2181 = vmatpush1.msra.mxu0 0.0
    %2182 = vmatprep.subr.mxu0 0.0
    %2183 = vmatpush1.msra.mxu0 0.0
    %2184 = vmatprep.subr.mxu0 0.0
    %2185 = vmatpush1.msra.mxu0 0.0
    %2186 = vmatprep.subr.mxu0 0.0
    %2187 = vmatpush1.msra.mxu0 0.0
    %2188 = vmatprep.subr.mxu0 0.0
    %2189 = vmatpush1.msra.mxu0 0.0
    %2190 = vmatprep.subr.mxu0 0.0
    %2191 = vmatpush1.msra.mxu0 0.0
    %2192 = vmatprep.subr.mxu0 0.0
    %2193 = vmatpush1.msra.mxu0 0.0
    %2194 = vmatprep.subr.mxu0 0.0
    %2195 = vmatpush1.msra.mxu0 0.0
    %2196 = vmatprep.subr.mxu0 0.0
    %2197 = vmatpush1.msra.mxu0 0.0
    %2198 = vmatprep.subr.mxu0 0.0
    %2199 = vmatpush1.msra.mxu0 0.0
    %2200 = vmatprep.subr.mxu0 0.0
    %2201 = vmatpush1.msra.mxu0 0.0
    %2202 = vmatprep.subr.mxu0 0.0
    %2203 = vmatpush1.msra.mxu0 0.0
    %2204 = vmatprep.subr.mxu0 0.0
    %2205 = vmatpush1.msra.mxu0 0.0
    %2206 = vmatprep.mubr.f32.mxu0 0.0
    %v2207 = vand.u32 %v1929, 4294901760
    %v2208 = vsub.f32 %v1929, %v2207
    %2209 = vmatmul.mubr.f32.gmra.mrb[0].mxu0 %v2208
    %v2210 = vpop.f32.mrb[0].mxu0
    %v2211 = vadd.f32 %v2121, %v2210
    %v2212 = vpop.f32.mrb[0].mxu0
    %2213 = vmatprep.mubr.f32.mxu0 0.0
    %v2214 = vand.u32 %v1932, 4294901760
    %v2215 = vsub.f32 %v1932, %v2214
    %2216 = vmatmul.mubr.f32.gmra.mrb[0].mxu0 %v2215
    %v2217 = vpop.f32.mrb[0].mxu0
    %v2218 = vadd.f32 %v2127, %v2217
    %v2219 = vpop.f32.mrb[0].mxu0
    %2220 = vmatprep.mubr.f32.mxu0 0.0
    %v2221 = vand.u32 %v1935, 4294901760
    %v2222 = vsub.f32 %v1935, %v2221
    %2223 = vmatmul.mubr.f32.gmra.mrb[0].mxu0 %v2222
    %v2224 = vpop.f32.mrb[0].mxu0
    %v2225 = vadd.f32 %v2133, %v2224
    %v2226 = vpop.f32.mrb[0].mxu0
    %2227 = vdwg.mxu0
    %2228 = vmatprep.subr.mxu0 0.0
    %v2229 = vand.u32 %v1902, 4294901760
    %2230 = vmatpush1.msra.mxu0 %v2229
    %2231 = vmatprep.subr.mxu0 0.0
    %v2232 = vand.u32 %v1903, 4294901760
    %2233 = vmatpush1.msra.mxu0 %v2232
    %2234 = vmatprep.subr.mxu0 0.0
    %v2235 = vand.u32 %v1938, 4294901760
    %2236 = vmatpush1.msra.mxu0 %v2235
    %2237 = vmatprep.subr.mxu0 0.0
    %2238 = vmatpush1.msra.mxu0 0.0
    %2239 = vmatprep.subr.mxu0 0.0
    %2240 = vmatpush1.msra.mxu0 0.0
    %2241 = vmatprep.subr.mxu0 0.0
    %2242 = vmatpush1.msra.mxu0 0.0
    %2243 = vmatprep.subr.mxu0 0.0
    %2244 = vmatpush1.msra.mxu0 0.0
    %2245 = vmatprep.subr.mxu0 0.0
    %2246 = vmatpush1.msra.mxu0 0.0
    %2247 = vmatprep.subr.mxu0 0.0
    %2248 = vmatpush1.msra.mxu0 0.0
    %2249 = vmatprep.subr.mxu0 0.0
    %2250 = vmatpush1.msra.mxu0 0.0
    %2251 = vmatprep.subr.mxu0 0.0
    %2252 = vmatpush1.msra.mxu0 0.0
    %2253 = vmatprep.subr.mxu0 0.0
    %2254 = vmatpush1.msra.mxu0 0.0
    %2255 = vmatprep.subr.mxu0 0.0
    %2256 = vmatpush1.msra.mxu0 0.0
    %2257 = vmatprep.subr.mxu0 0.0
    %2258 = vmatpush1.msra.mxu0 0.0
    %2259 = vmatprep.subr.mxu0 0.0
    %2260 = vmatpush1.msra.mxu0 0.0
    %2261 = vmatprep.subr.mxu0 0.0
    %2262 = vmatpush1.msra.mxu0 0.0
    %2263 = vmatprep.subr.mxu0 0.0
    %2264 = vmatpush1.msra.mxu0 0.0
    %2265 = vmatprep.subr.mxu0 0.0
    %2266 = vmatpush1.msra.mxu0 0.0
    %2267 = vmatprep.subr.mxu0 0.0
    %2268 = vmatpush1.msra.mxu0 0.0
    %2269 = vmatprep.subr.mxu0 0.0
    %2270 = vmatpush1.msra.mxu0 0.0
    %2271 = vmatprep.subr.mxu0 0.0
    %2272 = vmatpush1.msra.mxu0 0.0
    %2273 = vmatprep.subr.mxu0 0.0
    %2274 = vmatpush1.msra.mxu0 0.0
    %2275 = vmatprep.subr.mxu0 0.0
    %2276 = vmatpush1.msra.mxu0 0.0
    %2277 = vmatprep.subr.mxu0 0.0
    %2278 = vmatpush1.msra.mxu0 0.0
    %2279 = vmatprep.subr.mxu0 0.0
    %2280 = vmatpush1.msra.mxu0 0.0
    %2281 = vmatprep.subr.mxu0 0.0
    %2282 = vmatpush1.msra.mxu0 0.0
    %2283 = vmatprep.subr.mxu0 0.0
    %2284 = vmatpush1.msra.mxu0 0.0
    %2285 = vmatprep.subr.mxu0 0.0
    %2286 = vmatpush1.msra.mxu0 0.0
    %2287 = vmatprep.subr.mxu0 0.0
    %2288 = vmatpush1.msra.mxu0 0.0
    %2289 = vmatprep.subr.mxu0 0.0
    %2290 = vmatpush1.msra.mxu0 0.0
    %2291 = vmatprep.subr.mxu0 0.0
    %2292 = vmatpush1.msra.mxu0 0.0
    %2293 = vmatprep.subr.mxu0 0.0
    %2294 = vmatpush1.msra.mxu0 0.0
    %2295 = vmatprep.mubr.f32.mxu0 0.0
    %v2296 = vand.u32 %v1929, 4294901760
    %v2297 = vsub.f32 %v1929, %v2296
    %v2298 = vand.u32 %v2297, 4294901760
    %2299 = vmatmul.mubr.f32.gmra.mrb[0].mxu0 %v2298
    %v2300 = vpop.f32.mrb[0].mxu0
    %v2301 = vadd.f32 %v2211, %v2300
    %v2302 = vpop.f32.mrb[0].mxu0
    %2303 = vmatprep.mubr.f32.mxu0 0.0
    %v2304 = vand.u32 %v1932, 4294901760
    %v2305 = vsub.f32 %v1932, %v2304
    %v2306 = vand.u32 %v2305, 4294901760
    %2307 = vmatmul.mubr.f32.gmra.mrb[0].mxu0 %v2306
    %v2308 = vpop.f32.mrb[0].mxu0
    %v2309 = vadd.f32 %v2218, %v2308
    %v2310 = vpop.f32.mrb[0].mxu0
    %2311 = vmatprep.mubr.f32.mxu0 0.0
    %v2312 = vand.u32 %v1935, 4294901760
    %v2313 = vsub.f32 %v1935, %v2312
    %v2314 = vand.u32 %v2313, 4294901760
    %2315 = vmatmul.mubr.f32.gmra.mrb[0].mxu0 %v2314
    %v2316 = vpop.f32.mrb[0].mxu0
    %v2317 = vadd.f32 %v2225, %v2316
    %v2318 = vpop.f32.mrb[0].mxu0
    %2319 = vdwg.mxu0
    %2320 = vmatprep.subr.mxu0 0.0
    %v2321 = vand.u32 %v1902, 4294901760
    %v2322 = vsub.f32 %v1902, %v2321
    %v2323 = vand.u32 %v2322, 4294901760
    %2324 = vmatpush1.msra.mxu0 %v2323
    %2325 = vmatprep.subr.mxu0 0.0
    %v2326 = vand.u32 %v1903, 4294901760
    %v2327 = vsub.f32 %v1903, %v2326
    %v2328 = vand.u32 %v2327, 4294901760
    %2329 = vmatpush1.msra.mxu0 %v2328
    %2330 = vmatprep.subr.mxu0 0.0
    %v2331 = vand.u32 %v1938, 4294901760
    %v2332 = vsub.f32 %v1938, %v2331
    %v2333 = vand.u32 %v2332, 4294901760
    %2334 = vmatpush1.msra.mxu0 %v2333
    %2335 = vmatprep.subr.mxu0 0.0
    %2336 = vmatpush1.msra.mxu0 0.0
    %2337 = vmatprep.subr.mxu0 0.0
    %2338 = vmatpush1.msra.mxu0 0.0
    %2339 = vmatprep.subr.mxu0 0.0
    %2340 = vmatpush1.msra.mxu0 0.0
    %2341 = vmatprep.subr.mxu0 0.0
    %2342 = vmatpush1.msra.mxu0 0.0
    %2343 = vmatprep.subr.mxu0 0.0
    %2344 = vmatpush1.msra.mxu0 0.0
    %2345 = vmatprep.subr.mxu0 0.0
    %2346 = vmatpush1.msra.mxu0 0.0
    %2347 = vmatprep.subr.mxu0 0.0
    %2348 = vmatpush1.msra.mxu0 0.0
    %2349 = vmatprep.subr.mxu0 0.0
    %2350 = vmatpush1.msra.mxu0 0.0
    %2351 = vmatprep.subr.mxu0 0.0
    %2352 = vmatpush1.msra.mxu0 0.0
    %2353 = vmatprep.subr.mxu0 0.0
    %2354 = vmatpush1.msra.mxu0 0.0
    %2355 = vmatprep.subr.mxu0 0.0
    %2356 = vmatpush1.msra.mxu0 0.0
    %2357 = vmatprep.subr.mxu0 0.0
    %2358 = vmatpush1.msra.mxu0 0.0
    %2359 = vmatprep.subr.mxu0 0.0
    %2360 = vmatpush1.msra.mxu0 0.0
    %2361 = vmatprep.subr.mxu0 0.0
    %2362 = vmatpush1.msra.mxu0 0.0
    %2363 = vmatprep.subr.mxu0 0.0
    %2364 = vmatpush1.msra.mxu0 0.0
    %2365 = vmatprep.subr.mxu0 0.0
    %2366 = vmatpush1.msra.mxu0 0.0
    %2367 = vmatprep.subr.mxu0 0.0
    %2368 = vmatpush1.msra.mxu0 0.0
    %2369 = vmatprep.subr.mxu0 0.0
    %2370 = vmatpush1.msra.mxu0 0.0
    %2371 = vmatprep.subr.mxu0 0.0
    %2372 = vmatpush1.msra.mxu0 0.0
    %2373 = vmatprep.subr.mxu0 0.0
    %2374 = vmatpush1.msra.mxu0 0.0
    %2375 = vmatprep.subr.mxu0 0.0
    %2376 = vmatpush1.msra.mxu0 0.0
    %2377 = vmatprep.subr.mxu0 0.0
    %2378 = vmatpush1.msra.mxu0 0.0
    %2379 = vmatprep.subr.mxu0 0.0
    %2380 = vmatpush1.msra.mxu0 0.0
    %2381 = vmatprep.subr.mxu0 0.0
    %2382 = vmatpush1.msra.mxu0 0.0
    %2383 = vmatprep.subr.mxu0 0.0
    %2384 = vmatpush1.msra.mxu0 0.0
    %2385 = vmatprep.subr.mxu0 0.0
    %2386 = vmatpush1.msra.mxu0 0.0
    %2387 = vmatprep.subr.mxu0 0.0
    %2388 = vmatpush1.msra.mxu0 0.0
    %2389 = vmatprep.subr.mxu0 0.0
    %2390 = vmatpush1.msra.mxu0 0.0
    %2391 = vmatprep.subr.mxu0 0.0
    %2392 = vmatpush1.msra.mxu0 0.0
    %2393 = vmatprep.mubr.f32.mxu0 0.0
    %v2394 = vand.u32 %v1929, 4294901760
    %2395 = vmatmul.mubr.f32.gmra.mrb[0].mxu0 %v2394
    %v2396 = vpop.f32.mrb[0].mxu0
    %v2397 = vadd.f32 %v2301, %v2396
    %v2398 = vpop.f32.mrb[0].mxu0
    %2399 = vmatprep.mubr.f32.mxu0 0.0
    %v2400 = vand.u32 %v1932, 4294901760
    %2401 = vmatmul.mubr.f32.gmra.mrb[0].mxu0 %v2400
    %v2402 = vpop.f32.mrb[0].mxu0
    %v2403 = vadd.f32 %v2309, %v2402
    %v2404 = vpop.f32.mrb[0].mxu0
    %2405 = vmatprep.mubr.f32.mxu0 0.0
    %v2406 = vand.u32 %v1935, 4294901760
    %2407 = vmatmul.mubr.f32.gmra.mrb[0].mxu0 %v2406
    %v2408 = vpop.f32.mrb[0].mxu0
    %v2409 = vadd.f32 %v2317, %v2408
    %v2410 = vpop.f32.mrb[0].mxu0
    %2411 = vdwg.mxu0
    %2412 = vmatprep.subr.mxu0 0.0
    %v2413 = vand.u32 %v1902, 4294901760
    %2414 = vmatpush1.msra.mxu0 %v2413
    %2415 = vmatprep.subr.mxu0 0.0
    %v2416 = vand.u32 %v1903, 4294901760
    %2417 = vmatpush1.msra.mxu0 %v2416
    %2418 = vmatprep.subr.mxu0 0.0
    %v2419 = vand.u32 %v1938, 4294901760
    %2420 = vmatpush1.msra.mxu0 %v2419
    %2421 = vmatprep.subr.mxu0 0.0
    %2422 = vmatpush1.msra.mxu0 0.0
    %2423 = vmatprep.subr.mxu0 0.0
    %2424 = vmatpush1.msra.mxu0 0.0
    %2425 = vmatprep.subr.mxu0 0.0
    %2426 = vmatpush1.msra.mxu0 0.0
    %2427 = vmatprep.subr.mxu0 0.0
    %2428 = vmatpush1.msra.mxu0 0.0
    %2429 = vmatprep.subr.mxu0 0.0
    %2430 = vmatpush1.msra.mxu0 0.0
    %2431 = vmatprep.subr.mxu0 0.0
    %2432 = vmatpush1.msra.mxu0 0.0
    %2433 = vmatprep.subr.mxu0 0.0
    %2434 = vmatpush1.msra.mxu0 0.0
    %2435 = vmatprep.subr.mxu0 0.0
    %2436 = vmatpush1.msra.mxu0 0.0
    %2437 = vmatprep.subr.mxu0 0.0
    %2438 = vmatpush1.msra.mxu0 0.0
    %2439 = vmatprep.subr.mxu0 0.0
    %2440 = vmatpush1.msra.mxu0 0.0
    %2441 = vmatprep.subr.mxu0 0.0
    %2442 = vmatpush1.msra.mxu0 0.0
    %2443 = vmatprep.subr.mxu0 0.0
    %2444 = vmatpush1.msra.mxu0 0.0
    %2445 = vmatprep.subr.mxu0 0.0
    %2446 = vmatpush1.msra.mxu0 0.0
    %2447 = vmatprep.subr.mxu0 0.0
    %2448 = vmatpush1.msra.mxu0 0.0
    %2449 = vmatprep.subr.mxu0 0.0
    %2450 = vmatpush1.msra.mxu0 0.0
    %2451 = vmatprep.subr.mxu0 0.0
    %2452 = vmatpush1.msra.mxu0 0.0
    %2453 = vmatprep.subr.mxu0 0.0
    %2454 = vmatpush1.msra.mxu0 0.0
    %2455 = vmatprep.subr.mxu0 0.0
    %2456 = vmatpush1.msra.mxu0 0.0
    %2457 = vmatprep.subr.mxu0 0.0
    %2458 = vmatpush1.msra.mxu0 0.0
    %2459 = vmatprep.subr.mxu0 0.0
    %2460 = vmatpush1.msra.mxu0 0.0
    %2461 = vmatprep.subr.mxu0 0.0
    %2462 = vmatpush1.msra.mxu0 0.0
    %2463 = vmatprep.subr.mxu0 0.0
    %2464 = vmatpush1.msra.mxu0 0.0
    %2465 = vmatprep.subr.mxu0 0.0
    %2466 = vmatpush1.msra.mxu0 0.0
    %2467 = vmatprep.subr.mxu0 0.0
    %2468 = vmatpush1.msra.mxu0 0.0
    %2469 = vmatprep.subr.mxu0 0.0
    %2470 = vmatpush1.msra.mxu0 0.0
    %2471 = vmatprep.subr.mxu0 0.0
    %2472 = vmatpush1.msra.mxu0 0.0
    %2473 = vmatprep.subr.mxu0 0.0
    %2474 = vmatpush1.msra.mxu0 0.0
    %2475 = vmatprep.subr.mxu0 0.0
    %2476 = vmatpush1.msra.mxu0 0.0
    %2477 = vmatprep.subr.mxu0 0.0
    %2478 = vmatpush1.msra.mxu0 0.0
    %2479 = vmatprep.mubr.f32.mxu0 0.0
    %v2480 = vand.u32 %v1929, 4294901760
    %2481 = vmatmul.mubr.f32.gmra.mrb[0].mxu0 %v2480
    %v2482 = vpop.f32.mrb[0].mxu0
    %v2483 = vadd.f32 %v2397, %v2482
    %v2484 = vpop.f32.mrb[0].mxu0
    %2485 = vmatprep.mubr.f32.mxu0 0.0
    %v2486 = vand.u32 %v1932, 4294901760
    %2487 = vmatmul.mubr.f32.gmra.mrb[0].mxu0 %v2486
    %v2488 = vpop.f32.mrb[0].mxu0
    %v2489 = vadd.f32 %v2403, %v2488
    %v2490 = vpop.f32.mrb[0].mxu0
    %2491 = vmatprep.mubr.f32.mxu0 0.0
    %v2492 = vand.u32 %v1935, 4294901760
    %2493 = vmatmul.mubr.f32.gmra.mrb[0].mxu0 %v2492
    %v2494 = vpop.f32.mrb[0].mxu0
    %v2495 = vadd.f32 %v2409, %v2494
    %v2496 = vpop.f32.mrb[0].mxu0
    %2497 = vdwg.mxu0
    %v2498 = vtanh.pop %v2483
    %v2499 = vtanh.pop %v2489
    %v2500 = vtanh.pop %v2495
    %v2501 = vadd.f32 %v2498, %v1306
    %v2502 = vadd.f32 %v2499, %v1307
    %v2503 = vadd.f32 %v2500, %v1308
    %s2504 = scalar_lea.vmem %s4, 48
    %v2505 = vld [vmem:[%s2504] sm:$0xff]
    %v2506 = vld [vmem:[%s2504 + $0x8] sm:$0xff]
    %v2507 = vld [vmem:[%s2504 + $0x10] sm:$0xf]
    %s2508 = scalar_lea.vmem %s5, 48
    %v2509 = vld [vmem:[%s2508] sm:$0xff]
    %v2510 = vld [vmem:[%s2508 + $0x8] sm:$0xff]
    %v2511 = vld [vmem:[%s2508 + $0x10] sm:$0xf]
    %2513 = vset.pattern.permute.xlu0 0
    %2514 = vperm.xlu0 %2513, %v2509
    %v2515 = vpop.permute.xlu0 %2514
    %2518 = vset.pattern.permute.xlu0 0
    %2519 = vperm.xlu0 %2518, %v2510
    %v2520 = vpop.permute.xlu0 %2519
    %2523 = vset.pattern.permute.xlu0 0
    %2524 = vperm.xlu0 %2523, %v2511
    %v2525 = vpop.permute.xlu0 %2524
    %v2528 = vsel %vm137, %v2505, 0
    %v2531 = vsel %vm137, %v2506, 0
    %v2534 = vsel %vm137, %v2507, 0
    %v2537 = vsel %vm147, %v2503, 0
    %2539 = vmatprep.subr.mxu0 0.0
    %v2540 = vand.u32 %v2501, 4294901760
    %2541 = vmatpush1.msra.mxu0 %v2540
    %2542 = vmatprep.subr.mxu0 0.0
    %v2543 = vand.u32 %v2502, 4294901760
    %2544 = vmatpush1.msra.mxu0 %v2543
    %2545 = vmatprep.subr.mxu0 0.0
    %v2546 = vand.u32 %v2537, 4294901760
    %2547 = vmatpush1.msra.mxu0 %v2546
    %2548 = vmatprep.subr.mxu0 0.0
    %2549 = vmatpush1.msra.mxu0 0.0
    %2550 = vmatprep.subr.mxu0 0.0
    %2551 = vmatpush1.msra.mxu0 0.0
    %2552 = vmatprep.subr.mxu0 0.0
    %2553 = vmatpush1.msra.mxu0 0.0
    %2554 = vmatprep.subr.mxu0 0.0
    %2555 = vmatpush1.msra.mxu0 0.0
    %2556 = vmatprep.subr.mxu0 0.0
    %2557 = vmatpush1.msra.mxu0 0.0
    %2558 = vmatprep.subr.mxu0 0.0
    %2559 = vmatpush1.msra.mxu0 0.0
    %2560 = vmatprep.subr.mxu0 0.0
    %2561 = vmatpush1.msra.mxu0 0.0
    %2562 = vmatprep.subr.mxu0 0.0
    %2563 = vmatpush1.msra.mxu0 0.0
    %2564 = vmatprep.subr.mxu0 0.0
    %2565 = vmatpush1.msra.mxu0 0.0
    %2566 = vmatprep.subr.mxu0 0.0
    %2567 = vmatpush1.msra.mxu0 0.0
    %2568 = vmatprep.subr.mxu0 0.0
    %2569 = vmatpush1.msra.mxu0 0.0
    %2570 = vmatprep.subr.mxu0 0.0
    %2571 = vmatpush1.msra.mxu0 0.0
    %2572 = vmatprep.subr.mxu0 0.0
    %2573 = vmatpush1.msra.mxu0 0.0
    %2574 = vmatprep.subr.mxu0 0.0
    %2575 = vmatpush1.msra.mxu0 0.0
    %2576 = vmatprep.subr.mxu0 0.0
    %2577 = vmatpush1.msra.mxu0 0.0
    %2578 = vmatprep.subr.mxu0 0.0
    %2579 = vmatpush1.msra.mxu0 0.0
    %2580 = vmatprep.subr.mxu0 0.0
    %2581 = vmatpush1.msra.mxu0 0.0
    %2582 = vmatprep.subr.mxu0 0.0
    %2583 = vmatpush1.msra.mxu0 0.0
    %2584 = vmatprep.subr.mxu0 0.0
    %2585 = vmatpush1.msra.mxu0 0.0
    %2586 = vmatprep.subr.mxu0 0.0
    %2587 = vmatpush1.msra.mxu0 0.0
    %2588 = vmatprep.subr.mxu0 0.0
    %2589 = vmatpush1.msra.mxu0 0.0
    %2590 = vmatprep.subr.mxu0 0.0
    %2591 = vmatpush1.msra.mxu0 0.0
    %2592 = vmatprep.subr.mxu0 0.0
    %2593 = vmatpush1.msra.mxu0 0.0
    %2594 = vmatprep.subr.mxu0 0.0
    %2595 = vmatpush1.msra.mxu0 0.0
    %2596 = vmatprep.subr.mxu0 0.0
    %2597 = vmatpush1.msra.mxu0 0.0
    %2598 = vmatprep.subr.mxu0 0.0
    %2599 = vmatpush1.msra.mxu0 0.0
    %2600 = vmatprep.subr.mxu0 0.0
    %2601 = vmatpush1.msra.mxu0 0.0
    %2602 = vmatprep.subr.mxu0 0.0
    %2603 = vmatpush1.msra.mxu0 0.0
    %2604 = vmatprep.subr.mxu0 0.0
    %2605 = vmatpush1.msra.mxu0 0.0
    %2606 = vmatprep.mubr.f32.mxu0 0.0
    %v2607 = vand.u32 %v2528, 4294901760
    %v2608 = vsub.f32 %v2528, %v2607
    %v2609 = vand.u32 %v2608, 4294901760
    %v2610 = vsub.f32 %v2608, %v2609
    %v2611 = vand.u32 %v2610, 4294901760
    %2612 = vmatmul.mubr.f32.gmra.mrb[0].mxu0 %v2611
    %v2613 = vpop.f32.mrb[0].mxu0
    %v2614 = vadd.f32 %v2515, %v2613
    %v2615 = vpop.f32.mrb[0].mxu0
    %2616 = vmatprep.mubr.f32.mxu0 0.0
    %v2617 = vand.u32 %v2531, 4294901760
    %v2618 = vsub.f32 %v2531, %v2617
    %v2619 = vand.u32 %v2618, 4294901760
    %v2620 = vsub.f32 %v2618, %v2619
    %v2621 = vand.u32 %v2620, 4294901760
    %2622 = vmatmul.mubr.f32.gmra.mrb[0].mxu0 %v2621
    %v2623 = vpop.f32.mrb[0].mxu0
    %v2624 = vadd.f32 %v2520, %v2623
    %v2625 = vpop.f32.mrb[0].mxu0
    %2626 = vmatprep.mubr.f32.mxu0 0.0
    %v2627 = vand.u32 %v2534, 4294901760
    %v2628 = vsub.f32 %v2534, %v2627
    %v2629 = vand.u32 %v2628, 4294901760
    %v2630 = vsub.f32 %v2628, %v2629
    %v2631 = vand.u32 %v2630, 4294901760
    %2632 = vmatmul.mubr.f32.gmra.mrb[0].mxu0 %v2631
    %v2633 = vpop.f32.mrb[0].mxu0
    %v2634 = vadd.f32 %v2525, %v2633
    %v2635 = vpop.f32.mrb[0].mxu0
    %2636 = vdwg.mxu0
    %2637 = vmatprep.subr.mxu0 0.0
    %v2638 = vand.u32 %v2501, 4294901760
    %v2639 = vsub.f32 %v2501, %v2638
    %v2640 = vand.u32 %v2639, 4294901760
    %v2641 = vsub.f32 %v2639, %v2640
    %v2642 = vand.u32 %v2641, 4294901760
    %2643 = vmatpush1.msra.mxu0 %v2642
    %2644 = vmatprep.subr.mxu0 0.0
    %v2645 = vand.u32 %v2502, 4294901760
    %v2646 = vsub.f32 %v2502, %v2645
    %v2647 = vand.u32 %v2646, 4294901760
    %v2648 = vsub.f32 %v2646, %v2647
    %v2649 = vand.u32 %v2648, 4294901760
    %2650 = vmatpush1.msra.mxu0 %v2649
    %2651 = vmatprep.subr.mxu0 0.0
    %v2652 = vand.u32 %v2537, 4294901760
    %v2653 = vsub.f32 %v2537, %v2652
    %v2654 = vand.u32 %v2653, 4294901760
    %v2655 = vsub.f32 %v2653, %v2654
    %v2656 = vand.u32 %v2655, 4294901760
    %2657 = vmatpush1.msra.mxu0 %v2656
    %2658 = vmatprep.subr.mxu0 0.0
    %2659 = vmatpush1.msra.mxu0 0.0
    %2660 = vmatprep.subr.mxu0 0.0
    %2661 = vmatpush1.msra.mxu0 0.0
    %2662 = vmatprep.subr.mxu0 0.0
    %2663 = vmatpush1.msra.mxu0 0.0
    %2664 = vmatprep.subr.mxu0 0.0
    %2665 = vmatpush1.msra.mxu0 0.0
    %2666 = vmatprep.subr.mxu0 0.0
    %2667 = vmatpush1.msra.mxu0 0.0
    %2668 = vmatprep.subr.mxu0 0.0
    %2669 = vmatpush1.msra.mxu0 0.0
    %2670 = vmatprep.subr.mxu0 0.0
    %2671 = vmatpush1.msra.mxu0 0.0
    %2672 = vmatprep.subr.mxu0 0.0
    %2673 = vmatpush1.msra.mxu0 0.0
    %2674 = vmatprep.subr.mxu0 0.0
    %2675 = vmatpush1.msra.mxu0 0.0
    %2676 = vmatprep.subr.mxu0 0.0
    %2677 = vmatpush1.msra.mxu0 0.0
    %2678 = vmatprep.subr.mxu0 0.0
    %2679 = vmatpush1.msra.mxu0 0.0
    %2680 = vmatprep.subr.mxu0 0.0
    %2681 = vmatpush1.msra.mxu0 0.0
    %2682 = vmatprep.subr.mxu0 0.0
    %2683 = vmatpush1.msra.mxu0 0.0
    %2684 = vmatprep.subr.mxu0 0.0
    %2685 = vmatpush1.msra.mxu0 0.0
    %2686 = vmatprep.subr.mxu0 0.0
    %2687 = vmatpush1.msra.mxu0 0.0
    %2688 = vmatprep.subr.mxu0 0.0
    %2689 = vmatpush1.msra.mxu0 0.0
    %2690 = vmatprep.subr.mxu0 0.0
    %2691 = vmatpush1.msra.mxu0 0.0
    %2692 = vmatprep.subr.mxu0 0.0
    %2693 = vmatpush1.msra.mxu0 0.0
    %2694 = vmatprep.subr.mxu0 0.0
    %2695 = vmatpush1.msra.mxu0 0.0
    %2696 = vmatprep.subr.mxu0 0.0
    %2697 = vmatpush1.msra.mxu0 0.0
    %2698 = vmatprep.subr.mxu0 0.0
    %2699 = vmatpush1.msra.mxu0 0.0
    %2700 = vmatprep.subr.mxu0 0.0
    %2701 = vmatpush1.msra.mxu0 0.0
    %2702 = vmatprep.subr.mxu0 0.0
    %2703 = vmatpush1.msra.mxu0 0.0
    %2704 = vmatprep.subr.mxu0 0.0
    %2705 = vmatpush1.msra.mxu0 0.0
    %2706 = vmatprep.subr.mxu0 0.0
    %2707 = vmatpush1.msra.mxu0 0.0
    %2708 = vmatprep.subr.mxu0 0.0
    %2709 = vmatpush1.msra.mxu0 0.0
    %2710 = vmatprep.subr.mxu0 0.0
    %2711 = vmatpush1.msra.mxu0 0.0
    %2712 = vmatprep.subr.mxu0 0.0
    %2713 = vmatpush1.msra.mxu0 0.0
    %2714 = vmatprep.subr.mxu0 0.0
    %2715 = vmatpush1.msra.mxu0 0.0
    %2716 = vmatprep.mubr.f32.mxu0 0.0
    %v2717 = vand.u32 %v2528, 4294901760
    %2718 = vmatmul.mubr.f32.gmra.mrb[0].mxu0 %v2717
    %v2719 = vpop.f32.mrb[0].mxu0
    %v2720 = vadd.f32 %v2614, %v2719
    %v2721 = vpop.f32.mrb[0].mxu0
    %2722 = vmatprep.mubr.f32.mxu0 0.0
    %v2723 = vand.u32 %v2531, 4294901760
    %2724 = vmatmul.mubr.f32.gmra.mrb[0].mxu0 %v2723
    %v2725 = vpop.f32.mrb[0].mxu0
    %v2726 = vadd.f32 %v2624, %v2725
    %v2727 = vpop.f32.mrb[0].mxu0
    %2728 = vmatprep.mubr.f32.mxu0 0.0
    %v2729 = vand.u32 %v2534, 4294901760
    %2730 = vmatmul.mubr.f32.gmra.mrb[0].mxu0 %v2729
    %v2731 = vpop.f32.mrb[0].mxu0
    %v2732 = vadd.f32 %v2634, %v2731
    %v2733 = vpop.f32.mrb[0].mxu0
    %2734 = vdwg.mxu0
    %2735 = vmatprep.subr.mxu0 0.0
    %v2736 = vand.u32 %v2501, 4294901760
    %v2737 = vsub.f32 %v2501, %v2736
    %2738 = vmatpush1.msra.mxu0 %v2737
    %2739 = vmatprep.subr.mxu0 0.0
    %v2740 = vand.u32 %v2502, 4294901760
    %v2741 = vsub.f32 %v2502, %v2740
    %2742 = vmatpush1.msra.mxu0 %v2741
    %2743 = vmatprep.subr.mxu0 0.0
    %v2744 = vand.u32 %v2537, 4294901760
    %v2745 = vsub.f32 %v2537, %v2744
    %2746 = vmatpush1.msra.mxu0 %v2745
    %2747 = vmatprep.subr.mxu0 0.0
    %2748 = vmatpush1.msra.mxu0 0.0
    %2749 = vmatprep.subr.mxu0 0.0
    %2750 = vmatpush1.msra.mxu0 0.0
    %2751 = vmatprep.subr.mxu0 0.0
    %2752 = vmatpush1.msra.mxu0 0.0
    %2753 = vmatprep.subr.mxu0 0.0
    %2754 = vmatpush1.msra.mxu0 0.0
    %2755 = vmatprep.subr.mxu0 0.0
    %2756 = vmatpush1.msra.mxu0 0.0
    %2757 = vmatprep.subr.mxu0 0.0
    %2758 = vmatpush1.msra.mxu0 0.0
    %2759 = vmatprep.subr.mxu0 0.0
    %2760 = vmatpush1.msra.mxu0 0.0
    %2761 = vmatprep.subr.mxu0 0.0
    %2762 = vmatpush1.msra.mxu0 0.0
    %2763 = vmatprep.subr.mxu0 0.0
    %2764 = vmatpush1.msra.mxu0 0.0
    %2765 = vmatprep.subr.mxu0 0.0
    %2766 = vmatpush1.msra.mxu0 0.0
    %2767 = vmatprep.subr.mxu0 0.0
    %2768 = vmatpush1.msra.mxu0 0.0
    %2769 = vmatprep.subr.mxu0 0.0
    %2770 = vmatpush1.msra.mxu0 0.0
    %2771 = vmatprep.subr.mxu0 0.0
    %2772 = vmatpush1.msra.mxu0 0.0
    %2773 = vmatprep.subr.mxu0 0.0
    %2774 = vmatpush1.msra.mxu0 0.0
    %2775 = vmatprep.subr.mxu0 0.0
    %2776 = vmatpush1.msra.mxu0 0.0
    %2777 = vmatprep.subr.mxu0 0.0
    %2778 = vmatpush1.msra.mxu0 0.0
    %2779 = vmatprep.subr.mxu0 0.0
    %2780 = vmatpush1.msra.mxu0 0.0
    %2781 = vmatprep.subr.mxu0 0.0
    %2782 = vmatpush1.msra.mxu0 0.0
    %2783 = vmatprep.subr.mxu0 0.0
    %2784 = vmatpush1.msra.mxu0 0.0
    %2785 = vmatprep.subr.mxu0 0.0
    %2786 = vmatpush1.msra.mxu0 0.0
    %2787 = vmatprep.subr.mxu0 0.0
    %2788 = vmatpush1.msra.mxu0 0.0
    %2789 = vmatprep.subr.mxu0 0.0
    %2790 = vmatpush1.msra.mxu0 0.0
    %2791 = vmatprep.subr.mxu0 0.0
    %2792 = vmatpush1.msra.mxu0 0.0
    %2793 = vmatprep.subr.mxu0 0.0
    %2794 = vmatpush1.msra.mxu0 0.0
    %2795 = vmatprep.subr.mxu0 0.0
    %2796 = vmatpush1.msra.mxu0 0.0
    %2797 = vmatprep.subr.mxu0 0.0
    %2798 = vmatpush1.msra.mxu0 0.0
    %2799 = vmatprep.subr.mxu0 0.0
    %2800 = vmatpush1.msra.mxu0 0.0
    %2801 = vmatprep.subr.mxu0 0.0
    %2802 = vmatpush1.msra.mxu0 0.0
    %2803 = vmatprep.subr.mxu0 0.0
    %2804 = vmatpush1.msra.mxu0 0.0
    %2805 = vmatprep.mubr.f32.mxu0 0.0
    %v2806 = vand.u32 %v2528, 4294901760
    %v2807 = vsub.f32 %v2528, %v2806
    %2808 = vmatmul.mubr.f32.gmra.mrb[0].mxu0 %v2807
    %v2809 = vpop.f32.mrb[0].mxu0
    %v2810 = vadd.f32 %v2720, %v2809
    %v2811 = vpop.f32.mrb[0].mxu0
    %2812 = vmatprep.mubr.f32.mxu0 0.0
    %v2813 = vand.u32 %v2531, 4294901760
    %v2814 = vsub.f32 %v2531, %v2813
    %2815 = vmatmul.mubr.f32.gmra.mrb[0].mxu0 %v2814
    %v2816 = vpop.f32.mrb[0].mxu0
    %v2817 = vadd.f32 %v2726, %v2816
    %v2818 = vpop.f32.mrb[0].mxu0
    %2819 = vmatprep.mubr.f32.mxu0 0.0
    %v2820 = vand.u32 %v2534, 4294901760
    %v2821 = vsub.f32 %v2534, %v2820
    %2822 = vmatmul.mubr.f32.gmra.mrb[0].mxu0 %v2821
    %v2823 = vpop.f32.mrb[0].mxu0
    %v2824 = vadd.f32 %v2732, %v2823
    %v2825 = vpop.f32.mrb[0].mxu0
    %2826 = vdwg.mxu0
    %2827 = vmatprep.subr.mxu0 0.0
    %v2828 = vand.u32 %v2501, 4294901760
    %2829 = vmatpush1.msra.mxu0 %v2828
    %2830 = vmatprep.subr.mxu0 0.0
    %v2831 = vand.u32 %v2502, 4294901760
    %2832 = vmatpush1.msra.mxu0 %v2831
    %2833 = vmatprep.subr.mxu0 0.0
    %v2834 = vand.u32 %v2537, 4294901760
    %2835 = vmatpush1.msra.mxu0 %v2834
    %2836 = vmatprep.subr.mxu0 0.0
    %2837 = vmatpush1.msra.mxu0 0.0
    %2838 = vmatprep.subr.mxu0 0.0
    %2839 = vmatpush1.msra.mxu0 0.0
    %2840 = vmatprep.subr.mxu0 0.0
    %2841 = vmatpush1.msra.mxu0 0.0
    %2842 = vmatprep.subr.mxu0 0.0
    %2843 = vmatpush1.msra.mxu0 0.0
    %2844 = vmatprep.subr.mxu0 0.0
    %2845 = vmatpush1.msra.mxu0 0.0
    %2846 = vmatprep.subr.mxu0 0.0
    %2847 = vmatpush1.msra.mxu0 0.0
    %2848 = vmatprep.subr.mxu0 0.0
    %2849 = vmatpush1.msra.mxu0 0.0
    %2850 = vmatprep.subr.mxu0 0.0
    %2851 = vmatpush1.msra.mxu0 0.0
    %2852 = vmatprep.subr.mxu0 0.0
    %2853 = vmatpush1.msra.mxu0 0.0
    %2854 = vmatprep.subr.mxu0 0.0
    %2855 = vmatpush1.msra.mxu0 0.0
    %2856 = vmatprep.subr.mxu0 0.0
    %2857 = vmatpush1.msra.mxu0 0.0
    %2858 = vmatprep.subr.mxu0 0.0
    %2859 = vmatpush1.msra.mxu0 0.0
    %2860 = vmatprep.subr.mxu0 0.0
    %2861 = vmatpush1.msra.mxu0 0.0
    %2862 = vmatprep.subr.mxu0 0.0
    %2863 = vmatpush1.msra.mxu0 0.0
    %2864 = vmatprep.subr.mxu0 0.0
    %2865 = vmatpush1.msra.mxu0 0.0
    %2866 = vmatprep.subr.mxu0 0.0
    %2867 = vmatpush1.msra.mxu0 0.0
    %2868 = vmatprep.subr.mxu0 0.0
    %2869 = vmatpush1.msra.mxu0 0.0
    %2870 = vmatprep.subr.mxu0 0.0
    %2871 = vmatpush1.msra.mxu0 0.0
    %2872 = vmatprep.subr.mxu0 0.0
    %2873 = vmatpush1.msra.mxu0 0.0
    %2874 = vmatprep.subr.mxu0 0.0
    %2875 = vmatpush1.msra.mxu0 0.0
    %2876 = vmatprep.subr.mxu0 0.0
    %2877 = vmatpush1.msra.mxu0 0.0
    %2878 = vmatprep.subr.mxu0 0.0
    %2879 = vmatpush1.msra.mxu0 0.0
    %2880 = vmatprep.subr.mxu0 0.0
    %2881 = vmatpush1.msra.mxu0 0.0
    %2882 = vmatprep.subr.mxu0 0.0
    %2883 = vmatpush1.msra.mxu0 0.0
    %2884 = vmatprep.subr.mxu0 0.0
    %2885 = vmatpush1.msra.mxu0 0.0
    %2886 = vmatprep.subr.mxu0 0.0
    %2887 = vmatpush1.msra.mxu0 0.0
    %2888 = vmatprep.subr.mxu0 0.0
    %2889 = vmatpush1.msra.mxu0 0.0
    %2890 = vmatprep.subr.mxu0 0.0
    %2891 = vmatpush1.msra.mxu0 0.0
    %2892 = vmatprep.subr.mxu0 0.0
    %2893 = vmatpush1.msra.mxu0 0.0
    %2894 = vmatprep.mubr.f32.mxu0 0.0
    %v2895 = vand.u32 %v2528, 4294901760
    %v2896 = vsub.f32 %v2528, %v2895
    %v2897 = vand.u32 %v2896, 4294901760
    %2898 = vmatmul.mubr.f32.gmra.mrb[0].mxu0 %v2897
    %v2899 = vpop.f32.mrb[0].mxu0
    %v2900 = vadd.f32 %v2810, %v2899
    %v2901 = vpop.f32.mrb[0].mxu0
    %2902 = vmatprep.mubr.f32.mxu0 0.0
    %v2903 = vand.u32 %v2531, 4294901760
    %v2904 = vsub.f32 %v2531, %v2903
    %v2905 = vand.u32 %v2904, 4294901760
    %2906 = vmatmul.mubr.f32.gmra.mrb[0].mxu0 %v2905
    %v2907 = vpop.f32.mrb[0].mxu0
    %v2908 = vadd.f32 %v2817, %v2907
    %v2909 = vpop.f32.mrb[0].mxu0
    %2910 = vmatprep.mubr.f32.mxu0 0.0
    %v2911 = vand.u32 %v2534, 4294901760
    %v2912 = vsub.f32 %v2534, %v2911
    %v2913 = vand.u32 %v2912, 4294901760
    %2914 = vmatmul.mubr.f32.gmra.mrb[0].mxu0 %v2913
    %v2915 = vpop.f32.mrb[0].mxu0
    %v2916 = vadd.f32 %v2824, %v2915
    %v2917 = vpop.f32.mrb[0].mxu0
    %2918 = vdwg.mxu0
    %2919 = vmatprep.subr.mxu0 0.0
    %v2920 = vand.u32 %v2501, 4294901760
    %v2921 = vsub.f32 %v2501, %v2920
    %v2922 = vand.u32 %v2921, 4294901760
    %2923 = vmatpush1.msra.mxu0 %v2922
    %2924 = vmatprep.subr.mxu0 0.0
    %v2925 = vand.u32 %v2502, 4294901760
    %v2926 = vsub.f32 %v2502, %v2925
    %v2927 = vand.u32 %v2926, 4294901760
    %2928 = vmatpush1.msra.mxu0 %v2927
    %2929 = vmatprep.subr.mxu0 0.0
    %v2930 = vand.u32 %v2537, 4294901760
    %v2931 = vsub.f32 %v2537, %v2930
    %v2932 = vand.u32 %v2931, 4294901760
    %2933 = vmatpush1.msra.mxu0 %v2932
    %2934 = vmatprep.subr.mxu0 0.0
    %2935 = vmatpush1.msra.mxu0 0.0
    %2936 = vmatprep.subr.mxu0 0.0
    %2937 = vmatpush1.msra.mxu0 0.0
    %2938 = vmatprep.subr.mxu0 0.0
    %2939 = vmatpush1.msra.mxu0 0.0
    %2940 = vmatprep.subr.mxu0 0.0
    %2941 = vmatpush1.msra.mxu0 0.0
    %2942 = vmatprep.subr.mxu0 0.0
    %2943 = vmatpush1.msra.mxu0 0.0
    %2944 = vmatprep.subr.mxu0 0.0
    %2945 = vmatpush1.msra.mxu0 0.0
    %2946 = vmatprep.subr.mxu0 0.0
    %2947 = vmatpush1.msra.mxu0 0.0
    %2948 = vmatprep.subr.mxu0 0.0
    %2949 = vmatpush1.msra.mxu0 0.0
    %2950 = vmatprep.subr.mxu0 0.0
    %2951 = vmatpush1.msra.mxu0 0.0
    %2952 = vmatprep.subr.mxu0 0.0
    %2953 = vmatpush1.msra.mxu0 0.0
    %2954 = vmatprep.subr.mxu0 0.0
    %2955 = vmatpush1.msra.mxu0 0.0
    %2956 = vmatprep.subr.mxu0 0.0
    %2957 = vmatpush1.msra.mxu0 0.0
    %2958 = vmatprep.subr.mxu0 0.0
    %2959 = vmatpush1.msra.mxu0 0.0
    %2960 = vmatprep.subr.mxu0 0.0
    %2961 = vmatpush1.msra.mxu0 0.0
    %2962 = vmatprep.subr.mxu0 0.0
    %2963 = vmatpush1.msra.mxu0 0.0
    %2964 = vmatprep.subr.mxu0 0.0
    %2965 = vmatpush1.msra.mxu0 0.0
    %2966 = vmatprep.subr.mxu0 0.0
    %2967 = vmatpush1.msra.mxu0 0.0
    %2968 = vmatprep.subr.mxu0 0.0
    %2969 = vmatpush1.msra.mxu0 0.0
    %2970 = vmatprep.subr.mxu0 0.0
    %2971 = vmatpush1.msra.mxu0 0.0
    %2972 = vmatprep.subr.mxu0 0.0
    %2973 = vmatpush1.msra.mxu0 0.0
    %2974 = vmatprep.subr.mxu0 0.0
    %2975 = vmatpush1.msra.mxu0 0.0
    %2976 = vmatprep.subr.mxu0 0.0
    %2977 = vmatpush1.msra.mxu0 0.0
    %2978 = vmatprep.subr.mxu0 0.0
    %2979 = vmatpush1.msra.mxu0 0.0
    %2980 = vmatprep.subr.mxu0 0.0
    %2981 = vmatpush1.msra.mxu0 0.0
    %2982 = vmatprep.subr.mxu0 0.0
    %2983 = vmatpush1.msra.mxu0 0.0
    %2984 = vmatprep.subr.mxu0 0.0
    %2985 = vmatpush1.msra.mxu0 0.0
    %2986 = vmatprep.subr.mxu0 0.0
    %2987 = vmatpush1.msra.mxu0 0.0
    %2988 = vmatprep.subr.mxu0 0.0
    %2989 = vmatpush1.msra.mxu0 0.0
    %2990 = vmatprep.subr.mxu0 0.0
    %2991 = vmatpush1.msra.mxu0 0.0
    %2992 = vmatprep.mubr.f32.mxu0 0.0
    %v2993 = vand.u32 %v2528, 4294901760
    %2994 = vmatmul.mubr.f32.gmra.mrb[0].mxu0 %v2993
    %v2995 = vpop.f32.mrb[0].mxu0
    %v2996 = vadd.f32 %v2900, %v2995
    %v2997 = vpop.f32.mrb[0].mxu0
    %2998 = vmatprep.mubr.f32.mxu0 0.0
    %v2999 = vand.u32 %v2531, 4294901760
    %3000 = vmatmul.mubr.f32.gmra.mrb[0].mxu0 %v2999
    %v3001 = vpop.f32.mrb[0].mxu0
    %v3002 = vadd.f32 %v2908, %v3001
    %v3003 = vpop.f32.mrb[0].mxu0
    %3004 = vmatprep.mubr.f32.mxu0 0.0
    %v3005 = vand.u32 %v2534, 4294901760
    %3006 = vmatmul.mubr.f32.gmra.mrb[0].mxu0 %v3005
    %v3007 = vpop.f32.mrb[0].mxu0
    %v3008 = vadd.f32 %v2916, %v3007
    %v3009 = vpop.f32.mrb[0].mxu0
    %3010 = vdwg.mxu0
    %3011 = vmatprep.subr.mxu0 0.0
    %v3012 = vand.u32 %v2501, 4294901760
    %3013 = vmatpush1.msra.mxu0 %v3012
    %3014 = vmatprep.subr.mxu0 0.0
    %v3015 = vand.u32 %v2502, 4294901760
    %3016 = vmatpush1.msra.mxu0 %v3015
    %3017 = vmatprep.subr.mxu0 0.0
    %v3018 = vand.u32 %v2537, 4294901760
    %3019 = vmatpush1.msra.mxu0 %v3018
    %3020 = vmatprep.subr.mxu0 0.0
    %3021 = vmatpush1.msra.mxu0 0.0
    %3022 = vmatprep.subr.mxu0 0.0
    %3023 = vmatpush1.msra.mxu0 0.0
    %3024 = vmatprep.subr.mxu0 0.0
    %3025 = vmatpush1.msra.mxu0 0.0
    %3026 = vmatprep.subr.mxu0 0.0
    %3027 = vmatpush1.msra.mxu0 0.0
    %3028 = vmatprep.subr.mxu0 0.0
    %3029 = vmatpush1.msra.mxu0 0.0
    %3030 = vmatprep.subr.mxu0 0.0
    %3031 = vmatpush1.msra.mxu0 0.0
    %3032 = vmatprep.subr.mxu0 0.0
    %3033 = vmatpush1.msra.mxu0 0.0
    %3034 = vmatprep.subr.mxu0 0.0
    %3035 = vmatpush1.msra.mxu0 0.0
    %3036 = vmatprep.subr.mxu0 0.0
    %3037 = vmatpush1.msra.mxu0 0.0
    %3038 = vmatprep.subr.mxu0 0.0
    %3039 = vmatpush1.msra.mxu0 0.0
    %3040 = vmatprep.subr.mxu0 0.0
    %3041 = vmatpush1.msra.mxu0 0.0
    %3042 = vmatprep.subr.mxu0 0.0
    %3043 = vmatpush1.msra.mxu0 0.0
    %3044 = vmatprep.subr.mxu0 0.0
    %3045 = vmatpush1.msra.mxu0 0.0
    %3046 = vmatprep.subr.mxu0 0.0
    %3047 = vmatpush1.msra.mxu0 0.0
    %3048 = vmatprep.subr.mxu0 0.0
    %3049 = vmatpush1.msra.mxu0 0.0
    %3050 = vmatprep.subr.mxu0 0.0
    %3051 = vmatpush1.msra.mxu0 0.0
    %3052 = vmatprep.subr.mxu0 0.0
    %3053 = vmatpush1.msra.mxu0 0.0
    %3054 = vmatprep.subr.mxu0 0.0
    %3055 = vmatpush1.msra.mxu0 0.0
    %3056 = vmatprep.subr.mxu0 0.0
    %3057 = vmatpush1.msra.mxu0 0.0
    %3058 = vmatprep.subr.mxu0 0.0
    %3059 = vmatpush1.msra.mxu0 0.0
    %3060 = vmatprep.subr.mxu0 0.0
    %3061 = vmatpush1.msra.mxu0 0.0
    %3062 = vmatprep.subr.mxu0 0.0
    %3063 = vmatpush1.msra.mxu0 0.0
    %3064 = vmatprep.subr.mxu0 0.0
    %3065 = vmatpush1.msra.mxu0 0.0
    %3066 = vmatprep.subr.mxu0 0.0
    %3067 = vmatpush1.msra.mxu0 0.0
    %3068 = vmatprep.subr.mxu0 0.0
    %3069 = vmatpush1.msra.mxu0 0.0
    %3070 = vmatprep.subr.mxu0 0.0
    %3071 = vmatpush1.msra.mxu0 0.0
    %3072 = vmatprep.subr.mxu0 0.0
    %3073 = vmatpush1.msra.mxu0 0.0
    %3074 = vmatprep.subr.mxu0 0.0
    %3075 = vmatpush1.msra.mxu0 0.0
    %3076 = vmatprep.subr.mxu0 0.0
    %3077 = vmatpush1.msra.mxu0 0.0
    %3078 = vmatprep.mubr.f32.mxu0 0.0
    %v3079 = vand.u32 %v2528, 4294901760
    %3080 = vmatmul.mubr.f32.gmra.mrb[0].mxu0 %v3079
    %v3081 = vpop.f32.mrb[0].mxu0
    %v3082 = vadd.f32 %v2996, %v3081
    %v3083 = vpop.f32.mrb[0].mxu0
    %3084 = vmatprep.mubr.f32.mxu0 0.0
    %v3085 = vand.u32 %v2531, 4294901760
    %3086 = vmatmul.mubr.f32.gmra.mrb[0].mxu0 %v3085
    %v3087 = vpop.f32.mrb[0].mxu0
    %v3088 = vadd.f32 %v3002, %v3087
    %v3089 = vpop.f32.mrb[0].mxu0
    %3090 = vmatprep.mubr.f32.mxu0 0.0
    %v3091 = vand.u32 %v2534, 4294901760
    %3092 = vmatmul.mubr.f32.gmra.mrb[0].mxu0 %v3091
    %v3093 = vpop.f32.mrb[0].mxu0
    %v3094 = vadd.f32 %v3008, %v3093
    %v3095 = vpop.f32.mrb[0].mxu0
    %3096 = vdwg.mxu0
    %v3097 = vtanh.pop %v3082
    %v3098 = vtanh.pop %v3088
    %v3099 = vtanh.pop %v3094
    %s3100 = scalar_lea.vmem %s6, 48
    %v3101 = vld [vmem:[%s3100] sm:$0xff]
    %v3102 = vld [vmem:[%s3100 + $0x8] sm:$0xff]
    %v3103 = vld [vmem:[%s3100 + $0x10] sm:$0xf]
    %s3104 = scalar_lea.vmem %s7, 48
    %v3105 = vld [vmem:[%s3104] sm:$0xff]
    %v3106 = vld [vmem:[%s3104 + $0x8] sm:$0xff]
    %v3107 = vld [vmem:[%s3104 + $0x10] sm:$0xf]
    %3109 = vset.pattern.permute.xlu0 0
    %3110 = vperm.xlu0 %3109, %v3105
    %v3111 = vpop.permute.xlu0 %3110
    %3114 = vset.pattern.permute.xlu0 0
    %3115 = vperm.xlu0 %3114, %v3106
    %v3116 = vpop.permute.xlu0 %3115
    %3119 = vset.pattern.permute.xlu0 0
    %3120 = vperm.xlu0 %3119, %v3107
    %v3121 = vpop.permute.xlu0 %3120
    %v3124 = vsel %vm137, %v3101, 0
    %v3127 = vsel %vm137, %v3102, 0
    %v3130 = vsel %vm137, %v3103, 0
    %v3133 = vsel %vm147, %v3099, 0
    %3135 = vmatprep.subr.mxu0 0.0
    %v3136 = vand.u32 %v3097, 4294901760
    %3137 = vmatpush1.msra.mxu0 %v3136
    %3138 = vmatprep.subr.mxu0 0.0
    %v3139 = vand.u32 %v3098, 4294901760
    %3140 = vmatpush1.msra.mxu0 %v3139
    %3141 = vmatprep.subr.mxu0 0.0
    %v3142 = vand.u32 %v3133, 4294901760
    %3143 = vmatpush1.msra.mxu0 %v3142
    %3144 = vmatprep.subr.mxu0 0.0
    %3145 = vmatpush1.msra.mxu0 0.0
    %3146 = vmatprep.subr.mxu0 0.0
    %3147 = vmatpush1.msra.mxu0 0.0
    %3148 = vmatprep.subr.mxu0 0.0
    %3149 = vmatpush1.msra.mxu0 0.0
    %3150 = vmatprep.subr.mxu0 0.0
    %3151 = vmatpush1.msra.mxu0 0.0
    %3152 = vmatprep.subr.mxu0 0.0
    %3153 = vmatpush1.msra.mxu0 0.0
    %3154 = vmatprep.subr.mxu0 0.0
    %3155 = vmatpush1.msra.mxu0 0.0
    %3156 = vmatprep.subr.mxu0 0.0
    %3157 = vmatpush1.msra.mxu0 0.0
    %3158 = vmatprep.subr.mxu0 0.0
    %3159 = vmatpush1.msra.mxu0 0.0
    %3160 = vmatprep.subr.mxu0 0.0
    %3161 = vmatpush1.msra.mxu0 0.0
    %3162 = vmatprep.subr.mxu0 0.0
    %3163 = vmatpush1.msra.mxu0 0.0
    %3164 = vmatprep.subr.mxu0 0.0
    %3165 = vmatpush1.msra.mxu0 0.0
    %3166 = vmatprep.subr.mxu0 0.0
    %3167 = vmatpush1.msra.mxu0 0.0
    %3168 = vmatprep.subr.mxu0 0.0
    %3169 = vmatpush1.msra.mxu0 0.0
    %3170 = vmatprep.subr.mxu0 0.0
    %3171 = vmatpush1.msra.mxu0 0.0
    %3172 = vmatprep.subr.mxu0 0.0
    %3173 = vmatpush1.msra.mxu0 0.0
    %3174 = vmatprep.subr.mxu0 0.0
    %3175 = vmatpush1.msra.mxu0 0.0
    %3176 = vmatprep.subr.mxu0 0.0
    %3177 = vmatpush1.msra.mxu0 0.0
    %3178 = vmatprep.subr.mxu0 0.0
    %3179 = vmatpush1.msra.mxu0 0.0
    %3180 = vmatprep.subr.mxu0 0.0
    %3181 = vmatpush1.msra.mxu0 0.0
    %3182 = vmatprep.subr.mxu0 0.0
    %3183 = vmatpush1.msra.mxu0 0.0
    %3184 = vmatprep.subr.mxu0 0.0
    %3185 = vmatpush1.msra.mxu0 0.0
    %3186 = vmatprep.subr.mxu0 0.0
    %3187 = vmatpush1.msra.mxu0 0.0
    %3188 = vmatprep.subr.mxu0 0.0
    %3189 = vmatpush1.msra.mxu0 0.0
    %3190 = vmatprep.subr.mxu0 0.0
    %3191 = vmatpush1.msra.mxu0 0.0
    %3192 = vmatprep.subr.mxu0 0.0
    %3193 = vmatpush1.msra.mxu0 0.0
    %3194 = vmatprep.subr.mxu0 0.0
    %3195 = vmatpush1.msra.mxu0 0.0
    %3196 = vmatprep.subr.mxu0 0.0
    %3197 = vmatpush1.msra.mxu0 0.0
    %3198 = vmatprep.subr.mxu0 0.0
    %3199 = vmatpush1.msra.mxu0 0.0
    %3200 = vmatprep.subr.mxu0 0.0
    %3201 = vmatpush1.msra.mxu0 0.0
    %3202 = vmatprep.mubr.f32.mxu0 0.0
    %v3203 = vand.u32 %v3124, 4294901760
    %v3204 = vsub.f32 %v3124, %v3203
    %v3205 = vand.u32 %v3204, 4294901760
    %v3206 = vsub.f32 %v3204, %v3205
    %v3207 = vand.u32 %v3206, 4294901760
    %3208 = vmatmul.mubr.f32.gmra.mrb[0].mxu0 %v3207
    %v3209 = vpop.f32.mrb[0].mxu0
    %v3210 = vadd.f32 %v3111, %v3209
    %v3211 = vpop.f32.mrb[0].mxu0
    %3212 = vmatprep.mubr.f32.mxu0 0.0
    %v3213 = vand.u32 %v3127, 4294901760
    %v3214 = vsub.f32 %v3127, %v3213
    %v3215 = vand.u32 %v3214, 4294901760
    %v3216 = vsub.f32 %v3214, %v3215
    %v3217 = vand.u32 %v3216, 4294901760
    %3218 = vmatmul.mubr.f32.gmra.mrb[0].mxu0 %v3217
    %v3219 = vpop.f32.mrb[0].mxu0
    %v3220 = vadd.f32 %v3116, %v3219
    %v3221 = vpop.f32.mrb[0].mxu0
    %3222 = vmatprep.mubr.f32.mxu0 0.0
    %v3223 = vand.u32 %v3130, 4294901760
    %v3224 = vsub.f32 %v3130, %v3223
    %v3225 = vand.u32 %v3224, 4294901760
    %v3226 = vsub.f32 %v3224, %v3225
    %v3227 = vand.u32 %v3226, 4294901760
    %3228 = vmatmul.mubr.f32.gmra.mrb[0].mxu0 %v3227
    %v3229 = vpop.f32.mrb[0].mxu0
    %v3230 = vadd.f32 %v3121, %v3229
    %v3231 = vpop.f32.mrb[0].mxu0
    %3232 = vdwg.mxu0
    %3233 = vmatprep.subr.mxu0 0.0
    %v3234 = vand.u32 %v3097, 4294901760
    %v3235 = vsub.f32 %v3097, %v3234
    %v3236 = vand.u32 %v3235, 4294901760
    %v3237 = vsub.f32 %v3235, %v3236
    %v3238 = vand.u32 %v3237, 4294901760
    %3239 = vmatpush1.msra.mxu0 %v3238
    %3240 = vmatprep.subr.mxu0 0.0
    %v3241 = vand.u32 %v3098, 4294901760
    %v3242 = vsub.f32 %v3098, %v3241
    %v3243 = vand.u32 %v3242, 4294901760
    %v3244 = vsub.f32 %v3242, %v3243
    %v3245 = vand.u32 %v3244, 4294901760
    %3246 = vmatpush1.msra.mxu0 %v3245
    %3247 = vmatprep.subr.mxu0 0.0
    %v3248 = vand.u32 %v3133, 4294901760
    %v3249 = vsub.f32 %v3133, %v3248
    %v3250 = vand.u32 %v3249, 4294901760
    %v3251 = vsub.f32 %v3249, %v3250
    %v3252 = vand.u32 %v3251, 4294901760
    %3253 = vmatpush1.msra.mxu0 %v3252
    %3254 = vmatprep.subr.mxu0 0.0
    %3255 = vmatpush1.msra.mxu0 0.0
    %3256 = vmatprep.subr.mxu0 0.0
    %3257 = vmatpush1.msra.mxu0 0.0
    %3258 = vmatprep.subr.mxu0 0.0
    %3259 = vmatpush1.msra.mxu0 0.0
    %3260 = vmatprep.subr.mxu0 0.0
    %3261 = vmatpush1.msra.mxu0 0.0
    %3262 = vmatprep.subr.mxu0 0.0
    %3263 = vmatpush1.msra.mxu0 0.0
    %3264 = vmatprep.subr.mxu0 0.0
    %3265 = vmatpush1.msra.mxu0 0.0
    %3266 = vmatprep.subr.mxu0 0.0
    %3267 = vmatpush1.msra.mxu0 0.0
    %3268 = vmatprep.subr.mxu0 0.0
    %3269 = vmatpush1.msra.mxu0 0.0
    %3270 = vmatprep.subr.mxu0 0.0
    %3271 = vmatpush1.msra.mxu0 0.0
    %3272 = vmatprep.subr.mxu0 0.0
    %3273 = vmatpush1.msra.mxu0 0.0
    %3274 = vmatprep.subr.mxu0 0.0
    %3275 = vmatpush1.msra.mxu0 0.0
    %3276 = vmatprep.subr.mxu0 0.0
    %3277 = vmatpush1.msra.mxu0 0.0
    %3278 = vmatprep.subr.mxu0 0.0
    %3279 = vmatpush1.msra.mxu0 0.0
    %3280 = vmatprep.subr.mxu0 0.0
    %3281 = vmatpush1.msra.mxu0 0.0
    %3282 = vmatprep.subr.mxu0 0.0
    %3283 = vmatpush1.msra.mxu0 0.0
    %3284 = vmatprep.subr.mxu0 0.0
    %3285 = vmatpush1.msra.mxu0 0.0
    %3286 = vmatprep.subr.mxu0 0.0
    %3287 = vmatpush1.msra.mxu0 0.0
    %3288 = vmatprep.subr.mxu0 0.0
    %3289 = vmatpush1.msra.mxu0 0.0
    %3290 = vmatprep.subr.mxu0 0.0
    %3291 = vmatpush1.msra.mxu0 0.0
    %3292 = vmatprep.subr.mxu0 0.0
    %3293 = vmatpush1.msra.mxu0 0.0
    %3294 = vmatprep.subr.mxu0 0.0
    %3295 = vmatpush1.msra.mxu0 0.0
    %3296 = vmatprep.subr.mxu0 0.0
    %3297 = vmatpush1.msra.mxu0 0.0
    %3298 = vmatprep.subr.mxu0 0.0
    %3299 = vmatpush1.msra.mxu0 0.0
    %3300 = vmatprep.subr.mxu0 0.0
    %3301 = vmatpush1.msra.mxu0 0.0
    %3302 = vmatprep.subr.mxu0 0.0
    %3303 = vmatpush1.msra.mxu0 0.0
    %3304 = vmatprep.subr.mxu0 0.0
    %3305 = vmatpush1.msra.mxu0 0.0
    %3306 = vmatprep.subr.mxu0 0.0
    %3307 = vmatpush1.msra.mxu0 0.0
    %3308 = vmatprep.subr.mxu0 0.0
    %3309 = vmatpush1.msra.mxu0 0.0
    %3310 = vmatprep.subr.mxu0 0.0
    %3311 = vmatpush1.msra.mxu0 0.0
    %3312 = vmatprep.mubr.f32.mxu0 0.0
    %v3313 = vand.u32 %v3124, 4294901760
    %3314 = vmatmul.mubr.f32.gmra.mrb[0].mxu0 %v3313
    %v3315 = vpop.f32.mrb[0].mxu0
    %v3316 = vadd.f32 %v3210, %v3315
    %v3317 = vpop.f32.mrb[0].mxu0
    %3318 = vmatprep.mubr.f32.mxu0 0.0
    %v3319 = vand.u32 %v3127, 4294901760
    %3320 = vmatmul.mubr.f32.gmra.mrb[0].mxu0 %v3319
    %v3321 = vpop.f32.mrb[0].mxu0
    %v3322 = vadd.f32 %v3220, %v3321
    %v3323 = vpop.f32.mrb[0].mxu0
    %3324 = vmatprep.mubr.f32.mxu0 0.0
    %v3325 = vand.u32 %v3130, 4294901760
    %3326 = vmatmul.mubr.f32.gmra.mrb[0].mxu0 %v3325
    %v3327 = vpop.f32.mrb[0].mxu0
    %v3328 = vadd.f32 %v3230, %v3327
    %v3329 = vpop.f32.mrb[0].mxu0
    %3330 = vdwg.mxu0
    %3331 = vmatprep.subr.mxu0 0.0
    %v3332 = vand.u32 %v3097, 4294901760
    %v3333 = vsub.f32 %v3097, %v3332
    %3334 = vmatpush1.msra.mxu0 %v3333
    %3335 = vmatprep.subr.mxu0 0.0
    %v3336 = vand.u32 %v3098, 4294901760
    %v3337 = vsub.f32 %v3098, %v3336
    %3338 = vmatpush1.msra.mxu0 %v3337
    %3339 = vmatprep.subr.mxu0 0.0
    %v3340 = vand.u32 %v3133, 4294901760
    %v3341 = vsub.f32 %v3133, %v3340
    %3342 = vmatpush1.msra.mxu0 %v3341
    %3343 = vmatprep.subr.mxu0 0.0
    %3344 = vmatpush1.msra.mxu0 0.0
    %3345 = vmatprep.subr.mxu0 0.0
    %3346 = vmatpush1.msra.mxu0 0.0
    %3347 = vmatprep.subr.mxu0 0.0
    %3348 = vmatpush1.msra.mxu0 0.0
    %3349 = vmatprep.subr.mxu0 0.0
    %3350 = vmatpush1.msra.mxu0 0.0
    %3351 = vmatprep.subr.mxu0 0.0
    %3352 = vmatpush1.msra.mxu0 0.0
    %3353 = vmatprep.subr.mxu0 0.0
    %3354 = vmatpush1.msra.mxu0 0.0
    %3355 = vmatprep.subr.mxu0 0.0
    %3356 = vmatpush1.msra.mxu0 0.0
    %3357 = vmatprep.subr.mxu0 0.0
    %3358 = vmatpush1.msra.mxu0 0.0
    %3359 = vmatprep.subr.mxu0 0.0
    %3360 = vmatpush1.msra.mxu0 0.0
    %3361 = vmatprep.subr.mxu0 0.0
    %3362 = vmatpush1.msra.mxu0 0.0
    %3363 = vmatprep.subr.mxu0 0.0
    %3364 = vmatpush1.msra.mxu0 0.0
    %3365 = vmatprep.subr.mxu0 0.0
    %3366 = vmatpush1.msra.mxu0 0.0
    %3367 = vmatprep.subr.mxu0 0.0
    %3368 = vmatpush1.msra.mxu0 0.0
    %3369 = vmatprep.subr.mxu0 0.0
    %3370 = vmatpush1.msra.mxu0 0.0
    %3371 = vmatprep.subr.mxu0 0.0
    %3372 = vmatpush1.msra.mxu0 0.0
    %3373 = vmatprep.subr.mxu0 0.0
    %3374 = vmatpush1.msra.mxu0 0.0
    %3375 = vmatprep.subr.mxu0 0.0
    %3376 = vmatpush1.msra.mxu0 0.0
    %3377 = vmatprep.subr.mxu0 0.0
    %3378 = vmatpush1.msra.mxu0 0.0
    %3379 = vmatprep.subr.mxu0 0.0
    %3380 = vmatpush1.msra.mxu0 0.0
    %3381 = vmatprep.subr.mxu0 0.0
    %3382 = vmatpush1.msra.mxu0 0.0
    %3383 = vmatprep.subr.mxu0 0.0
    %3384 = vmatpush1.msra.mxu0 0.0
    %3385 = vmatprep.subr.mxu0 0.0
    %3386 = vmatpush1.msra.mxu0 0.0
    %3387 = vmatprep.subr.mxu0 0.0
    %3388 = vmatpush1.msra.mxu0 0.0
    %3389 = vmatprep.subr.mxu0 0.0
    %3390 = vmatpush1.msra.mxu0 0.0
    %3391 = vmatprep.subr.mxu0 0.0
    %3392 = vmatpush1.msra.mxu0 0.0
    %3393 = vmatprep.subr.mxu0 0.0
    %3394 = vmatpush1.msra.mxu0 0.0
    %3395 = vmatprep.subr.mxu0 0.0
    %3396 = vmatpush1.msra.mxu0 0.0
    %3397 = vmatprep.subr.mxu0 0.0
    %3398 = vmatpush1.msra.mxu0 0.0
    %3399 = vmatprep.subr.mxu0 0.0
    %3400 = vmatpush1.msra.mxu0 0.0
    %3401 = vmatprep.mubr.f32.mxu0 0.0
    %v3402 = vand.u32 %v3124, 4294901760
    %v3403 = vsub.f32 %v3124, %v3402
    %3404 = vmatmul.mubr.f32.gmra.mrb[0].mxu0 %v3403
    %v3405 = vpop.f32.mrb[0].mxu0
    %v3406 = vadd.f32 %v3316, %v3405
    %v3407 = vpop.f32.mrb[0].mxu0
    %3408 = vmatprep.mubr.f32.mxu0 0.0
    %v3409 = vand.u32 %v3127, 4294901760
    %v3410 = vsub.f32 %v3127, %v3409
    %3411 = vmatmul.mubr.f32.gmra.mrb[0].mxu0 %v3410
    %v3412 = vpop.f32.mrb[0].mxu0
    %v3413 = vadd.f32 %v3322, %v3412
    %v3414 = vpop.f32.mrb[0].mxu0
    %3415 = vmatprep.mubr.f32.mxu0 0.0
    %v3416 = vand.u32 %v3130, 4294901760
    %v3417 = vsub.f32 %v3130, %v3416
    %3418 = vmatmul.mubr.f32.gmra.mrb[0].mxu0 %v3417
    %v3419 = vpop.f32.mrb[0].mxu0
    %v3420 = vadd.f32 %v3328, %v3419
    %v3421 = vpop.f32.mrb[0].mxu0
    %3422 = vdwg.mxu0
    %3423 = vmatprep.subr.mxu0 0.0
    %v3424 = vand.u32 %v3097, 4294901760
    %3425 = vmatpush1.msra.mxu0 %v3424
    %3426 = vmatprep.subr.mxu0 0.0
    %v3427 = vand.u32 %v3098, 4294901760
    %3428 = vmatpush1.msra.mxu0 %v3427
    %3429 = vmatprep.subr.mxu0 0.0
    %v3430 = vand.u32 %v3133, 4294901760
    %3431 = vmatpush1.msra.mxu0 %v3430
    %3432 = vmatprep.subr.mxu0 0.0
    %3433 = vmatpush1.msra.mxu0 0.0
    %3434 = vmatprep.subr.mxu0 0.0
    %3435 = vmatpush1.msra.mxu0 0.0
    %3436 = vmatprep.subr.mxu0 0.0
    %3437 = vmatpush1.msra.mxu0 0.0
    %3438 = vmatprep.subr.mxu0 0.0
    %3439 = vmatpush1.msra.mxu0 0.0
    %3440 = vmatprep.subr.mxu0 0.0
    %3441 = vmatpush1.msra.mxu0 0.0
    %3442 = vmatprep.subr.mxu0 0.0
    %3443 = vmatpush1.msra.mxu0 0.0
    %3444 = vmatprep.subr.mxu0 0.0
    %3445 = vmatpush1.msra.mxu0 0.0
    %3446 = vmatprep.subr.mxu0 0.0
    %3447 = vmatpush1.msra.mxu0 0.0
    %3448 = vmatprep.subr.mxu0 0.0
    %3449 = vmatpush1.msra.mxu0 0.0
    %3450 = vmatprep.subr.mxu0 0.0
    %3451 = vmatpush1.msra.mxu0 0.0
    %3452 = vmatprep.subr.mxu0 0.0
    %3453 = vmatpush1.msra.mxu0 0.0
    %3454 = vmatprep.subr.mxu0 0.0
    %3455 = vmatpush1.msra.mxu0 0.0
    %3456 = vmatprep.subr.mxu0 0.0
    %3457 = vmatpush1.msra.mxu0 0.0
    %3458 = vmatprep.subr.mxu0 0.0
    %3459 = vmatpush1.msra.mxu0 0.0
    %3460 = vmatprep.subr.mxu0 0.0
    %3461 = vmatpush1.msra.mxu0 0.0
    %3462 = vmatprep.subr.mxu0 0.0
    %3463 = vmatpush1.msra.mxu0 0.0
    %3464 = vmatprep.subr.mxu0 0.0
    %3465 = vmatpush1.msra.mxu0 0.0
    %3466 = vmatprep.subr.mxu0 0.0
    %3467 = vmatpush1.msra.mxu0 0.0
    %3468 = vmatprep.subr.mxu0 0.0
    %3469 = vmatpush1.msra.mxu0 0.0
    %3470 = vmatprep.subr.mxu0 0.0
    %3471 = vmatpush1.msra.mxu0 0.0
    %3472 = vmatprep.subr.mxu0 0.0
    %3473 = vmatpush1.msra.mxu0 0.0
    %3474 = vmatprep.subr.mxu0 0.0
    %3475 = vmatpush1.msra.mxu0 0.0
    %3476 = vmatprep.subr.mxu0 0.0
    %3477 = vmatpush1.msra.mxu0 0.0
    %3478 = vmatprep.subr.mxu0 0.0
    %3479 = vmatpush1.msra.mxu0 0.0
    %3480 = vmatprep.subr.mxu0 0.0
    %3481 = vmatpush1.msra.mxu0 0.0
    %3482 = vmatprep.subr.mxu0 0.0
    %3483 = vmatpush1.msra.mxu0 0.0
    %3484 = vmatprep.subr.mxu0 0.0
    %3485 = vmatpush1.msra.mxu0 0.0
    %3486 = vmatprep.subr.mxu0 0.0
    %3487 = vmatpush1.msra.mxu0 0.0
    %3488 = vmatprep.subr.mxu0 0.0
    %3489 = vmatpush1.msra.mxu0 0.0
    %3490 = vmatprep.mubr.f32.mxu0 0.0
    %v3491 = vand.u32 %v3124, 4294901760
    %v3492 = vsub.f32 %v3124, %v3491
    %v3493 = vand.u32 %v3492, 4294901760
    %3494 = vmatmul.mubr.f32.gmra.mrb[0].mxu0 %v3493
    %v3495 = vpop.f32.mrb[0].mxu0
    %v3496 = vadd.f32 %v3406, %v3495
    %v3497 = vpop.f32.mrb[0].mxu0
    %3498 = vmatprep.mubr.f32.mxu0 0.0
    %v3499 = vand.u32 %v3127, 4294901760
    %v3500 = vsub.f32 %v3127, %v3499
    %v3501 = vand.u32 %v3500, 4294901760
    %3502 = vmatmul.mubr.f32.gmra.mrb[0].mxu0 %v3501
    %v3503 = vpop.f32.mrb[0].mxu0
    %v3504 = vadd.f32 %v3413, %v3503
    %v3505 = vpop.f32.mrb[0].mxu0
    %3506 = vmatprep.mubr.f32.mxu0 0.0
    %v3507 = vand.u32 %v3130, 4294901760
    %v3508 = vsub.f32 %v3130, %v3507
    %v3509 = vand.u32 %v3508, 4294901760
    %3510 = vmatmul.mubr.f32.gmra.mrb[0].mxu0 %v3509
    %v3511 = vpop.f32.mrb[0].mxu0
    %v3512 = vadd.f32 %v3420, %v3511
    %v3513 = vpop.f32.mrb[0].mxu0
    %3514 = vdwg.mxu0
    %3515 = vmatprep.subr.mxu0 0.0
    %v3516 = vand.u32 %v3097, 4294901760
    %v3517 = vsub.f32 %v3097, %v3516
    %v3518 = vand.u32 %v3517, 4294901760
    %3519 = vmatpush1.msra.mxu0 %v3518
    %3520 = vmatprep.subr.mxu0 0.0
    %v3521 = vand.u32 %v3098, 4294901760
    %v3522 = vsub.f32 %v3098, %v3521
    %v3523 = vand.u32 %v3522, 4294901760
    %3524 = vmatpush1.msra.mxu0 %v3523
    %3525 = vmatprep.subr.mxu0 0.0
    %v3526 = vand.u32 %v3133, 4294901760
    %v3527 = vsub.f32 %v3133, %v3526
    %v3528 = vand.u32 %v3527, 4294901760
    %3529 = vmatpush1.msra.mxu0 %v3528
    %3530 = vmatprep.subr.mxu0 0.0
    %3531 = vmatpush1.msra.mxu0 0.0
    %3532 = vmatprep.subr.mxu0 0.0
    %3533 = vmatpush1.msra.mxu0 0.0
    %3534 = vmatprep.subr.mxu0 0.0
    %3535 = vmatpush1.msra.mxu0 0.0
    %3536 = vmatprep.subr.mxu0 0.0
    %3537 = vmatpush1.msra.mxu0 0.0
    %3538 = vmatprep.subr.mxu0 0.0
    %3539 = vmatpush1.msra.mxu0 0.0
    %3540 = vmatprep.subr.mxu0 0.0
    %3541 = vmatpush1.msra.mxu0 0.0
    %3542 = vmatprep.subr.mxu0 0.0
    %3543 = vmatpush1.msra.mxu0 0.0
    %3544 = vmatprep.subr.mxu0 0.0
    %3545 = vmatpush1.msra.mxu0 0.0
    %3546 = vmatprep.subr.mxu0 0.0
    %3547 = vmatpush1.msra.mxu0 0.0
    %3548 = vmatprep.subr.mxu0 0.0
    %3549 = vmatpush1.msra.mxu0 0.0
    %3550 = vmatprep.subr.mxu0 0.0
    %3551 = vmatpush1.msra.mxu0 0.0
    %3552 = vmatprep.subr.mxu0 0.0
    %3553 = vmatpush1.msra.mxu0 0.0
    %3554 = vmatprep.subr.mxu0 0.0
    %3555 = vmatpush1.msra.mxu0 0.0
    %3556 = vmatprep.subr.mxu0 0.0
    %3557 = vmatpush1.msra.mxu0 0.0
    %3558 = vmatprep.subr.mxu0 0.0
    %3559 = vmatpush1.msra.mxu0 0.0
    %3560 = vmatprep.subr.mxu0 0.0
    %3561 = vmatpush1.msra.mxu0 0.0
    %3562 = vmatprep.subr.mxu0 0.0
    %3563 = vmatpush1.msra.mxu0 0.0
    %3564 = vmatprep.subr.mxu0 0.0
    %3565 = vmatpush1.msra.mxu0 0.0
    %3566 = vmatprep.subr.mxu0 0.0
    %3567 = vmatpush1.msra.mxu0 0.0
    %3568 = vmatprep.subr.mxu0 0.0
    %3569 = vmatpush1.msra.mxu0 0.0
    %3570 = vmatprep.subr.mxu0 0.0
    %3571 = vmatpush1.msra.mxu0 0.0
    %3572 = vmatprep.subr.mxu0 0.0
    %3573 = vmatpush1.msra.mxu0 0.0
    %3574 = vmatprep.subr.mxu0 0.0
    %3575 = vmatpush1.msra.mxu0 0.0
    %3576 = vmatprep.subr.mxu0 0.0
    %3577 = vmatpush1.msra.mxu0 0.0
    %3578 = vmatprep.subr.mxu0 0.0
    %3579 = vmatpush1.msra.mxu0 0.0
    %3580 = vmatprep.subr.mxu0 0.0
    %3581 = vmatpush1.msra.mxu0 0.0
    %3582 = vmatprep.subr.mxu0 0.0
    %3583 = vmatpush1.msra.mxu0 0.0
    %3584 = vmatprep.subr.mxu0 0.0
    %3585 = vmatpush1.msra.mxu0 0.0
    %3586 = vmatprep.subr.mxu0 0.0
    %3587 = vmatpush1.msra.mxu0 0.0
    %3588 = vmatprep.mubr.f32.mxu0 0.0
    %v3589 = vand.u32 %v3124, 4294901760
    %3590 = vmatmul.mubr.f32.gmra.mrb[0].mxu0 %v3589
    %v3591 = vpop.f32.mrb[0].mxu0
    %v3592 = vadd.f32 %v3496, %v3591
    %v3593 = vpop.f32.mrb[0].mxu0
    %3594 = vmatprep.mubr.f32.mxu0 0.0
    %v3595 = vand.u32 %v3127, 4294901760
    %3596 = vmatmul.mubr.f32.gmra.mrb[0].mxu0 %v3595
    %v3597 = vpop.f32.mrb[0].mxu0
    %v3598 = vadd.f32 %v3504, %v3597
    %v3599 = vpop.f32.mrb[0].mxu0
    %3600 = vmatprep.mubr.f32.mxu0 0.0
    %v3601 = vand.u32 %v3130, 4294901760
    %3602 = vmatmul.mubr.f32.gmra.mrb[0].mxu0 %v3601
    %v3603 = vpop.f32.mrb[0].mxu0
    %v3604 = vadd.f32 %v3512, %v3603
    %v3605 = vpop.f32.mrb[0].mxu0
    %3606 = vdwg.mxu0
    %3607 = vmatprep.subr.mxu0 0.0
    %v3608 = vand.u32 %v3097, 4294901760
    %3609 = vmatpush1.msra.mxu0 %v3608
    %3610 = vmatprep.subr.mxu0 0.0
    %v3611 = vand.u32 %v3098, 4294901760
    %3612 = vmatpush1.msra.mxu0 %v3611
    %3613 = vmatprep.subr.mxu0 0.0
    %v3614 = vand.u32 %v3133, 4294901760
    %3615 = vmatpush1.msra.mxu0 %v3614
    %3616 = vmatprep.subr.mxu0 0.0
    %3617 = vmatpush1.msra.mxu0 0.0
    %3618 = vmatprep.subr.mxu0 0.0
    %3619 = vmatpush1.msra.mxu0 0.0
    %3620 = vmatprep.subr.mxu0 0.0
    %3621 = vmatpush1.msra.mxu0 0.0
    %3622 = vmatprep.subr.mxu0 0.0
    %3623 = vmatpush1.msra.mxu0 0.0
    %3624 = vmatprep.subr.mxu0 0.0
    %3625 = vmatpush1.msra.mxu0 0.0
    %3626 = vmatprep.subr.mxu0 0.0
    %3627 = vmatpush1.msra.mxu0 0.0
    %3628 = vmatprep.subr.mxu0 0.0
    %3629 = vmatpush1.msra.mxu0 0.0
    %3630 = vmatprep.subr.mxu0 0.0
    %3631 = vmatpush1.msra.mxu0 0.0
    %3632 = vmatprep.subr.mxu0 0.0
    %3633 = vmatpush1.msra.mxu0 0.0
    %3634 = vmatprep.subr.mxu0 0.0
    %3635 = vmatpush1.msra.mxu0 0.0
    %3636 = vmatprep.subr.mxu0 0.0
    %3637 = vmatpush1.msra.mxu0 0.0
    %3638 = vmatprep.subr.mxu0 0.0
    %3639 = vmatpush1.msra.mxu0 0.0
    %3640 = vmatprep.subr.mxu0 0.0
    %3641 = vmatpush1.msra.mxu0 0.0
    %3642 = vmatprep.subr.mxu0 0.0
    %3643 = vmatpush1.msra.mxu0 0.0
    %3644 = vmatprep.subr.mxu0 0.0
    %3645 = vmatpush1.msra.mxu0 0.0
    %3646 = vmatprep.subr.mxu0 0.0
    %3647 = vmatpush1.msra.mxu0 0.0
    %3648 = vmatprep.subr.mxu0 0.0
    %3649 = vmatpush1.msra.mxu0 0.0
    %3650 = vmatprep.subr.mxu0 0.0
    %3651 = vmatpush1.msra.mxu0 0.0
    %3652 = vmatprep.subr.mxu0 0.0
    %3653 = vmatpush1.msra.mxu0 0.0
    %3654 = vmatprep.subr.mxu0 0.0
    %3655 = vmatpush1.msra.mxu0 0.0
    %3656 = vmatprep.subr.mxu0 0.0
    %3657 = vmatpush1.msra.mxu0 0.0
    %3658 = vmatprep.subr.mxu0 0.0
    %3659 = vmatpush1.msra.mxu0 0.0
    %3660 = vmatprep.subr.mxu0 0.0
    %3661 = vmatpush1.msra.mxu0 0.0
    %3662 = vmatprep.subr.mxu0 0.0
    %3663 = vmatpush1.msra.mxu0 0.0
    %3664 = vmatprep.subr.mxu0 0.0
    %3665 = vmatpush1.msra.mxu0 0.0
    %3666 = vmatprep.subr.mxu0 0.0
    %3667 = vmatpush1.msra.mxu0 0.0
    %3668 = vmatprep.subr.mxu0 0.0
    %3669 = vmatpush1.msra.mxu0 0.0
    %3670 = vmatprep.subr.mxu0 0.0
    %3671 = vmatpush1.msra.mxu0 0.0
    %3672 = vmatprep.subr.mxu0 0.0
    %3673 = vmatpush1.msra.mxu0 0.0
    %3674 = vmatprep.mubr.f32.mxu0 0.0
    %v3675 = vand.u32 %v3124, 4294901760
    %3676 = vmatmul.mubr.f32.gmra.mrb[0].mxu0 %v3675
    %v3677 = vpop.f32.mrb[0].mxu0
    %v3678 = vadd.f32 %v3592, %v3677
    %v3679 = vpop.f32.mrb[0].mxu0
    %3680 = vmatprep.mubr.f32.mxu0 0.0
    %v3681 = vand.u32 %v3127, 4294901760
    %3682 = vmatmul.mubr.f32.gmra.mrb[0].mxu0 %v3681
    %v3683 = vpop.f32.mrb[0].mxu0
    %v3684 = vadd.f32 %v3598, %v3683
    %v3685 = vpop.f32.mrb[0].mxu0
    %3686 = vmatprep.mubr.f32.mxu0 0.0
    %v3687 = vand.u32 %v3130, 4294901760
    %3688 = vmatmul.mubr.f32.gmra.mrb[0].mxu0 %v3687
    %v3689 = vpop.f32.mrb[0].mxu0
    %v3690 = vadd.f32 %v3604, %v3689
    %v3691 = vpop.f32.mrb[0].mxu0
    %3692 = vdwg.mxu0
    %v3693 = vtanh.pop %v3678
    %v3694 = vtanh.pop %v3684
    %v3695 = vtanh.pop %v3690
    %v3696 = vadd.f32 %v3693, %v2501
    %v3697 = vadd.f32 %v3694, %v2502
    %v3698 = vadd.f32 %v3695, %v2503
    %v3699 = vld [vmem:[%s8] sm:$0xff]
    %v3700 = vld [vmem:[%s8 + $0x8] sm:$0xff]
    %v3701 = vld [vmem:[%s8 + $0x10] sm:$0xf]
    %3703 = vset.pattern.permute.xlu0 0
    %3704 = vperm.xlu0 %3703, %v3699
    %v3705 = vpop.permute.xlu0 %3704
    %3708 = vset.pattern.permute.xlu0 0
    %3709 = vperm.xlu0 %3708, %v3700
    %v3710 = vpop.permute.xlu0 %3709
    %3713 = vset.pattern.permute.xlu0 0
    %3714 = vperm.xlu0 %3713, %v3701
    %v3715 = vpop.permute.xlu0 %3714
    %v3717 = vmul.f32 %v3705, %v3696
    %v3718 = vmul.f32 %v3710, %v3697
    %v3719 = vmul.f32 %v3715, %v3698
    %v3720 = vadd.f32 %v3717, %v3718
    %v3721 = vsel %vm147, %v3719, 0.0
    %v3722 = vadd.f32 %v3720, %v3721
    %v3723 = vrot.slane %v3722, 4
    %v3724 = vadd.f32 %v3722, %v3723
    %v3725 = vrot.slane %v3724, 2
    %v3726 = vadd.f32 %v3724, %v3725
    %v3727 = vrot.slane %v3726, 1
    %v3728 = vadd.f32 %v3726, %v3727
    %v3729 = vld [vmem:[#allocation2] sm:$0x1]
    %3731 = vset.pattern.permute.xlu0 0
    %3732 = vperm.xlu0 %3731, %v3729
    %v3733 = vpop.permute.xlu0 %3732
    %v3735 = vlaneseq
    %v3736 = vshrl.u32 %v3735, 7
    %v3737 = vsub.s32 0, %v3736
    %v3738 = vrot.slane %v3733, %v3737
    %v3739 = vadd.f32 %v3728, %v3738
    %3740 = vst [vmem:[#allocation3] sm:$0x1] %v3739
    // Predicated region
    $region42: #{tpu_custom_call.1} parent=1 // pred_check
      _
    $region43: #{tpu_custom_call.1} parent=1 // pred_check_branch
      %3742 = sbr.rel (0) target = $region45
    $region44: #{tpu_custom_call.1} parent=1 // pred_region
      %s3744 = ssub.s32 16, 16
      %3745 = vsyncadd [#allocation4], %s3744
      %s3747 = sshll.u32 [#allocation3], 4
      %s3748 = int_to_ptr.vmem [resolvable:$true] %s3747
      %3750 = dma.vmem_to_hbm [thread:$0]  %s3748, 16, %s10, [#allocation4]
    $region45: #{tpu_custom_call.1} parent=1 // pred_fallthru
      _
    // Predicated region
    $region46: #{tpu_custom_call.1} parent=1 // pred_check
      _
    $region47: #{tpu_custom_call.1} parent=1 // pred_check_branch
      %3752 = sbr.rel (0) target = $region49
    $region48: #{tpu_custom_call.1} parent=1 // pred_region
      %3753 = dma.done [#allocation4], 16
    $region49: #{tpu_custom_call.1} parent=1 // pred_fallthru
      _
    %3754 = vsyncpa [#allocation4], 1

</llo_original>
